<compile_context>
chip_gen: v7x
topology: tpu7x:2x2x1
jax: 0.10.0
libtpu: 0.0.40
codegen_flags: <defaults>
</compile_context>

<pallas_src>
import functools

import jax
import jax.numpy as jnp
import numpy as np
from jax import lax
from jax.experimental import pallas as pl
from jax.experimental.pallas import tpu as pltpu

_INV_SQRT2 = 0.7071067811865476

# Abramowitz & Stegun 7.1.26 erf approximation (max abs error ~1.5e-7), exp/VPU only.
_EP = 0.3275911
_EA1, _EA2, _EA3, _EA4, _EA5 = (0.254829592, -0.284496736, 1.421413741,
                                -1.453152027, 1.061405429)

# channel sizes fixed by the PyTorch model
_C_IN, _C1, _C2, _C3, _C4 = 5, 8, 3, 5, 1

# ---- single parameter slab layout: one (24, 80) f32 array holds every weight & bias ----
_SLAB_SHAPE = (24, 80)
_SLAB_POS = {               # name -> (row0, col0)
    "w1": (0, 0),           # (8, 5)   conv1 weight (out, in)
    "b1": (0, 8),           # (8, 1)
    "w2": (8, 0),           # (3, 72)  conv2 weight packed as (out, (kh*3+kw)*8 + in)
    "b2": (8, 72),          # (3, 1)
    "w3": (16, 0),          # (5, 3)   convT3 weight (out, in)
    "b3": (16, 8),          # (5, 1)
    "w4": (16, 16),         # (5, 1)   convT4 weight (in, 1)
    "b4": (16, 24),         # (1, 1)
}


def _erf_poly(z):
    a = jnp.abs(z)
    t = 1.0 / (1.0 + _EP * a)          # exact f32 divide: negligible cost, zero accuracy risk
    poly = t * (_EA1 + t * (_EA2 + t * (_EA3 + t * (_EA4 + t * _EA5))))
    e = 1.0 - poly * jnp.exp(-a * a)
    return jnp.where(z < 0, -e, e)


def _gelu(v):
    # v*0.5 * (erf(v/sqrt(2)) + 1)  -- matches the PyTorch graph (exact-GELU form)
    return (v * 0.5) * (_erf_poly(v * _INV_SQRT2) + 1.0)


def _slab_read(p_ref, name, shape):
    r, c = _SLAB_POS[name]
    return p_ref[r:r + shape[0], c:c + shape[1]]


# ---------------- fused Pallas kernel (grid=(), everything stays in VMEM) ----------------

def _fused_forward_kernel(x_ref, p_ref, out_ref, pad_ref, *, H, W, log2w, PAD):
    HW = H * W
    Ho, Wo = 2 * H - 1, 2 * W - 1
    f32 = jnp.float32
    # NOTE: Mosaic's dot_general lowering supports Precision.DEFAULT / HIGHEST only
    # (HIGH is not implemented), so the handful of tiny dots keep HIGHEST (f32-exact).
    exact = lax.Precision.HIGHEST

    w1 = _slab_read(p_ref, "w1", (_C1, _C_IN))
    b1 = _slab_read(p_ref, "b1", (_C1, 1))
    w2 = _slab_read(p_ref, "w2", (_C2, 9 * _C1))
    b2 = _slab_read(p_ref, "b2", (_C2, 1))
    w3 = _slab_read(p_ref, "w3", (_C3, _C2))
    b3 = _slab_read(p_ref, "b3", (_C3, 1))
    w4 = _slab_read(p_ref, "w4", (_C3, 1))
    b4 = _slab_read(p_ref, "b4", (1, 1))

    # ---- conv1 (1x1, 5->8) + GELU: one (8,5)@(5,HW) lane-dense MXU dot ----
    g1 = _gelu(jnp.dot(w1, x_ref[...], preferred_element_type=f32, precision=exact) + b1)

    # ---- conv2 (3x3, pad=1, 8->3) + GELU as ONE (3,72)@(72,HW) dot ----
    # Lane-padded copy of g1: only the two 128-lane pad regions are zeroed (vertical
    # out-of-image taps read the zero pads); horizontal out-of-image taps are killed
    # with iota-derived column masks.
    pad_ref[:, 0:PAD] = jnp.zeros((_C1, PAD), f32)
    pad_ref[:, PAD + HW:PAD + HW + PAD] = jnp.zeros((_C1, PAD), f32)
    pad_ref[:, PAD:PAD + HW] = g1

    col = lax.broadcasted_iota(jnp.int32, (1, HW), 1) & (W - 1)   # w-coordinate of each lane
    m_right = jnp.where(col < W - 1, 1.0, 0.0)                    # valid positions for dw=+1
    m_left = jnp.where(col > 0, 1.0, 0.0)                         # valid positions for dw=-1

    rows = []
    for dh in (-1, 0, 1):
        for dw in (-1, 0, 1):
            delta = dh * W + dw
            win = pad_ref[:, PAD + delta:PAD + delta + HW]        # (8, HW) shifted window
            if dw == 1:
                win = win * m_right
            elif dw == -1:
                win = win * m_left
            rows.append(win)
    slab72 = jnp.concatenate(rows, axis=0)                        # (72, HW), tap-major rows
    g2 = _gelu(jnp.dot(w2, slab72, preferred_element_type=f32, precision=exact) + b2)

    # ---- convT3 (1x1, stride=2, 3->5) + GELU: dense values live at even output pixels ----
    y3 = _gelu(jnp.dot(w3, g2, preferred_element_type=f32, precision=exact) + b3)   # (5, HW)

    # ---- convT4 (1x1, 5->1): exact f32 VPU mul + sublane reduce ----
    y = jnp.sum(w4 * y3, axis=0, keepdims=True) + b4              # (1, HW)
    # x-independent value at every output position the stride-2 transpose conv never writes
    odd_c = jnp.sum(w4 * _gelu(b3), axis=0, keepdims=True) + b4   # (1, 1)

    # ---- fused stride-2 interleave: out[2i, 2j] = y[i*W + j], everything else = odd_c ----
    # 0/1 indicator matrices built from iotas; one MXU dot assembles the whole (Ho, Wo)
    # result in-kernel, so the wrapper has no scatter/fill epilogue at all.
    r_i = lax.broadcasted_iota(jnp.int32, (Ho, HW), 0)
    p_i = lax.broadcasted_iota(jnp.int32, (Ho, HW), 1)
    a_sel = jnp.where(r_i == 2 * (p_i >> log2w), 1.0, 0.0)        # (Ho, HW): row selector
    p_j = lax.broadcasted_iota(jnp.int32, (HW, Wo), 0)
    c_j = lax.broadcasted_iota(jnp.int32, (HW, Wo), 1)
    b_sel = jnp.where(c_j == 2 * (p_j & (W - 1)), 1.0, 0.0)       # (HW, Wo): col selector
    dense = jnp.dot(a_sel * y, b_sel, preferred_element_type=f32, precision=exact)  # (Ho, Wo)

    rr = lax.broadcasted_iota(jnp.int32, (Ho, Wo), 0)
    cc = lax.broadcasted_iota(jnp.int32, (Ho, Wo), 1)
    even_pos = ((rr & 1) == 0) & ((cc & 1) == 0)
    out_ref[...] = jnp.where(even_pos, dense, odd_c)


# ---------------- wrapper ----------------

def pack_params(params):
    """One-time (init-time) packing of all weights/biases into a single VMEM slab, so the
    jitted hot path is just: bitcast reshape -> pallas_call -> bitcast reshape."""
    w1, b1, w2, b2, w3, b3, w4, b4 = params
    entries = {
        "w1": w1.reshape(_C1, _C_IN),
        "b1": b1.reshape(_C1, 1),
        # (out, in, kh, kw) -> (out, (kh*3+kw)*C1 + in): matches the in-kernel tap order
        "w2": jnp.transpose(w2, (0, 2, 3, 1)).reshape(_C2, 9 * _C1),
        "b2": b2.reshape(_C2, 1),
        # ConvTranspose weight is stored (in, out, 1, 1) -> (out, in)
        "w3": w3.reshape(_C2, _C3).T,
        "b3": b3.reshape(_C3, 1),
        "w4": w4.reshape(_C3, 1),
        "b4": b4.reshape(1, 1),
    }
    slab = jnp.zeros(_SLAB_SHAPE, jnp.float32)
    for name, arr in entries.items():
        r, c = _SLAB_POS[name]
        slab = slab.at[r:r + arr.shape[0], c:c + arr.shape[1]].set(arr)
    return slab


def model_forward(x, param_slab):
    N, C, H, W = x.shape
    assert N == 1 and C == _C_IN
    assert (W & (W - 1)) == 0, "in-kernel iota masks use shift/and; W must be a power of two"
    # TODO(synk): for non-power-of-two W, pass precomputed selector/mask arrays instead of
    # generating them with shift/and iotas in-kernel.
    HW = H * W
    PAD = 128                       # lane-aligned padding region for the shifted-window reads
    assert W + 1 <= PAD
    Ho, Wo = 2 * H - 1, 2 * W - 1

    x_mat = x.reshape(C, HW)        # same memory layout -> free reshape
    kernel = functools.partial(_fused_forward_kernel, H=H, W=W,
                               log2w=W.bit_length() - 1, PAD=PAD)

    out31 = pl.pallas_call(
        kernel,
        out_shape=jax.ShapeDtypeStruct((Ho, Wo), jnp.float32),
        in_specs=[pl.BlockSpec(memory_space=pltpu.MemorySpace.VMEM),
                  pl.BlockSpec(memory_space=pltpu.MemorySpace.VMEM)],
        out_specs=pl.BlockSpec(memory_space=pltpu.MemorySpace.VMEM),
        scratch_shapes=[pltpu.VMEM((_C1, HW + 2 * PAD), jnp.float32)],
    )(x_mat, param_slab)

    return out31.reshape(1, 1, Ho, Wo)   # free reshape (metadata only)


# ---------------- pure-JAX/XLA reference (for validation) ----------------

def ref_forward(x, params):
    w1, b1, w2, b2, w3, b3, w4, b4 = params
    dn = ('NCHW', 'OIHW', 'NCHW')
    hp = lax.Precision.HIGHEST

    def gelu_exact(y):
        return (y * 0.5) * (jax.scipy.special.erf(y * _INV_SQRT2) + 1.0)

    v1 = lax.conv_general_dilated(x, w1, (1, 1), ((0, 0), (0, 0)),
                                  dimension_numbers=dn, precision=hp) + b1.reshape(1, -1, 1, 1)
    v6 = gelu_exact(v1)
    v7 = lax.conv_general_dilated(v6, w2, (1, 1), ((1, 1), (1, 1)),
                                  dimension_numbers=dn, precision=hp) + b2.reshape(1, -1, 1, 1)
    v12 = gelu_exact(v7)
    # ConvTranspose2d(3,5,1,stride=2) == conv with lhs_dilation=2 and in<->out transposed weight
    v13 = lax.conv_general_dilated(v12, jnp.transpose(w3, (1, 0, 2, 3)), (1, 1),
                                   ((0, 0), (0, 0)), lhs_dilation=(2, 2),
                                   dimension_numbers=dn, precision=hp) + b3.reshape(1, -1, 1, 1)
    v18 = gelu_exact(v13)
    v19 = lax.conv_general_dilated(v18, jnp.transpose(w4, (1, 0, 2, 3)), (1, 1),
                                   ((0, 0), (0, 0)), dimension_numbers=dn,
                                   precision=hp) + b4.reshape(1, -1, 1, 1)
    return v19


if __name__ == "__main__":
    key = jax.random.PRNGKey(0)
    kx, *kp = jax.random.split(key, 10)
    H, W = 16, 16
    x = jax.random.normal(kx, (1, 5, H, W), jnp.float32)
    params = (
        0.2 * jax.random.normal(kp[0], (8, 5, 1, 1), jnp.float32),  # conv.weight
        0.1 * jax.random.normal(kp[1], (8,), jnp.float32),          # conv.bias
        0.2 * jax.random.normal(kp[2], (3, 8, 3, 3), jnp.float32),  # conv2.weight
        0.1 * jax.random.normal(kp[3], (3,), jnp.float32),          # conv2.bias
        0.2 * jax.random.normal(kp[4], (3, 5, 1, 1), jnp.float32),  # conv3.weight (in,out,1,1)
        0.1 * jax.random.normal(kp[5], (5,), jnp.float32),          # conv3.bias
        0.2 * jax.random.normal(kp[6], (5, 1, 1, 1), jnp.float32),  # conv4.weight (in,out,1,1)
        0.1 * jax.random.normal(kp[7], (1,), jnp.float32),          # conv4.bias
    )

    param_slab = pack_params(params)                 # one-time init cost, outside the hot path
    fwd = jax.jit(model_forward)
    out = jax.block_until_ready(fwd(x, param_slab))
    assert out.shape == (1, 1, 2 * H - 1, 2 * W - 1)

    ref = jax.block_until_ready(ref_forward(x, params))
    np.testing.assert_allclose(np.asarray(out), np.asarray(ref), rtol=2e-3, atol=2e-3)
    print("KERNEL_OK")
</pallas_src>

<mosaic_0001>
module attributes {stable_mosaic.version = 11 : i64} {
  func.func @_fused_forward_kernel(%arg0: memref<5x256xf32, #tpu.memory_space<vmem>>, %arg1: memref<24x80xf32, #tpu.memory_space<vmem>>, %arg2: memref<31x31xf32, #tpu.memory_space<vmem>>, %arg3: memref<8x512xf32, #tpu.memory_space<vmem>>) attributes {dimension_semantics = [], scalar_prefetch = 0 : i64, scratch_operands = 1 : i64, tpu.core_type = #tpu.core_type<tc>} {
    %c0 = arith.constant 0 : index
    %c0_0 = arith.constant 0 : index
    %0 = vector.load %arg1[%c0, %c0_0] : memref<24x80xf32, #tpu.memory_space<vmem>>, vector<8x5xf32>
    %c0_1 = arith.constant 0 : index
    %c8 = arith.constant 8 : index
    %1 = vector.load %arg1[%c0_1, %c8] : memref<24x80xf32, #tpu.memory_space<vmem>>, vector<8x1xf32>
    %c8_2 = arith.constant 8 : index
    %c0_3 = arith.constant 0 : index
    %2 = vector.load %arg1[%c8_2, %c0_3] : memref<24x80xf32, #tpu.memory_space<vmem>>, vector<3x72xf32>
    %c8_4 = arith.constant 8 : index
    %c72 = arith.constant 72 : index
    %3 = vector.load %arg1[%c8_4, %c72] : memref<24x80xf32, #tpu.memory_space<vmem>>, vector<3x1xf32>
    %c16 = arith.constant 16 : index
    %c0_5 = arith.constant 0 : index
    %4 = vector.load %arg1[%c16, %c0_5] : memref<24x80xf32, #tpu.memory_space<vmem>>, vector<5x3xf32>
    %c16_6 = arith.constant 16 : index
    %c8_7 = arith.constant 8 : index
    %5 = vector.load %arg1[%c16_6, %c8_7] : memref<24x80xf32, #tpu.memory_space<vmem>>, vector<5x1xf32>
    %c16_8 = arith.constant 16 : index
    %c16_9 = arith.constant 16 : index
    %6 = vector.load %arg1[%c16_8, %c16_9] : memref<24x80xf32, #tpu.memory_space<vmem>>, vector<5x1xf32>
    %c16_10 = arith.constant 16 : index
    %c24 = arith.constant 24 : index
    %7 = vector.load %arg1[%c16_10, %c24] : memref<24x80xf32, #tpu.memory_space<vmem>>, vector<1x1xf32>
    %c0_11 = arith.constant 0 : index
    %c0_12 = arith.constant 0 : index
    %8 = vector.load %arg0[%c0_11, %c0_12] : memref<5x256xf32, #tpu.memory_space<vmem>>, vector<5x256xf32>
    %cst = arith.constant dense<0.000000e+00> : vector<8x256xf32>
    %9 = tpu.matmul %0, %8, %cst {dimension_numbers = #tpu.dot_dimension_numbers<[1], [0], [0], [1], [0, 0, 1, 1], [], []>, precision = #tpu.contract_precision<fp32>} : vector<8x5xf32>, vector<5x256xf32>, vector<8x256xf32> -> vector<8x256xf32>
    %10 = vector.broadcast %1 : vector<8x1xf32> to vector<8x256xf32>
    %11 = arith.addf %9, %10 : vector<8x256xf32>
    %cst_13 = arith.constant 5.000000e-01 : f32
    %12 = vector.broadcast %cst_13 : f32 to vector<8x256xf32>
    %13 = arith.mulf %11, %12 : vector<8x256xf32>
    %cst_14 = arith.constant 0.707106769 : f32
    %14 = vector.broadcast %cst_14 : f32 to vector<8x256xf32>
    %15 = arith.mulf %11, %14 : vector<8x256xf32>
    %16 = math.absf %15 : vector<8x256xf32>
    %cst_15 = arith.constant 0.327591091 : f32
    %17 = vector.broadcast %cst_15 : f32 to vector<8x256xf32>
    %18 = arith.mulf %17, %16 : vector<8x256xf32>
    %cst_16 = arith.constant 1.000000e+00 : f32
    %19 = vector.broadcast %cst_16 : f32 to vector<8x256xf32>
    %20 = arith.addf %19, %18 : vector<8x256xf32>
    %cst_17 = arith.constant 1.000000e+00 : f32
    %21 = vector.broadcast %cst_17 : f32 to vector<8x256xf32>
    %22 = arith.divf %21, %20 : vector<8x256xf32>
    %cst_18 = arith.constant 1.06140542 : f32
    %23 = vector.broadcast %cst_18 : f32 to vector<8x256xf32>
    %24 = arith.mulf %22, %23 : vector<8x256xf32>
    %cst_19 = arith.constant -1.45315206 : f32
    %25 = vector.broadcast %cst_19 : f32 to vector<8x256xf32>
    %26 = arith.addf %25, %24 : vector<8x256xf32>
    %27 = arith.mulf %22, %26 : vector<8x256xf32>
    %cst_20 = arith.constant 1.42141378 : f32
    %28 = vector.broadcast %cst_20 : f32 to vector<8x256xf32>
    %29 = arith.addf %28, %27 : vector<8x256xf32>
    %30 = arith.mulf %22, %29 : vector<8x256xf32>
    %cst_21 = arith.constant -0.284496725 : f32
    %31 = vector.broadcast %cst_21 : f32 to vector<8x256xf32>
    %32 = arith.addf %31, %30 : vector<8x256xf32>
    %33 = arith.mulf %22, %32 : vector<8x256xf32>
    %cst_22 = arith.constant 0.254829586 : f32
    %34 = vector.broadcast %cst_22 : f32 to vector<8x256xf32>
    %35 = arith.addf %34, %33 : vector<8x256xf32>
    %36 = arith.mulf %22, %35 : vector<8x256xf32>
    %cst_23 = arith.constant 0.000000e+00 : f32
    %37 = vector.broadcast %cst_23 : f32 to vector<8x256xf32>
    %38 = arith.subf %37, %16 : vector<8x256xf32>
    %39 = arith.mulf %38, %16 : vector<8x256xf32>
    %40 = math.exp %39 : vector<8x256xf32>
    %41 = arith.mulf %36, %40 : vector<8x256xf32>
    %cst_24 = arith.constant 1.000000e+00 : f32
    %42 = vector.broadcast %cst_24 : f32 to vector<8x256xf32>
    %43 = arith.subf %42, %41 : vector<8x256xf32>
    %cst_25 = arith.constant 0.000000e+00 : f32
    %44 = vector.broadcast %cst_25 : f32 to vector<8x256xf32>
    %45 = arith.cmpf olt, %15, %44 : vector<8x256xf32>
    %cst_26 = arith.constant 0.000000e+00 : f32
    %46 = vector.broadcast %cst_26 : f32 to vector<8x256xf32>
    %47 = arith.subf %46, %43 : vector<8x256xf32>
    %48 = arith.select %45, %47, %43 : vector<8x256xi1>, vector<8x256xf32>
    %cst_27 = arith.constant 1.000000e+00 : f32
    %49 = vector.broadcast %cst_27 : f32 to vector<8x256xf32>
    %50 = arith.addf %48, %49 : vector<8x256xf32>
    %51 = arith.mulf %13, %50 : vector<8x256xf32>
    %cst_28 = arith.constant 0.000000e+00 : f32
    %52 = vector.broadcast %cst_28 : f32 to vector<8x128xf32>
    %c0_29 = arith.constant 0 : index
    %c0_30 = arith.constant 0 : index
    %53 = vector.load %arg3[%c0_29, %c0_30] : memref<8x512xf32, #tpu.memory_space<vmem>>, vector<8x128xf32>
    tpu.vector_store %arg3[%c0_29, %c0_30], %52 {strides = array<i32>} : memref<8x512xf32, #tpu.memory_space<vmem>>, vector<8x128xf32>,
    %cst_31 = arith.constant 0.000000e+00 : f32
    %54 = vector.broadcast %cst_31 : f32 to vector<8x128xf32>
    %c0_32 = arith.constant 0 : index
    %c384 = arith.constant 384 : index
    %55 = vector.load %arg3[%c0_32, %c384] : memref<8x512xf32, #tpu.memory_space<vmem>>, vector<8x128xf32>
    tpu.vector_store %arg3[%c0_32, %c384], %54 {strides = array<i32>} : memref<8x512xf32, #tpu.memory_space<vmem>>, vector<8x128xf32>,
    %c0_33 = arith.constant 0 : index
    %c128 = arith.constant 128 : index
    %56 = vector.load %arg3[%c0_33, %c128] : memref<8x512xf32, #tpu.memory_space<vmem>>, vector<8x256xf32>
    tpu.vector_store %arg3[%c0_33, %c128], %51 {strides = array<i32>} : memref<8x512xf32, #tpu.memory_space<vmem>>, vector<8x256xf32>,
    %57 = tpu.iota {dimensions = array<i32: 1>} : vector<1x256xi32>
    %c15_i32 = arith.constant 15 : i32
    %58 = vector.broadcast %c15_i32 : i32 to vector<1x256xi32>
    %59 = arith.andi %57, %58 : vector<1x256xi32>
    %c15_i32_34 = arith.constant 15 : i32
    %60 = vector.broadcast %c15_i32_34 : i32 to vector<1x256xi32>
    %61 = arith.cmpi slt, %59, %60 : vector<1x256xi32>
    %cst_35 = arith.constant 1.000000e+00 : f32
    %cst_36 = arith.constant 0.000000e+00 : f32
    %62 = vector.broadcast %cst_35 : f32 to vector<1x256xf32>
    %63 = vector.broadcast %cst_36 : f32 to vector<1x256xf32>
    %64 = arith.select %61, %62, %63 : vector<1x256xi1>, vector<1x256xf32>
    %c0_i32 = arith.constant 0 : i32
    %65 = vector.broadcast %c0_i32 : i32 to vector<1x256xi32>
    %66 = arith.cmpi sgt, %59, %65 : vector<1x256xi32>
    %cst_37 = arith.constant 1.000000e+00 : f32
    %cst_38 = arith.constant 0.000000e+00 : f32
    %67 = vector.broadcast %cst_37 : f32 to vector<1x256xf32>
    %68 = vector.broadcast %cst_38 : f32 to vector<1x256xf32>
    %69 = arith.select %66, %67, %68 : vector<1x256xi1>, vector<1x256xf32>
    %c0_39 = arith.constant 0 : index
    %c111 = arith.constant 111 : index
    %70 = vector.load %arg3[%c0_39, %c111] : memref<8x512xf32, #tpu.memory_space<vmem>>, vector<8x256xf32>
    %71 = vector.broadcast %69 : vector<1x256xf32> to vector<8x256xf32>
    %72 = arith.mulf %70, %71 : vector<8x256xf32>
    %c0_40 = arith.constant 0 : index
    %c112 = arith.constant 112 : index
    %73 = vector.load %arg3[%c0_40, %c112] : memref<8x512xf32, #tpu.memory_space<vmem>>, vector<8x256xf32>
    %c0_41 = arith.constant 0 : index
    %c113 = arith.constant 113 : index
    %74 = vector.load %arg3[%c0_41, %c113] : memref<8x512xf32, #tpu.memory_space<vmem>>, vector<8x256xf32>
    %75 = vector.broadcast %64 : vector<1x256xf32> to vector<8x256xf32>
    %76 = arith.mulf %74, %75 : vector<8x256xf32>
    %c0_42 = arith.constant 0 : index
    %c127 = arith.constant 127 : index
    %77 = vector.load %arg3[%c0_42, %c127] : memref<8x512xf32, #tpu.memory_space<vmem>>, vector<8x256xf32>
    %78 = vector.broadcast %69 : vector<1x256xf32> to vector<8x256xf32>
    %79 = arith.mulf %77, %78 : vector<8x256xf32>
    %c0_43 = arith.constant 0 : index
    %c128_44 = arith.constant 128 : index
    %80 = vector.load %arg3[%c0_43, %c128_44] : memref<8x512xf32, #tpu.memory_space<vmem>>, vector<8x256xf32>
    %c0_45 = arith.constant 0 : index
    %c129 = arith.constant 129 : index
    %81 = vector.load %arg3[%c0_45, %c129] : memref<8x512xf32, #tpu.memory_space<vmem>>, vector<8x256xf32>
    %82 = vector.broadcast %64 : vector<1x256xf32> to vector<8x256xf32>
    %83 = arith.mulf %81, %82 : vector<8x256xf32>
    %c0_46 = arith.constant 0 : index
    %c143 = arith.constant 143 : index
    %84 = vector.load %arg3[%c0_46, %c143] : memref<8x512xf32, #tpu.memory_space<vmem>>, vector<8x256xf32>
    %85 = vector.broadcast %69 : vector<1x256xf32> to vector<8x256xf32>
    %86 = arith.mulf %84, %85 : vector<8x256xf32>
    %c0_47 = arith.constant 0 : index
    %c144 = arith.constant 144 : index
    %87 = vector.load %arg3[%c0_47, %c144] : memref<8x512xf32, #tpu.memory_space<vmem>>, vector<8x256xf32>
    %c0_48 = arith.constant 0 : index
    %c145 = arith.constant 145 : index
    %88 = vector.load %arg3[%c0_48, %c145] : memref<8x512xf32, #tpu.memory_space<vmem>>, vector<8x256xf32>
    %89 = vector.broadcast %64 : vector<1x256xf32> to vector<8x256xf32>
    %90 = arith.mulf %88, %89 : vector<8x256xf32>
    %91 = tpu.concatenate %72, %73, %76, %79, %80, %83, %86, %87, %90 in 0 : vector<8x256xf32>, vector<8x256xf32>, vector<8x256xf32>, vector<8x256xf32>, vector<8x256xf32>, vector<8x256xf32>, vector<8x256xf32>, vector<8x256xf32>, vector<8x256xf32> -> vector<72x256xf32>
    %cst_49 = arith.constant dense<0.000000e+00> : vector<3x256xf32>
    %92 = tpu.matmul %2, %91, %cst_49 {dimension_numbers = #tpu.dot_dimension_numbers<[1], [0], [0], [1], [0, 0, 1, 1], [], []>, precision = #tpu.contract_precision<fp32>} : vector<3x72xf32>, vector<72x256xf32>, vector<3x256xf32> -> vector<3x256xf32>
    %93 = vector.broadcast %3 : vector<3x1xf32> to vector<3x256xf32>
    %94 = arith.addf %92, %93 : vector<3x256xf32>
    %cst_50 = arith.constant 5.000000e-01 : f32
    %95 = vector.broadcast %cst_50 : f32 to vector<3x256xf32>
    %96 = arith.mulf %94, %95 : vector<3x256xf32>
    %cst_51 = arith.constant 0.707106769 : f32
    %97 = vector.broadcast %cst_51 : f32 to vector<3x256xf32>
    %98 = arith.mulf %94, %97 : vector<3x256xf32>
    %99 = math.absf %98 : vector<3x256xf32>
    %cst_52 = arith.constant 0.327591091 : f32
    %100 = vector.broadcast %cst_52 : f32 to vector<3x256xf32>
    %101 = arith.mulf %100, %99 : vector<3x256xf32>
    %cst_53 = arith.constant 1.000000e+00 : f32
    %102 = vector.broadcast %cst_53 : f32 to vector<3x256xf32>
    %103 = arith.addf %102, %101 : vector<3x256xf32>
    %cst_54 = arith.constant 1.000000e+00 : f32
    %104 = vector.broadcast %cst_54 : f32 to vector<3x256xf32>
    %105 = arith.divf %104, %103 : vector<3x256xf32>
    %cst_55 = arith.constant 1.06140542 : f32
    %106 = vector.broadcast %cst_55 : f32 to vector<3x256xf32>
    %107 = arith.mulf %105, %106 : vector<3x256xf32>
    %cst_56 = arith.constant -1.45315206 : f32
    %108 = vector.broadcast %cst_56 : f32 to vector<3x256xf32>
    %109 = arith.addf %108, %107 : vector<3x256xf32>
    %110 = arith.mulf %105, %109 : vector<3x256xf32>
    %cst_57 = arith.constant 1.42141378 : f32
    %111 = vector.broadcast %cst_57 : f32 to vector<3x256xf32>
    %112 = arith.addf %111, %110 : vector<3x256xf32>
    %113 = arith.mulf %105, %112 : vector<3x256xf32>
    %cst_58 = arith.constant -0.284496725 : f32
    %114 = vector.broadcast %cst_58 : f32 to vector<3x256xf32>
    %115 = arith.addf %114, %113 : vector<3x256xf32>
    %116 = arith.mulf %105, %115 : vector<3x256xf32>
    %cst_59 = arith.constant 0.254829586 : f32
    %117 = vector.broadcast %cst_59 : f32 to vector<3x256xf32>
    %118 = arith.addf %117, %116 : vector<3x256xf32>
    %119 = arith.mulf %105, %118 : vector<3x256xf32>
    %cst_60 = arith.constant 0.000000e+00 : f32
    %120 = vector.broadcast %cst_60 : f32 to vector<3x256xf32>
    %121 = arith.subf %120, %99 : vector<3x256xf32>
    %122 = arith.mulf %121, %99 : vector<3x256xf32>
    %123 = math.exp %122 : vector<3x256xf32>
    %124 = arith.mulf %119, %123 : vector<3x256xf32>
    %cst_61 = arith.constant 1.000000e+00 : f32
    %125 = vector.broadcast %cst_61 : f32 to vector<3x256xf32>
    %126 = arith.subf %125, %124 : vector<3x256xf32>
    %cst_62 = arith.constant 0.000000e+00 : f32
    %127 = vector.broadcast %cst_62 : f32 to vector<3x256xf32>
    %128 = arith.cmpf olt, %98, %127 : vector<3x256xf32>
    %cst_63 = arith.constant 0.000000e+00 : f32
    %129 = vector.broadcast %cst_63 : f32 to vector<3x256xf32>
    %130 = arith.subf %129, %126 : vector<3x256xf32>
    %131 = arith.select %128, %130, %126 : vector<3x256xi1>, vector<3x256xf32>
    %cst_64 = arith.constant 1.000000e+00 : f32
    %132 = vector.broadcast %cst_64 : f32 to vector<3x256xf32>
    %133 = arith.addf %131, %132 : vector<3x256xf32>
    %134 = arith.mulf %96, %133 : vector<3x256xf32>
    %cst_65 = arith.constant dense<0.000000e+00> : vector<5x256xf32>
    %135 = tpu.matmul %4, %134, %cst_65 {dimension_numbers = #tpu.dot_dimension_numbers<[1], [0], [0], [1], [0, 0, 1, 1], [], []>, precision = #tpu.contract_precision<fp32>} : vector<5x3xf32>, vector<3x256xf32>, vector<5x256xf32> -> vector<5x256xf32>
    %136 = vector.broadcast %5 : vector<5x1xf32> to vector<5x256xf32>
    %137 = arith.addf %135, %136 : vector<5x256xf32>
    %cst_66 = arith.constant 5.000000e-01 : f32
    %138 = vector.broadcast %cst_66 : f32 to vector<5x256xf32>
    %139 = arith.mulf %137, %138 : vector<5x256xf32>
    %cst_67 = arith.constant 0.707106769 : f32
    %140 = vector.broadcast %cst_67 : f32 to vector<5x256xf32>
    %141 = arith.mulf %137, %140 : vector<5x256xf32>
    %142 = math.absf %141 : vector<5x256xf32>
    %cst_68 = arith.constant 0.327591091 : f32
    %143 = vector.broadcast %cst_68 : f32 to vector<5x256xf32>
    %144 = arith.mulf %143, %142 : vector<5x256xf32>
    %cst_69 = arith.constant 1.000000e+00 : f32
    %145 = vector.broadcast %cst_69 : f32 to vector<5x256xf32>
    %146 = arith.addf %145, %144 : vector<5x256xf32>
    %cst_70 = arith.constant 1.000000e+00 : f32
    %147 = vector.broadcast %cst_70 : f32 to vector<5x256xf32>
    %148 = arith.divf %147, %146 : vector<5x256xf32>
    %cst_71 = arith.constant 1.06140542 : f32
    %149 = vector.broadcast %cst_71 : f32 to vector<5x256xf32>
    %150 = arith.mulf %148, %149 : vector<5x256xf32>
    %cst_72 = arith.constant -1.45315206 : f32
    %151 = vector.broadcast %cst_72 : f32 to vector<5x256xf32>
    %152 = arith.addf %151, %150 : vector<5x256xf32>
    %153 = arith.mulf %148, %152 : vector<5x256xf32>
    %cst_73 = arith.constant 1.42141378 : f32
    %154 = vector.broadcast %cst_73 : f32 to vector<5x256xf32>
    %155 = arith.addf %154, %153 : vector<5x256xf32>
    %156 = arith.mulf %148, %155 : vector<5x256xf32>
    %cst_74 = arith.constant -0.284496725 : f32
    %157 = vector.broadcast %cst_74 : f32 to vector<5x256xf32>
    %158 = arith.addf %157, %156 : vector<5x256xf32>
    %159 = arith.mulf %148, %158 : vector<5x256xf32>
    %cst_75 = arith.constant 0.254829586 : f32
    %160 = vector.broadcast %cst_75 : f32 to vector<5x256xf32>
    %161 = arith.addf %160, %159 : vector<5x256xf32>
    %162 = arith.mulf %148, %161 : vector<5x256xf32>
    %cst_76 = arith.constant 0.000000e+00 : f32
    %163 = vector.broadcast %cst_76 : f32 to vector<5x256xf32>
    %164 = arith.subf %163, %142 : vector<5x256xf32>
    %165 = arith.mulf %164, %142 : vector<5x256xf32>
    %166 = math.exp %165 : vector<5x256xf32>
    %167 = arith.mulf %162, %166 : vector<5x256xf32>
    %cst_77 = arith.constant 1.000000e+00 : f32
    %168 = vector.broadcast %cst_77 : f32 to vector<5x256xf32>
    %169 = arith.subf %168, %167 : vector<5x256xf32>
    %cst_78 = arith.constant 0.000000e+00 : f32
    %170 = vector.broadcast %cst_78 : f32 to vector<5x256xf32>
    %171 = arith.cmpf olt, %141, %170 : vector<5x256xf32>
    %cst_79 = arith.constant 0.000000e+00 : f32
    %172 = vector.broadcast %cst_79 : f32 to vector<5x256xf32>
    %173 = arith.subf %172, %169 : vector<5x256xf32>
    %174 = arith.select %171, %173, %169 : vector<5x256xi1>, vector<5x256xf32>
    %cst_80 = arith.constant 1.000000e+00 : f32
    %175 = vector.broadcast %cst_80 : f32 to vector<5x256xf32>
    %176 = arith.addf %174, %175 : vector<5x256xf32>
    %177 = arith.mulf %139, %176 : vector<5x256xf32>
    %178 = vector.broadcast %6 : vector<5x1xf32> to vector<5x256xf32>
    %179 = arith.mulf %178, %177 : vector<5x256xf32>
    %cst_81 = arith.constant dense<0.000000e+00> : vector<256xf32>
    %180 = vector.multi_reduction <add>, %179, %cst_81 [0] : vector<5x256xf32> to vector<256xf32>
    %181 = vector.shape_cast %180 : vector<256xf32> to vector<1x256xf32>
    %182 = vector.broadcast %7 : vector<1x1xf32> to vector<1x256xf32>
    %183 = arith.addf %181, %182 : vector<1x256xf32>
    %cst_82 = arith.constant 5.000000e-01 : f32
    %184 = vector.broadcast %cst_82 : f32 to vector<5x1xf32>
    %185 = arith.mulf %5, %184 : vector<5x1xf32>
    %cst_83 = arith.constant 0.707106769 : f32
    %186 = vector.broadcast %cst_83 : f32 to vector<5x1xf32>
    %187 = arith.mulf %5, %186 : vector<5x1xf32>
    %188 = math.absf %187 : vector<5x1xf32>
    %cst_84 = arith.constant 0.327591091 : f32
    %189 = vector.broadcast %cst_84 : f32 to vector<5x1xf32>
    %190 = arith.mulf %189, %188 : vector<5x1xf32>
    %cst_85 = arith.constant 1.000000e+00 : f32
    %191 = vector.broadcast %cst_85 : f32 to vector<5x1xf32>
    %192 = arith.addf %191, %190 : vector<5x1xf32>
    %cst_86 = arith.constant 1.000000e+00 : f32
    %193 = vector.broadcast %cst_86 : f32 to vector<5x1xf32>
    %194 = arith.divf %193, %192 : vector<5x1xf32>
    %cst_87 = arith.constant 1.06140542 : f32
    %195 = vector.broadcast %cst_87 : f32 to vector<5x1xf32>
    %196 = arith.mulf %194, %195 : vector<5x1xf32>
    %cst_88 = arith.constant -1.45315206 : f32
    %197 = vector.broadcast %cst_88 : f32 to vector<5x1xf32>
    %198 = arith.addf %197, %196 : vector<5x1xf32>
    %199 = arith.mulf %194, %198 : vector<5x1xf32>
    %cst_89 = arith.constant 1.42141378 : f32
    %200 = vector.broadcast %cst_89 : f32 to vector<5x1xf32>
    %201 = arith.addf %200, %199 : vector<5x1xf32>
    %202 = arith.mulf %194, %201 : vector<5x1xf32>
    %cst_90 = arith.constant -0.284496725 : f32
    %203 = vector.broadcast %cst_90 : f32 to vector<5x1xf32>
    %204 = arith.addf %203, %202 : vector<5x1xf32>
    %205 = arith.mulf %194, %204 : vector<5x1xf32>
    %cst_91 = arith.constant 0.254829586 : f32
    %206 = vector.broadcast %cst_91 : f32 to vector<5x1xf32>
    %207 = arith.addf %206, %205 : vector<5x1xf32>
    %208 = arith.mulf %194, %207 : vector<5x1xf32>
    %cst_92 = arith.constant 0.000000e+00 : f32
    %209 = vector.broadcast %cst_92 : f32 to vector<5x1xf32>
    %210 = arith.subf %209, %188 : vector<5x1xf32>
    %211 = arith.mulf %210, %188 : vector<5x1xf32>
    %212 = math.exp %211 : vector<5x1xf32>
    %213 = arith.mulf %208, %212 : vector<5x1xf32>
    %cst_93 = arith.constant 1.000000e+00 : f32
    %214 = vector.broadcast %cst_93 : f32 to vector<5x1xf32>
    %215 = arith.subf %214, %213 : vector<5x1xf32>
    %cst_94 = arith.constant 0.000000e+00 : f32
    %216 = vector.broadcast %cst_94 : f32 to vector<5x1xf32>
    %217 = arith.cmpf olt, %187, %216 : vector<5x1xf32>
    %cst_95 = arith.constant 0.000000e+00 : f32
    %218 = vector.broadcast %cst_95 : f32 to vector<5x1xf32>
    %219 = arith.subf %218, %215 : vector<5x1xf32>
    %220 = arith.select %217, %219, %215 : vector<5x1xi1>, vector<5x1xf32>
    %cst_96 = arith.constant 1.000000e+00 : f32
    %221 = vector.broadcast %cst_96 : f32 to vector<5x1xf32>
    %222 = arith.addf %220, %221 : vector<5x1xf32>
    %223 = arith.mulf %185, %222 : vector<5x1xf32>
    %224 = arith.mulf %6, %223 : vector<5x1xf32>
    %cst_97 = arith.constant dense<0.000000e+00> : vector<1xf32>
    %225 = vector.multi_reduction <add>, %224, %cst_97 [0] : vector<5x1xf32> to vector<1xf32>
    %226 = vector.shape_cast %225 : vector<1xf32> to vector<1x1xf32>
    %227 = arith.addf %226, %7 : vector<1x1xf32>
    %228 = tpu.iota {dimensions = array<i32: 0>} : vector<31x256xi32>
    %229 = tpu.iota {dimensions = array<i32: 1>} : vector<31x256xi32>
    %c4_i32 = arith.constant 4 : i32
    %230 = vector.broadcast %c4_i32 : i32 to vector<31x256xi32>
    %231 = arith.shrsi %229, %230 : vector<31x256xi32>
    %c2_i32 = arith.constant 2 : i32
    %232 = vector.broadcast %c2_i32 : i32 to vector<31x256xi32>
    %233 = arith.muli %232, %231 : vector<31x256xi32>
    %234 = arith.cmpi eq, %228, %233 : vector<31x256xi32>
    %cst_98 = arith.constant 1.000000e+00 : f32
    %cst_99 = arith.constant 0.000000e+00 : f32
    %235 = vector.broadcast %cst_98 : f32 to vector<31x256xf32>
    %236 = vector.broadcast %cst_99 : f32 to vector<31x256xf32>
    %237 = arith.select %234, %235, %236 : vector<31x256xi1>, vector<31x256xf32>
    %238 = tpu.iota {dimensions = array<i32: 0>} : vector<256x31xi32>
    %239 = tpu.iota {dimensions = array<i32: 1>} : vector<256x31xi32>
    %c15_i32_100 = arith.constant 15 : i32
    %240 = vector.broadcast %c15_i32_100 : i32 to vector<256x31xi32>
    %241 = arith.andi %238, %240 : vector<256x31xi32>
    %c2_i32_101 = arith.constant 2 : i32
    %242 = vector.broadcast %c2_i32_101 : i32 to vector<256x31xi32>
    %243 = arith.muli %242, %241 : vector<256x31xi32>
    %244 = arith.cmpi eq, %239, %243 : vector<256x31xi32>
    %cst_102 = arith.constant 1.000000e+00 : f32
    %cst_103 = arith.constant 0.000000e+00 : f32
    %245 = vector.broadcast %cst_102 : f32 to vector<256x31xf32>
    %246 = vector.broadcast %cst_103 : f32 to vector<256x31xf32>
    %247 = arith.select %244, %245, %246 : vector<256x31xi1>, vector<256x31xf32>
    %248 = vector.broadcast %183 : vector<1x256xf32> to vector<31x256xf32>
    %249 = arith.mulf %237, %248 : vector<31x256xf32>
    %cst_104 = arith.constant dense<0.000000e+00> : vector<31x31xf32>
    %250 = tpu.matmul %249, %247, %cst_104 {dimension_numbers = #tpu.dot_dimension_numbers<[1], [0], [0], [1], [0, 0, 1, 1], [], []>, precision = #tpu.contract_precision<fp32>} : vector<31x256xf32>, vector<256x31xf32>, vector<31x31xf32> -> vector<31x31xf32>
    %251 = tpu.iota {dimensions = array<i32: 0>} : vector<31x31xi32>
    %252 = tpu.iota {dimensions = array<i32: 1>} : vector<31x31xi32>
    %c1_i32 = arith.constant 1 : i32
    %253 = vector.broadcast %c1_i32 : i32 to vector<31x31xi32>
    %254 = arith.andi %251, %253 : vector<31x31xi32>
    %c0_i32_105 = arith.constant 0 : i32
    %255 = vector.broadcast %c0_i32_105 : i32 to vector<31x31xi32>
    %256 = arith.cmpi eq, %254, %255 : vector<31x31xi32>
    %c1_i32_106 = arith.constant 1 : i32
    %257 = vector.broadcast %c1_i32_106 : i32 to vector<31x31xi32>
    %258 = arith.andi %252, %257 : vector<31x31xi32>
    %c0_i32_107 = arith.constant 0 : i32
    %259 = vector.broadcast %c0_i32_107 : i32 to vector<31x31xi32>
    %260 = arith.cmpi eq, %258, %259 : vector<31x31xi32>
    %261 = arith.andi %256, %260 : vector<31x31xi1>
    %262 = vector.shape_cast %227 : vector<1x1xf32> to vector<1x1xf32>
    %263 = vector.broadcast %262 : vector<1x1xf32> to vector<31x31xf32>
    %264 = arith.select %261, %250, %263 : vector<31x31xi1>, vector<31x31xf32>
    %c0_108 = arith.constant 0 : index
    %c0_109 = arith.constant 0 : index
    %265 = vector.load %arg2[%c0_108, %c0_109] : memref<31x31xf32, #tpu.memory_space<vmem>>, vector<31x31xf32>
    tpu.vector_store %arg2[%c0_108, %c0_109], %264 {strides = array<i32>} : memref<31x31xf32, #tpu.memory_space<vmem>>, vector<31x31xf32>,
    return
  }
}

</mosaic_0001>

<llo_original>
// kernel: model_forward.1
$region0: #{model_forward.1}
  #allocation0 [shape = 'u32[]', space=smem, size = 0x4, offset = 0x4, fixed_abs, tag = 'smem constant byte address 0x4 - core index']
  #allocation1 [shape = 'u32[144,128]{1,0:T(1,128)}', space=vmem, size = 0x12000, scoped, tag = 'internal scratch']
  #allocation2 [shape = 'f32[8,512]{1,0:T(8,128)}', space=vmem, size = 0x4000, scoped, tag = 'scratch operand']
  %s0 = inlined_call_operand.vmem [shape: f32[5,256], index: 0, kind: input, shape index: {}]
  %s1 = inlined_call_operand.vmem [shape: f32[24,80], index: 1, kind: input, shape index: {}]
  %s2 = inlined_call_operand.vmem [shape: f32[31,31], index: 2, kind: output, shape index: {}]
  %s3 = sld [smem:[#allocation0]]
  $region18: #{model_forward.1} parent=0
    _
  %s5 = ssub.s32 1, %s3
  %s6 = scalar_select 0, %s5, %s3
  // Predicated region
  $region2: #{model_forward.1} parent=0 // pred_check
    _
  $region3: #{model_forward.1} parent=0 // pred_check_branch
    %8 = sbr.rel (0) target = $region5
  $region4: #{model_forward.1} parent=0 // pred_region
    _
  $region5: #{model_forward.1} parent=0 // pred_fallthru
    _
  // Predicated region
  $region6: #{model_forward.1} parent=0 // pred_check
    _
  $region7: #{model_forward.1} parent=0 // pred_check_branch
    %10 = sbr.rel (0) target = $region9
  $region8: #{model_forward.1} parent=0 // pred_region
    _
  $region9: #{model_forward.1} parent=0 // pred_fallthru
    _
  %v11 = vld [vmem:[%s1] sm:$0xff]
  %v12 = vld [vmem:[%s1 + $0x8] sm:$0x7]
  %v13 = vld [vmem:[%s1 + $0x10] sm:$0x1f]
  %v14 = vld [vmem:[%s1 + $0x10] sm:$0x1]
  %v15 = vld [vmem:[%s0] sm:$0x1f]
  %v16 = vld [vmem:[%s0 + $0x8] sm:$0x1f]
  %18 = vset.pattern.permute.xlu0 8
  %19 = vperm.xlu0 %18, %v11
  %v20 = vpop.permute.xlu0 %19
  %vm22 = vcmask 39936
  %v23 = vsel %vm22, %v11, 0
  %vm25 = vcmask 1044480
  %v27 = vsel %vm25, %v15, 0
  %v30 = vsel %vm25, %v16, 0
  %v32 = vand.u32 %v30, 4294901760
  %33 = vmatprep.subr.mxu0 %v32
  %v34 = vand.u32 %v27, 4294901760
  %35 = vmatpush1.msra.mxu0 %v34
  %36 = vmatprep.subr.mxu0 0.0
  %37 = vmatpush1.msra.mxu0 0.0
  %38 = vmatprep.subr.mxu0 0.0
  %39 = vmatpush1.msra.mxu0 0.0
  %40 = vmatprep.subr.mxu0 0.0
  %41 = vmatpush1.msra.mxu0 0.0
  %42 = vmatprep.subr.mxu0 0.0
  %43 = vmatpush1.msra.mxu0 0.0
  %44 = vmatprep.subr.mxu0 0.0
  %45 = vmatpush1.msra.mxu0 0.0
  %46 = vmatprep.subr.mxu0 0.0
  %47 = vmatpush1.msra.mxu0 0.0
  %48 = vmatprep.subr.mxu0 0.0
  %49 = vmatpush1.msra.mxu0 0.0
  %50 = vmatprep.subr.mxu0 0.0
  %51 = vmatpush1.msra.mxu0 0.0
  %52 = vmatprep.subr.mxu0 0.0
  %53 = vmatpush1.msra.mxu0 0.0
  %54 = vmatprep.subr.mxu0 0.0
  %55 = vmatpush1.msra.mxu0 0.0
  %56 = vmatprep.subr.mxu0 0.0
  %57 = vmatpush1.msra.mxu0 0.0
  %58 = vmatprep.subr.mxu0 0.0
  %59 = vmatpush1.msra.mxu0 0.0
  %60 = vmatprep.subr.mxu0 0.0
  %61 = vmatpush1.msra.mxu0 0.0
  %62 = vmatprep.subr.mxu0 0.0
  %63 = vmatpush1.msra.mxu0 0.0
  %64 = vmatprep.subr.mxu0 0.0
  %65 = vmatpush1.msra.mxu0 0.0
  %66 = vmatprep.subr.mxu0 0.0
  %67 = vmatpush1.msra.mxu0 0.0
  %68 = vmatprep.subr.mxu0 0.0
  %69 = vmatpush1.msra.mxu0 0.0
  %70 = vmatprep.subr.mxu0 0.0
  %71 = vmatpush1.msra.mxu0 0.0
  %72 = vmatprep.subr.mxu0 0.0
  %73 = vmatpush1.msra.mxu0 0.0
  %74 = vmatprep.subr.mxu0 0.0
  %75 = vmatpush1.msra.mxu0 0.0
  %76 = vmatprep.subr.mxu0 0.0
  %77 = vmatpush1.msra.mxu0 0.0
  %78 = vmatprep.subr.mxu0 0.0
  %79 = vmatpush1.msra.mxu0 0.0
  %80 = vmatprep.subr.mxu0 0.0
  %81 = vmatpush1.msra.mxu0 0.0
  %82 = vmatprep.subr.mxu0 0.0
  %83 = vmatpush1.msra.mxu0 0.0
  %84 = vmatprep.subr.mxu0 0.0
  %85 = vmatpush1.msra.mxu0 0.0
  %86 = vmatprep.subr.mxu0 0.0
  %87 = vmatpush1.msra.mxu0 0.0
  %88 = vmatprep.subr.mxu0 0.0
  %89 = vmatpush1.msra.mxu0 0.0
  %90 = vmatprep.subr.mxu0 0.0
  %91 = vmatpush1.msra.mxu0 0.0
  %92 = vmatprep.subr.mxu0 0.0
  %93 = vmatpush1.msra.mxu0 0.0
  %94 = vmatprep.subr.mxu0 0.0
  %95 = vmatpush1.msra.mxu0 0.0
  %96 = vmatprep.subr.mxu0 0.0
  %97 = vmatpush1.msra.mxu0 0.0
  %98 = vmatprep.mubr.f32.mxu0 0.0
  %v99 = vand.u32 %v23, 4294901760
  %v100 = vsub.f32 %v23, %v99
  %v101 = vand.u32 %v100, 4294901760
  %v102 = vsub.f32 %v100, %v101
  %v103 = vand.u32 %v102, 4294901760
  %104 = vmatmul.mubr.f32.gmra.mrb[0].mxu0 %v103
  %v105 = vpop.f32.mrb[0].mxu0
  %v106 = vadd.f32 %v20, %v105
  %v107 = vpop.f32.mrb[0].mxu0
  %v108 = vadd.f32 %v20, %v107
  %109 = vdwg.mxu0
  %v110 = vand.u32 %v30, 4294901760
  %v111 = vsub.f32 %v30, %v110
  %v112 = vand.u32 %v111, 4294901760
  %v113 = vsub.f32 %v111, %v112
  %v114 = vand.u32 %v113, 4294901760
  %115 = vmatprep.subr.mxu0 %v114
  %v116 = vand.u32 %v27, 4294901760
  %v117 = vsub.f32 %v27, %v116
  %v118 = vand.u32 %v117, 4294901760
  %v119 = vsub.f32 %v117, %v118
  %v120 = vand.u32 %v119, 4294901760
  %121 = vmatpush1.msra.mxu0 %v120
  %122 = vmatprep.subr.mxu0 0.0
  %123 = vmatpush1.msra.mxu0 0.0
  %124 = vmatprep.subr.mxu0 0.0
  %125 = vmatpush1.msra.mxu0 0.0
  %126 = vmatprep.subr.mxu0 0.0
  %127 = vmatpush1.msra.mxu0 0.0
  %128 = vmatprep.subr.mxu0 0.0
  %129 = vmatpush1.msra.mxu0 0.0
  %130 = vmatprep.subr.mxu0 0.0
  %131 = vmatpush1.msra.mxu0 0.0
  %132 = vmatprep.subr.mxu0 0.0
  %133 = vmatpush1.msra.mxu0 0.0
  %134 = vmatprep.subr.mxu0 0.0
  %135 = vmatpush1.msra.mxu0 0.0
  %136 = vmatprep.subr.mxu0 0.0
  %137 = vmatpush1.msra.mxu0 0.0
  %138 = vmatprep.subr.mxu0 0.0
  %139 = vmatpush1.msra.mxu0 0.0
  %140 = vmatprep.subr.mxu0 0.0
  %141 = vmatpush1.msra.mxu0 0.0
  %142 = vmatprep.subr.mxu0 0.0
  %143 = vmatpush1.msra.mxu0 0.0
  %144 = vmatprep.subr.mxu0 0.0
  %145 = vmatpush1.msra.mxu0 0.0
  %146 = vmatprep.subr.mxu0 0.0
  %147 = vmatpush1.msra.mxu0 0.0
  %148 = vmatprep.subr.mxu0 0.0
  %149 = vmatpush1.msra.mxu0 0.0
  %150 = vmatprep.subr.mxu0 0.0
  %151 = vmatpush1.msra.mxu0 0.0
  %152 = vmatprep.subr.mxu0 0.0
  %153 = vmatpush1.msra.mxu0 0.0
  %154 = vmatprep.subr.mxu0 0.0
  %155 = vmatpush1.msra.mxu0 0.0
  %156 = vmatprep.subr.mxu0 0.0
  %157 = vmatpush1.msra.mxu0 0.0
  %158 = vmatprep.subr.mxu0 0.0
  %159 = vmatpush1.msra.mxu0 0.0
  %160 = vmatprep.subr.mxu0 0.0
  %161 = vmatpush1.msra.mxu0 0.0
  %162 = vmatprep.subr.mxu0 0.0
  %163 = vmatpush1.msra.mxu0 0.0
  %164 = vmatprep.subr.mxu0 0.0
  %165 = vmatpush1.msra.mxu0 0.0
  %166 = vmatprep.subr.mxu0 0.0
  %167 = vmatpush1.msra.mxu0 0.0
  %168 = vmatprep.subr.mxu0 0.0
  %169 = vmatpush1.msra.mxu0 0.0
  %170 = vmatprep.subr.mxu0 0.0
  %171 = vmatpush1.msra.mxu0 0.0
  %172 = vmatprep.subr.mxu0 0.0
  %173 = vmatpush1.msra.mxu0 0.0
  %174 = vmatprep.subr.mxu0 0.0
  %175 = vmatpush1.msra.mxu0 0.0
  %176 = vmatprep.subr.mxu0 0.0
  %177 = vmatpush1.msra.mxu0 0.0
  %178 = vmatprep.subr.mxu0 0.0
  %179 = vmatpush1.msra.mxu0 0.0
  %180 = vmatprep.subr.mxu0 0.0
  %181 = vmatpush1.msra.mxu0 0.0
  %182 = vmatprep.subr.mxu0 0.0
  %183 = vmatpush1.msra.mxu0 0.0
  %184 = vmatprep.mubr.f32.mxu0 0.0
  %v185 = vand.u32 %v23, 4294901760
  %186 = vmatmul.mubr.f32.gmra.mrb[0].mxu0 %v185
  %v187 = vpop.f32.mrb[0].mxu0
  %v188 = vadd.f32 %v106, %v187
  %v189 = vpop.f32.mrb[0].mxu0
  %v190 = vadd.f32 %v108, %v189
  %191 = vdwg.mxu0
  %v192 = vand.u32 %v30, 4294901760
  %v193 = vsub.f32 %v30, %v192
  %194 = vmatprep.subr.mxu0 %v193
  %v195 = vand.u32 %v27, 4294901760
  %v196 = vsub.f32 %v27, %v195
  %197 = vmatpush1.msra.mxu0 %v196
  %198 = vmatprep.subr.mxu0 0.0
  %199 = vmatpush1.msra.mxu0 0.0
  %200 = vmatprep.subr.mxu0 0.0
  %201 = vmatpush1.msra.mxu0 0.0
  %202 = vmatprep.subr.mxu0 0.0
  %203 = vmatpush1.msra.mxu0 0.0
  %204 = vmatprep.subr.mxu0 0.0
  %205 = vmatpush1.msra.mxu0 0.0
  %206 = vmatprep.subr.mxu0 0.0
  %207 = vmatpush1.msra.mxu0 0.0
  %208 = vmatprep.subr.mxu0 0.0
  %209 = vmatpush1.msra.mxu0 0.0
  %210 = vmatprep.subr.mxu0 0.0
  %211 = vmatpush1.msra.mxu0 0.0
  %212 = vmatprep.subr.mxu0 0.0
  %213 = vmatpush1.msra.mxu0 0.0
  %214 = vmatprep.subr.mxu0 0.0
  %215 = vmatpush1.msra.mxu0 0.0
  %216 = vmatprep.subr.mxu0 0.0
  %217 = vmatpush1.msra.mxu0 0.0
  %218 = vmatprep.subr.mxu0 0.0
  %219 = vmatpush1.msra.mxu0 0.0
  %220 = vmatprep.subr.mxu0 0.0
  %221 = vmatpush1.msra.mxu0 0.0
  %222 = vmatprep.subr.mxu0 0.0
  %223 = vmatpush1.msra.mxu0 0.0
  %224 = vmatprep.subr.mxu0 0.0
  %225 = vmatpush1.msra.mxu0 0.0
  %226 = vmatprep.subr.mxu0 0.0
  %227 = vmatpush1.msra.mxu0 0.0
  %228 = vmatprep.subr.mxu0 0.0
  %229 = vmatpush1.msra.mxu0 0.0
  %230 = vmatprep.subr.mxu0 0.0
  %231 = vmatpush1.msra.mxu0 0.0
  %232 = vmatprep.subr.mxu0 0.0
  %233 = vmatpush1.msra.mxu0 0.0
  %234 = vmatprep.subr.mxu0 0.0
  %235 = vmatpush1.msra.mxu0 0.0
  %236 = vmatprep.subr.mxu0 0.0
  %237 = vmatpush1.msra.mxu0 0.0
  %238 = vmatprep.subr.mxu0 0.0
  %239 = vmatpush1.msra.mxu0 0.0
  %240 = vmatprep.subr.mxu0 0.0
  %241 = vmatpush1.msra.mxu0 0.0
  %242 = vmatprep.subr.mxu0 0.0
  %243 = vmatpush1.msra.mxu0 0.0
  %244 = vmatprep.subr.mxu0 0.0
  %245 = vmatpush1.msra.mxu0 0.0
  %246 = vmatprep.subr.mxu0 0.0
  %247 = vmatpush1.msra.mxu0 0.0
  %248 = vmatprep.subr.mxu0 0.0
  %249 = vmatpush1.msra.mxu0 0.0
  %250 = vmatprep.subr.mxu0 0.0
  %251 = vmatpush1.msra.mxu0 0.0
  %252 = vmatprep.subr.mxu0 0.0
  %253 = vmatpush1.msra.mxu0 0.0
  %254 = vmatprep.subr.mxu0 0.0
  %255 = vmatpush1.msra.mxu0 0.0
  %256 = vmatprep.subr.mxu0 0.0
  %257 = vmatpush1.msra.mxu0 0.0
  %258 = vmatprep.subr.mxu0 0.0
  %259 = vmatpush1.msra.mxu0 0.0
  %260 = vmatprep.mubr.f32.mxu0 0.0
  %v261 = vand.u32 %v23, 4294901760
  %v262 = vsub.f32 %v23, %v261
  %263 = vmatmul.mubr.f32.gmra.mrb[0].mxu0 %v262
  %v264 = vpop.f32.mrb[0].mxu0
  %v265 = vadd.f32 %v188, %v264
  %v266 = vpop.f32.mrb[0].mxu0
  %v267 = vadd.f32 %v190, %v266
  %268 = vdwg.mxu0
  %v269 = vand.u32 %v30, 4294901760
  %270 = vmatprep.subr.mxu0 %v269
  %v271 = vand.u32 %v27, 4294901760
  %272 = vmatpush1.msra.mxu0 %v271
  %273 = vmatprep.subr.mxu0 0.0
  %274 = vmatpush1.msra.mxu0 0.0
  %275 = vmatprep.subr.mxu0 0.0
  %276 = vmatpush1.msra.mxu0 0.0
  %277 = vmatprep.subr.mxu0 0.0
  %278 = vmatpush1.msra.mxu0 0.0
  %279 = vmatprep.subr.mxu0 0.0
  %280 = vmatpush1.msra.mxu0 0.0
  %281 = vmatprep.subr.mxu0 0.0
  %282 = vmatpush1.msra.mxu0 0.0
  %283 = vmatprep.subr.mxu0 0.0
  %284 = vmatpush1.msra.mxu0 0.0
  %285 = vmatprep.subr.mxu0 0.0
  %286 = vmatpush1.msra.mxu0 0.0
  %287 = vmatprep.subr.mxu0 0.0
  %288 = vmatpush1.msra.mxu0 0.0
  %289 = vmatprep.subr.mxu0 0.0
  %290 = vmatpush1.msra.mxu0 0.0
  %291 = vmatprep.subr.mxu0 0.0
  %292 = vmatpush1.msra.mxu0 0.0
  %293 = vmatprep.subr.mxu0 0.0
  %294 = vmatpush1.msra.mxu0 0.0
  %295 = vmatprep.subr.mxu0 0.0
  %296 = vmatpush1.msra.mxu0 0.0
  %297 = vmatprep.subr.mxu0 0.0
  %298 = vmatpush1.msra.mxu0 0.0
  %299 = vmatprep.subr.mxu0 0.0
  %300 = vmatpush1.msra.mxu0 0.0
  %301 = vmatprep.subr.mxu0 0.0
  %302 = vmatpush1.msra.mxu0 0.0
  %303 = vmatprep.subr.mxu0 0.0
  %304 = vmatpush1.msra.mxu0 0.0
  %305 = vmatprep.subr.mxu0 0.0
  %306 = vmatpush1.msra.mxu0 0.0
  %307 = vmatprep.subr.mxu0 0.0
  %308 = vmatpush1.msra.mxu0 0.0
  %309 = vmatprep.subr.mxu0 0.0
  %310 = vmatpush1.msra.mxu0 0.0
  %311 = vmatprep.subr.mxu0 0.0
  %312 = vmatpush1.msra.mxu0 0.0
  %313 = vmatprep.subr.mxu0 0.0
  %314 = vmatpush1.msra.mxu0 0.0
  %315 = vmatprep.subr.mxu0 0.0
  %316 = vmatpush1.msra.mxu0 0.0
  %317 = vmatprep.subr.mxu0 0.0
  %318 = vmatpush1.msra.mxu0 0.0
  %319 = vmatprep.subr.mxu0 0.0
  %320 = vmatpush1.msra.mxu0 0.0
  %321 = vmatprep.subr.mxu0 0.0
  %322 = vmatpush1.msra.mxu0 0.0
  %323 = vmatprep.subr.mxu0 0.0
  %324 = vmatpush1.msra.mxu0 0.0
  %325 = vmatprep.subr.mxu0 0.0
  %326 = vmatpush1.msra.mxu0 0.0
  %327 = vmatprep.subr.mxu0 0.0
  %328 = vmatpush1.msra.mxu0 0.0
  %329 = vmatprep.subr.mxu0 0.0
  %330 = vmatpush1.msra.mxu0 0.0
  %331 = vmatprep.subr.mxu0 0.0
  %332 = vmatpush1.msra.mxu0 0.0
  %333 = vmatprep.subr.mxu0 0.0
  %334 = vmatpush1.msra.mxu0 0.0
  %335 = vmatprep.mubr.f32.mxu0 0.0
  %v336 = vand.u32 %v23, 4294901760
  %v337 = vsub.f32 %v23, %v336
  %v338 = vand.u32 %v337, 4294901760
  %339 = vmatmul.mubr.f32.gmra.mrb[0].mxu0 %v338
  %v340 = vpop.f32.mrb[0].mxu0
  %v341 = vadd.f32 %v265, %v340
  %v342 = vpop.f32.mrb[0].mxu0
  %v343 = vadd.f32 %v267, %v342
  %344 = vdwg.mxu0
  %v345 = vand.u32 %v30, 4294901760
  %v346 = vsub.f32 %v30, %v345
  %v347 = vand.u32 %v346, 4294901760
  %348 = vmatprep.subr.mxu0 %v347
  %v349 = vand.u32 %v27, 4294901760
  %v350 = vsub.f32 %v27, %v349
  %v351 = vand.u32 %v350, 4294901760
  %352 = vmatpush1.msra.mxu0 %v351
  %353 = vmatprep.subr.mxu0 0.0
  %354 = vmatpush1.msra.mxu0 0.0
  %355 = vmatprep.subr.mxu0 0.0
  %356 = vmatpush1.msra.mxu0 0.0
  %357 = vmatprep.subr.mxu0 0.0
  %358 = vmatpush1.msra.mxu0 0.0
  %359 = vmatprep.subr.mxu0 0.0
  %360 = vmatpush1.msra.mxu0 0.0
  %361 = vmatprep.subr.mxu0 0.0
  %362 = vmatpush1.msra.mxu0 0.0
  %363 = vmatprep.subr.mxu0 0.0
  %364 = vmatpush1.msra.mxu0 0.0
  %365 = vmatprep.subr.mxu0 0.0
  %366 = vmatpush1.msra.mxu0 0.0
  %367 = vmatprep.subr.mxu0 0.0
  %368 = vmatpush1.msra.mxu0 0.0
  %369 = vmatprep.subr.mxu0 0.0
  %370 = vmatpush1.msra.mxu0 0.0
  %371 = vmatprep.subr.mxu0 0.0
  %372 = vmatpush1.msra.mxu0 0.0
  %373 = vmatprep.subr.mxu0 0.0
  %374 = vmatpush1.msra.mxu0 0.0
  %375 = vmatprep.subr.mxu0 0.0
  %376 = vmatpush1.msra.mxu0 0.0
  %377 = vmatprep.subr.mxu0 0.0
  %378 = vmatpush1.msra.mxu0 0.0
  %379 = vmatprep.subr.mxu0 0.0
  %380 = vmatpush1.msra.mxu0 0.0
  %381 = vmatprep.subr.mxu0 0.0
  %382 = vmatpush1.msra.mxu0 0.0
  %383 = vmatprep.subr.mxu0 0.0
  %384 = vmatpush1.msra.mxu0 0.0
  %385 = vmatprep.subr.mxu0 0.0
  %386 = vmatpush1.msra.mxu0 0.0
  %387 = vmatprep.subr.mxu0 0.0
  %388 = vmatpush1.msra.mxu0 0.0
  %389 = vmatprep.subr.mxu0 0.0
  %390 = vmatpush1.msra.mxu0 0.0
  %391 = vmatprep.subr.mxu0 0.0
  %392 = vmatpush1.msra.mxu0 0.0
  %393 = vmatprep.subr.mxu0 0.0
  %394 = vmatpush1.msra.mxu0 0.0
  %395 = vmatprep.subr.mxu0 0.0
  %396 = vmatpush1.msra.mxu0 0.0
  %397 = vmatprep.subr.mxu0 0.0
  %398 = vmatpush1.msra.mxu0 0.0
  %399 = vmatprep.subr.mxu0 0.0
  %400 = vmatpush1.msra.mxu0 0.0
  %401 = vmatprep.subr.mxu0 0.0
  %402 = vmatpush1.msra.mxu0 0.0
  %403 = vmatprep.subr.mxu0 0.0
  %404 = vmatpush1.msra.mxu0 0.0
  %405 = vmatprep.subr.mxu0 0.0
  %406 = vmatpush1.msra.mxu0 0.0
  %407 = vmatprep.subr.mxu0 0.0
  %408 = vmatpush1.msra.mxu0 0.0
  %409 = vmatprep.subr.mxu0 0.0
  %410 = vmatpush1.msra.mxu0 0.0
  %411 = vmatprep.subr.mxu0 0.0
  %412 = vmatpush1.msra.mxu0 0.0
  %413 = vmatprep.subr.mxu0 0.0
  %414 = vmatpush1.msra.mxu0 0.0
  %415 = vmatprep.mubr.f32.mxu0 0.0
  %v416 = vand.u32 %v23, 4294901760
  %417 = vmatmul.mubr.f32.gmra.mrb[0].mxu0 %v416
  %v418 = vpop.f32.mrb[0].mxu0
  %v419 = vadd.f32 %v341, %v418
  %v420 = vpop.f32.mrb[0].mxu0
  %v421 = vadd.f32 %v343, %v420
  %422 = vdwg.mxu0
  %v423 = vand.u32 %v30, 4294901760
  %424 = vmatprep.subr.mxu0 %v423
  %v425 = vand.u32 %v27, 4294901760
  %426 = vmatpush1.msra.mxu0 %v425
  %427 = vmatprep.subr.mxu0 0.0
  %428 = vmatpush1.msra.mxu0 0.0
  %429 = vmatprep.subr.mxu0 0.0
  %430 = vmatpush1.msra.mxu0 0.0
  %431 = vmatprep.subr.mxu0 0.0
  %432 = vmatpush1.msra.mxu0 0.0
  %433 = vmatprep.subr.mxu0 0.0
  %434 = vmatpush1.msra.mxu0 0.0
  %435 = vmatprep.subr.mxu0 0.0
  %436 = vmatpush1.msra.mxu0 0.0
  %437 = vmatprep.subr.mxu0 0.0
  %438 = vmatpush1.msra.mxu0 0.0
  %439 = vmatprep.subr.mxu0 0.0
  %440 = vmatpush1.msra.mxu0 0.0
  %441 = vmatprep.subr.mxu0 0.0
  %442 = vmatpush1.msra.mxu0 0.0
  %443 = vmatprep.subr.mxu0 0.0
  %444 = vmatpush1.msra.mxu0 0.0
  %445 = vmatprep.subr.mxu0 0.0
  %446 = vmatpush1.msra.mxu0 0.0
  %447 = vmatprep.subr.mxu0 0.0
  %448 = vmatpush1.msra.mxu0 0.0
  %449 = vmatprep.subr.mxu0 0.0
  %450 = vmatpush1.msra.mxu0 0.0
  %451 = vmatprep.subr.mxu0 0.0
  %452 = vmatpush1.msra.mxu0 0.0
  %453 = vmatprep.subr.mxu0 0.0
  %454 = vmatpush1.msra.mxu0 0.0
  %455 = vmatprep.subr.mxu0 0.0
  %456 = vmatpush1.msra.mxu0 0.0
  %457 = vmatprep.subr.mxu0 0.0
  %458 = vmatpush1.msra.mxu0 0.0
  %459 = vmatprep.subr.mxu0 0.0
  %460 = vmatpush1.msra.mxu0 0.0
  %461 = vmatprep.subr.mxu0 0.0
  %462 = vmatpush1.msra.mxu0 0.0
  %463 = vmatprep.subr.mxu0 0.0
  %464 = vmatpush1.msra.mxu0 0.0
  %465 = vmatprep.subr.mxu0 0.0
  %466 = vmatpush1.msra.mxu0 0.0
  %467 = vmatprep.subr.mxu0 0.0
  %468 = vmatpush1.msra.mxu0 0.0
  %469 = vmatprep.subr.mxu0 0.0
  %470 = vmatpush1.msra.mxu0 0.0
  %471 = vmatprep.subr.mxu0 0.0
  %472 = vmatpush1.msra.mxu0 0.0
  %473 = vmatprep.subr.mxu0 0.0
  %474 = vmatpush1.msra.mxu0 0.0
  %475 = vmatprep.subr.mxu0 0.0
  %476 = vmatpush1.msra.mxu0 0.0
  %477 = vmatprep.subr.mxu0 0.0
  %478 = vmatpush1.msra.mxu0 0.0
  %479 = vmatprep.subr.mxu0 0.0
  %480 = vmatpush1.msra.mxu0 0.0
  %481 = vmatprep.subr.mxu0 0.0
  %482 = vmatpush1.msra.mxu0 0.0
  %483 = vmatprep.subr.mxu0 0.0
  %484 = vmatpush1.msra.mxu0 0.0
  %485 = vmatprep.subr.mxu0 0.0
  %486 = vmatpush1.msra.mxu0 0.0
  %487 = vmatprep.subr.mxu0 0.0
  %488 = vmatpush1.msra.mxu0 0.0
  %489 = vmatprep.mubr.f32.mxu0 0.0
  %v490 = vand.u32 %v23, 4294901760
  %491 = vmatmul.mubr.f32.gmra.mrb[0].mxu0 %v490
  %v492 = vpop.f32.mrb[0].mxu0
  %v493 = vadd.f32 %v419, %v492
  %v494 = vpop.f32.mrb[0].mxu0
  %v495 = vadd.f32 %v421, %v494
  %496 = vdwg.mxu0
  %v497 = vmul.f32 %v493, 0.5
  %v498 = vmul.f32 %v495, 0.5
  %v499 = vmul.f32 %v493, 0.70710677
  %v500 = vmul.f32 %v495, 0.70710677
  %v501 = vand.u32 2147483647, %v499
  %v502 = vand.u32 2147483647, %v500
  %v503 = vmul.f32 %v501, 0.3275911
  %v504 = vmul.f32 %v502, 0.3275911
  %v505 = vadd.f32 %v503, 1.0
  %v506 = vadd.f32 %v504, 1.0
  %v507 = vrcp.pop %v505
  %v508 = vmul.f32 1.0, %v507
  %v509 = vrcp.pop %v506
  %v510 = vmul.f32 1.0, %v509
  %v511 = vmul.f32 %v508, 1.0614054
  %v512 = vmul.f32 %v510, 1.0614054
  %v513 = vadd.f32 %v511, -1.4531521
  %v514 = vadd.f32 %v512, -1.4531521
  %v515 = vmul.f32 %v508, %v513
  %v516 = vmul.f32 %v510, %v514
  %v517 = vadd.f32 %v515, 1.4214138
  %v518 = vadd.f32 %v516, 1.4214138
  %v519 = vmul.f32 %v508, %v517
  %v520 = vmul.f32 %v510, %v518
  %v521 = vadd.f32 %v519, -0.28449672
  %v522 = vadd.f32 %v520, -0.28449672
  %v523 = vmul.f32 %v508, %v521
  %v524 = vmul.f32 %v510, %v522
  %v525 = vadd.f32 %v523, 0.2548296
  %v526 = vadd.f32 %v524, 0.2548296
  %v527 = vmul.f32 %v508, %v525
  %v528 = vmul.f32 %v510, %v526
  %v529 = vsub.f32 0.0, %v501
  %v530 = vsub.f32 0.0, %v502
  %v531 = vmul.f32 %v529, %v501
  %v532 = vmul.f32 %v530, %v502
  %v533 = vmul.f32 %v531, 1.442695
  %v534 = vpow.pop %v533
  %v535 = vmul.f32 %v532, 1.442695
  %v536 = vpow.pop %v535
  %v537 = vmul.f32 %v527, %v534
  %v538 = vmul.f32 %v528, %v536
  %v539 = vsub.f32 1.0, %v537
  %v540 = vsub.f32 1.0, %v538
  %vm541 = vcmp.lt.f32.partialorder %v499, 0.0
  %vm542 = vcmp.lt.f32.partialorder %v500, 0.0
  %v543 = vsub.f32 0.0, %v539
  %v544 = vsub.f32 0.0, %v540
  %v545 = vsel %vm541, %v543, %v539
  %v546 = vsel %vm542, %v544, %v540
  %v547 = vadd.f32 %v545, 1.0
  %v548 = vadd.f32 %v546, 1.0
  %v549 = vmul.f32 %v497, %v547
  %v550 = vmul.f32 %v498, %v548
  %551 = vst [vmem:[#allocation2] sm:$0xff] 0.0
  %552 = vst [vmem:[#allocation2 + $0x18] sm:$0xff] 0.0
  %553 = vst [vmem:[#allocation2 + $0x8] sm:$0xff] %v549
  %554 = vst [vmem:[#allocation2 + $0x10] sm:$0xff] %v550
  %v555 = vlaneseq
  %v556 = vand.u32 %v555, 127
  %v557 = vadd.s32 %v556, 128
  %v558 = vand.u32 %v556, 15
  %v559 = vand.u32 %v557, 15
  %vm560 = vcmp.lt.s32.totalorder %v558, 15
  %vm561 = vcmp.lt.s32.totalorder %v559, 15
  %v562 = vsel %vm560, 1.0, 0.0
  %v563 = vsel %vm561, 1.0, 0.0
  %vm564 = vcmp.gt.s32.totalorder %v558, 0
  %vm565 = vcmp.gt.s32.totalorder %v559, 0
  %v566 = vsel %vm564, 1.0, 0.0
  %v567 = vsel %vm565, 1.0, 0.0
  %v568 = vld [vmem:[#allocation2] sm:$0xff]
  %v569 = vld [vmem:[#allocation2 + $0x8] sm:$0xff]
  %v570 = vld [vmem:[#allocation2 + $0x10] sm:$0xff]
  %573 = vrot.lane.b32.xlu0 %v566, 111
  %v574 = vpop.permute.xlu0 %573
  %575 = vrot.lane.b32.xlu0 %v567, 111
  %v576 = vpop.permute.xlu0 %575
  %vm577 = vcmask 908288
  %v578 = vsel %vm577, %v574, %v576
  %v582 = vmul.f32 %v568, %v574
  %v583 = vmul.f32 %v569, %v578
  %v584 = vmul.f32 %v570, %v576
  %587 = vrot.lane.b32.xlu0 %v562, 113
  %v588 = vpop.permute.xlu0 %587
  %589 = vrot.lane.b32.xlu0 %v563, 113
  %v590 = vpop.permute.xlu0 %589
  %vm591 = vcmask 924672
  %v592 = vsel %vm591, %v588, %v590
  %v596 = vmul.f32 %v568, %v588
  %v597 = vmul.f32 %v569, %v592
  %v598 = vmul.f32 %v570, %v590
  %599 = vrot.lane.b32.xlu0 %v566, 127
  %v600 = vpop.permute.xlu0 %599
  %601 = vrot.lane.b32.xlu0 %v567, 127
  %v602 = vpop.permute.xlu0 %601
  %vm603 = vcmask 1039360
  %v604 = vsel %vm603, %v600, %v602
  %v608 = vmul.f32 %v568, %v600
  %v609 = vmul.f32 %v569, %v604
  %v610 = vmul.f32 %v570, %v602
  %v611 = vld [vmem:[#allocation2 + $0x8] sm:$0xff]
  %v612 = vld [vmem:[#allocation2 + $0x10] sm:$0xff]
  %v613 = vld [vmem:[#allocation2 + $0x18] sm:$0xff]
  %614 = vrot.lane.b32.xlu0 %v562, 1
  %v615 = vpop.permute.xlu0 %614
  %616 = vrot.lane.b32.xlu0 %v563, 1
  %v617 = vpop.permute.xlu0 %616
  %vm618 = vcmask 7168
  %v619 = vsel %vm618, %v615, %v617
  %v623 = vmul.f32 %v611, %v615
  %v624 = vmul.f32 %v612, %v619
  %v625 = vmul.f32 %v613, %v617
  %626 = vrot.lane.b32.xlu0 %v566, 15
  %v627 = vpop.permute.xlu0 %626
  %628 = vrot.lane.b32.xlu0 %v567, 15
  %v629 = vpop.permute.xlu0 %628
  %vm630 = vcmask 121856
  %v631 = vsel %vm630, %v627, %v629
  %v635 = vmul.f32 %v611, %v627
  %v636 = vmul.f32 %v612, %v631
  %v637 = vmul.f32 %v613, %v629
  %638 = vrot.lane.b32.xlu0 %v562, 17
  %v639 = vpop.permute.xlu0 %638
  %640 = vrot.lane.b32.xlu0 %v563, 17
  %v641 = vpop.permute.xlu0 %640
  %vm642 = vcmask 138240
  %v643 = vsel %vm642, %v639, %v641
  %v647 = vmul.f32 %v611, %v639
  %v648 = vmul.f32 %v612, %v643
  %v649 = vmul.f32 %v613, %v641
  %653 = vrot.lane.b32.xlu0 %v568, 127
  %v654 = vpop.permute.xlu0 %653
  %655 = vrot.lane.b32.xlu0 %v569, 127
  %v656 = vpop.permute.xlu0 %655
  %657 = vrot.lane.b32.xlu0 %v570, 127
  %v658 = vpop.permute.xlu0 %657
  %v659 = vsel %vm603, %v654, %v656
  %v660 = vsel %vm603, %v656, %v658
  %664 = vrot.lane.b32.xlu0 %v596, 126
  %v665 = vpop.permute.xlu0 %664
  %666 = vrot.lane.b32.xlu0 %v597, 126
  %v667 = vpop.permute.xlu0 %666
  %668 = vrot.lane.b32.xlu0 %v598, 126
  %v669 = vpop.permute.xlu0 %668
  %vm670 = vcmask 1031168
  %v671 = vsel %vm670, %v665, %v667
  %v672 = vsel %vm670, %v667, %v669
  %676 = vrot.lane.b32.xlu0 %v608, 112
  %v677 = vpop.permute.xlu0 %676
  %678 = vrot.lane.b32.xlu0 %v609, 112
  %v679 = vpop.permute.xlu0 %678
  %680 = vrot.lane.b32.xlu0 %v610, 112
  %v681 = vpop.permute.xlu0 %680
  %vm682 = vcmask 916480
  %v683 = vsel %vm682, %v677, %v679
  %v684 = vsel %vm682, %v679, %v681
  %685 = vrot.lane.b32.xlu0 %v569, 111
  %v686 = vpop.permute.xlu0 %685
  %687 = vrot.lane.b32.xlu0 %v570, 111
  %v688 = vpop.permute.xlu0 %687
  %v689 = vsel %vm577, %v686, %v688
  %693 = vrot.lane.b32.xlu0 %v623, 110
  %v694 = vpop.permute.xlu0 %693
  %695 = vrot.lane.b32.xlu0 %v624, 110
  %v696 = vpop.permute.xlu0 %695
  %697 = vrot.lane.b32.xlu0 %v625, 110
  %v698 = vpop.permute.xlu0 %697
  %vm699 = vcmask 900096
  %v700 = vsel %vm699, %v694, %v696
  %v701 = vsel %vm699, %v696, %v698
  %705 = vrot.lane.b32.xlu0 %v635, 96
  %v706 = vpop.permute.xlu0 %705
  %707 = vrot.lane.b32.xlu0 %v636, 96
  %v708 = vpop.permute.xlu0 %707
  %709 = vrot.lane.b32.xlu0 %v637, 96
  %v710 = vpop.permute.xlu0 %709
  %vm711 = vcmask 785408
  %v712 = vsel %vm711, %v706, %v708
  %v713 = vsel %vm711, %v708, %v710
  %717 = vrot.lane.b32.xlu0 %v611, 95
  %v718 = vpop.permute.xlu0 %717
  %719 = vrot.lane.b32.xlu0 %v612, 95
  %v720 = vpop.permute.xlu0 %719
  %721 = vrot.lane.b32.xlu0 %v613, 95
  %v722 = vpop.permute.xlu0 %721
  %vm723 = vcmask 777216
  %v724 = vsel %vm723, %v718, %v720
  %v725 = vsel %vm723, %v720, %v722
  %729 = vrot.lane.b32.xlu0 %v647, 94
  %v730 = vpop.permute.xlu0 %729
  %731 = vrot.lane.b32.xlu0 %v648, 94
  %v732 = vpop.permute.xlu0 %731
  %733 = vrot.lane.b32.xlu0 %v649, 94
  %v734 = vpop.permute.xlu0 %733
  %vm735 = vcmask 769024
  %v736 = vsel %vm735, %v730, %v732
  %v737 = vsel %vm735, %v732, %v734
  %739 = vset.pattern.permute.xlu0 72
  %740 = vperm.xlu0 %739, %v12
  %v741 = vpop.permute.xlu0 %740
  %746 = vrot.lane.b32.xlu0 %v582, 17
  %v747 = vpop.permute.xlu0 %746
  %748 = vrot.lane.b32.xlu0 %v583, 17
  %v749 = vpop.permute.xlu0 %748
  %750 = vrot.lane.b32.xlu0 %v584, 17
  %v751 = vpop.permute.xlu0 %750
  %752 = vrot.lane.b32.xlu0 %v659, 17
  %v753 = vpop.permute.xlu0 %752
  %754 = vrot.lane.b32.xlu0 %v660, 17
  %v755 = vpop.permute.xlu0 %754
  %756 = vrot.lane.b32.xlu0 %v658, 17
  %v757 = vpop.permute.xlu0 %756
  %758 = vrot.lane.b32.xlu0 %v671, 17
  %v759 = vpop.permute.xlu0 %758
  %760 = vrot.lane.b32.xlu0 %v672, 17
  %v761 = vpop.permute.xlu0 %760
  %762 = vrot.lane.b32.xlu0 %v669, 17
  %v763 = vpop.permute.xlu0 %762
  %764 = vrot.lane.b32.xlu0 %v683, 17
  %v765 = vpop.permute.xlu0 %764
  %766 = vrot.lane.b32.xlu0 %v684, 17
  %v767 = vpop.permute.xlu0 %766
  %768 = vrot.lane.b32.xlu0 %v681, 17
  %v769 = vpop.permute.xlu0 %768
  %770 = vrot.lane.b32.xlu0 %v686, 17
  %v771 = vpop.permute.xlu0 %770
  %772 = vrot.lane.b32.xlu0 %v689, 17
  %v773 = vpop.permute.xlu0 %772
  %774 = vrot.lane.b32.xlu0 %v688, 17
  %v775 = vpop.permute.xlu0 %774
  %776 = vrot.lane.b32.xlu0 %v694, 17
  %v777 = vpop.permute.xlu0 %776
  %778 = vrot.lane.b32.xlu0 %v700, 17
  %v779 = vpop.permute.xlu0 %778
  %780 = vrot.lane.b32.xlu0 %v701, 17
  %v781 = vpop.permute.xlu0 %780
  %782 = vrot.lane.b32.xlu0 %v706, 17
  %v783 = vpop.permute.xlu0 %782
  %784 = vrot.lane.b32.xlu0 %v712, 17
  %v785 = vpop.permute.xlu0 %784
  %786 = vrot.lane.b32.xlu0 %v713, 17
  %v787 = vpop.permute.xlu0 %786
  %788 = vrot.lane.b32.xlu0 %v718, 17
  %v789 = vpop.permute.xlu0 %788
  %790 = vrot.lane.b32.xlu0 %v724, 17
  %v791 = vpop.permute.xlu0 %790
  %792 = vrot.lane.b32.xlu0 %v725, 17
  %v793 = vpop.permute.xlu0 %792
  %794 = vrot.lane.b32.xlu0 %v730, 17
  %v795 = vpop.permute.xlu0 %794
  %796 = vrot.lane.b32.xlu0 %v736, 17
  %v797 = vpop.permute.xlu0 %796
  %798 = vrot.lane.b32.xlu0 %v737, 17
  %v799 = vpop.permute.xlu0 %798
  %v800 = vsel %vm642, %v747, %v749
  %v801 = vsel %vm642, %v749, %v751
  %v802 = vsel %vm642, %v753, %v755
  %v803 = vsel %vm642, %v755, %v757
  %v804 = vsel %vm642, %v759, %v761
  %v805 = vsel %vm642, %v761, %v763
  %v806 = vsel %vm642, %v765, %v767
  %v807 = vsel %vm642, %v767, %v769
  %v808 = vsel %vm642, %v771, %v773
  %v809 = vsel %vm642, %v773, %v775
  %v810 = vsel %vm642, %v777, %v779
  %v811 = vsel %vm642, %v779, %v781
  %v812 = vsel %vm642, %v783, %v785
  %v813 = vsel %vm642, %v785, %v787
  %v814 = vsel %vm642, %v789, %v791
  %v815 = vsel %vm642, %v791, %v793
  %v816 = vsel %vm642, %v795, %v797
  %v817 = vsel %vm642, %v797, %v799
  %vm836 = vcmask 588800
  %v837 = vsel %vm836, %v12, 0
  %v839 = vand.u32 %v801, 4294901760
  %840 = vmatprep.subr.mxu0 %v839
  %v841 = vand.u32 %v800, 4294901760
  %842 = vmatpush1.msra.mxu0 %v841
  %v843 = vand.u32 %v803, 4294901760
  %844 = vmatprep.subr.mxu0 %v843
  %v845 = vand.u32 %v802, 4294901760
  %846 = vmatpush1.msra.mxu0 %v845
  %v847 = vand.u32 %v805, 4294901760
  %848 = vmatprep.subr.mxu0 %v847
  %v849 = vand.u32 %v804, 4294901760
  %850 = vmatpush1.msra.mxu0 %v849
  %v851 = vand.u32 %v807, 4294901760
  %852 = vmatprep.subr.mxu0 %v851
  %v853 = vand.u32 %v806, 4294901760
  %854 = vmatpush1.msra.mxu0 %v853
  %v855 = vand.u32 %v809, 4294901760
  %856 = vmatprep.subr.mxu0 %v855
  %v857 = vand.u32 %v808, 4294901760
  %858 = vmatpush1.msra.mxu0 %v857
  %v859 = vand.u32 %v811, 4294901760
  %860 = vmatprep.subr.mxu0 %v859
  %v861 = vand.u32 %v810, 4294901760
  %862 = vmatpush1.msra.mxu0 %v861
  %v863 = vand.u32 %v813, 4294901760
  %864 = vmatprep.subr.mxu0 %v863
  %v865 = vand.u32 %v812, 4294901760
  %866 = vmatpush1.msra.mxu0 %v865
  %v867 = vand.u32 %v815, 4294901760
  %868 = vmatprep.subr.mxu0 %v867
  %v869 = vand.u32 %v814, 4294901760
  %870 = vmatpush1.msra.mxu0 %v869
  %v871 = vand.u32 %v817, 4294901760
  %872 = vmatprep.subr.mxu0 %v871
  %v873 = vand.u32 %v816, 4294901760
  %874 = vmatpush1.msra.mxu0 %v873
  %875 = vmatprep.subr.mxu0 0.0
  %876 = vmatpush1.msra.mxu0 0.0
  %877 = vmatprep.subr.mxu0 0.0
  %878 = vmatpush1.msra.mxu0 0.0
  %879 = vmatprep.subr.mxu0 0.0
  %880 = vmatpush1.msra.mxu0 0.0
  %881 = vmatprep.subr.mxu0 0.0
  %882 = vmatpush1.msra.mxu0 0.0
  %883 = vmatprep.subr.mxu0 0.0
  %884 = vmatpush1.msra.mxu0 0.0
  %885 = vmatprep.subr.mxu0 0.0
  %886 = vmatpush1.msra.mxu0 0.0
  %887 = vmatprep.subr.mxu0 0.0
  %888 = vmatpush1.msra.mxu0 0.0
  %889 = vmatprep.subr.mxu0 0.0
  %890 = vmatpush1.msra.mxu0 0.0
  %891 = vmatprep.subr.mxu0 0.0
  %892 = vmatpush1.msra.mxu0 0.0
  %893 = vmatprep.subr.mxu0 0.0
  %894 = vmatpush1.msra.mxu0 0.0
  %895 = vmatprep.subr.mxu0 0.0
  %896 = vmatpush1.msra.mxu0 0.0
  %897 = vmatprep.subr.mxu0 0.0
  %898 = vmatpush1.msra.mxu0 0.0
  %899 = vmatprep.subr.mxu0 0.0
  %900 = vmatpush1.msra.mxu0 0.0
  %901 = vmatprep.subr.mxu0 0.0
  %902 = vmatpush1.msra.mxu0 0.0
  %903 = vmatprep.subr.mxu0 0.0
  %904 = vmatpush1.msra.mxu0 0.0
  %905 = vmatprep.subr.mxu0 0.0
  %906 = vmatpush1.msra.mxu0 0.0
  %907 = vmatprep.subr.mxu0 0.0
  %908 = vmatpush1.msra.mxu0 0.0
  %909 = vmatprep.subr.mxu0 0.0
  %910 = vmatpush1.msra.mxu0 0.0
  %911 = vmatprep.subr.mxu0 0.0
  %912 = vmatpush1.msra.mxu0 0.0
  %913 = vmatprep.subr.mxu0 0.0
  %914 = vmatpush1.msra.mxu0 0.0
  %915 = vmatprep.subr.mxu0 0.0
  %916 = vmatpush1.msra.mxu0 0.0
  %917 = vmatprep.subr.mxu0 0.0
  %918 = vmatpush1.msra.mxu0 0.0
  %919 = vmatprep.subr.mxu0 0.0
  %920 = vmatpush1.msra.mxu0 0.0
  %921 = vmatprep.mubr.f32.mxu0 0.0
  %v922 = vand.u32 %v837, 4294901760
  %v923 = vsub.f32 %v837, %v922
  %v924 = vand.u32 %v923, 4294901760
  %v925 = vsub.f32 %v923, %v924
  %v926 = vand.u32 %v925, 4294901760
  %927 = vmatmul.mubr.f32.gmra.mrb[0].mxu0 %v926
  %v928 = vpop.f32.mrb[0].mxu0
  %v929 = vadd.f32 %v741, %v928
  %v930 = vpop.f32.mrb[0].mxu0
  %v931 = vadd.f32 %v741, %v930
  %932 = vdwg.mxu0
  %v933 = vand.u32 %v801, 4294901760
  %v934 = vsub.f32 %v801, %v933
  %v935 = vand.u32 %v934, 4294901760
  %v936 = vsub.f32 %v934, %v935
  %v937 = vand.u32 %v936, 4294901760
  %938 = vmatprep.subr.mxu0 %v937
  %v939 = vand.u32 %v800, 4294901760
  %v940 = vsub.f32 %v800, %v939
  %v941 = vand.u32 %v940, 4294901760
  %v942 = vsub.f32 %v940, %v941
  %v943 = vand.u32 %v942, 4294901760
  %944 = vmatpush1.msra.mxu0 %v943
  %v945 = vand.u32 %v803, 4294901760
  %v946 = vsub.f32 %v803, %v945
  %v947 = vand.u32 %v946, 4294901760
  %v948 = vsub.f32 %v946, %v947
  %v949 = vand.u32 %v948, 4294901760
  %950 = vmatprep.subr.mxu0 %v949
  %v951 = vand.u32 %v802, 4294901760
  %v952 = vsub.f32 %v802, %v951
  %v953 = vand.u32 %v952, 4294901760
  %v954 = vsub.f32 %v952, %v953
  %v955 = vand.u32 %v954, 4294901760
  %956 = vmatpush1.msra.mxu0 %v955
  %v957 = vand.u32 %v805, 4294901760
  %v958 = vsub.f32 %v805, %v957
  %v959 = vand.u32 %v958, 4294901760
  %v960 = vsub.f32 %v958, %v959
  %v961 = vand.u32 %v960, 4294901760
  %962 = vmatprep.subr.mxu0 %v961
  %v963 = vand.u32 %v804, 4294901760
  %v964 = vsub.f32 %v804, %v963
  %v965 = vand.u32 %v964, 4294901760
  %v966 = vsub.f32 %v964, %v965
  %v967 = vand.u32 %v966, 4294901760
  %968 = vmatpush1.msra.mxu0 %v967
  %v969 = vand.u32 %v807, 4294901760
  %v970 = vsub.f32 %v807, %v969
  %v971 = vand.u32 %v970, 4294901760
  %v972 = vsub.f32 %v970, %v971
  %v973 = vand.u32 %v972, 4294901760
  %974 = vmatprep.subr.mxu0 %v973
  %v975 = vand.u32 %v806, 4294901760
  %v976 = vsub.f32 %v806, %v975
  %v977 = vand.u32 %v976, 4294901760
  %v978 = vsub.f32 %v976, %v977
  %v979 = vand.u32 %v978, 4294901760
  %980 = vmatpush1.msra.mxu0 %v979
  %v981 = vand.u32 %v809, 4294901760
  %v982 = vsub.f32 %v809, %v981
  %v983 = vand.u32 %v982, 4294901760
  %v984 = vsub.f32 %v982, %v983
  %v985 = vand.u32 %v984, 4294901760
  %986 = vmatprep.subr.mxu0 %v985
  %v987 = vand.u32 %v808, 4294901760
  %v988 = vsub.f32 %v808, %v987
  %v989 = vand.u32 %v988, 4294901760
  %v990 = vsub.f32 %v988, %v989
  %v991 = vand.u32 %v990, 4294901760
  %992 = vmatpush1.msra.mxu0 %v991
  %v993 = vand.u32 %v811, 4294901760
  %v994 = vsub.f32 %v811, %v993
  %v995 = vand.u32 %v994, 4294901760
  %v996 = vsub.f32 %v994, %v995
  %v997 = vand.u32 %v996, 4294901760
  %998 = vmatprep.subr.mxu0 %v997
  %v999 = vand.u32 %v810, 4294901760
  %v1000 = vsub.f32 %v810, %v999
  %v1001 = vand.u32 %v1000, 4294901760
  %v1002 = vsub.f32 %v1000, %v1001
  %v1003 = vand.u32 %v1002, 4294901760
  %1004 = vmatpush1.msra.mxu0 %v1003
  %v1005 = vand.u32 %v813, 4294901760
  %v1006 = vsub.f32 %v813, %v1005
  %v1007 = vand.u32 %v1006, 4294901760
  %v1008 = vsub.f32 %v1006, %v1007
  %v1009 = vand.u32 %v1008, 4294901760
  %1010 = vmatprep.subr.mxu0 %v1009
  %v1011 = vand.u32 %v812, 4294901760
  %v1012 = vsub.f32 %v812, %v1011
  %v1013 = vand.u32 %v1012, 4294901760
  %v1014 = vsub.f32 %v1012, %v1013
  %v1015 = vand.u32 %v1014, 4294901760
  %1016 = vmatpush1.msra.mxu0 %v1015
  %v1017 = vand.u32 %v815, 4294901760
  %v1018 = vsub.f32 %v815, %v1017
  %v1019 = vand.u32 %v1018, 4294901760
  %v1020 = vsub.f32 %v1018, %v1019
  %v1021 = vand.u32 %v1020, 4294901760
  %1022 = vmatprep.subr.mxu0 %v1021
  %v1023 = vand.u32 %v814, 4294901760
  %v1024 = vsub.f32 %v814, %v1023
  %v1025 = vand.u32 %v1024, 4294901760
  %v1026 = vsub.f32 %v1024, %v1025
  %v1027 = vand.u32 %v1026, 4294901760
  %1028 = vmatpush1.msra.mxu0 %v1027
  %v1029 = vand.u32 %v817, 4294901760
  %v1030 = vsub.f32 %v817, %v1029
  %v1031 = vand.u32 %v1030, 4294901760
  %v1032 = vsub.f32 %v1030, %v1031
  %v1033 = vand.u32 %v1032, 4294901760
  %1034 = vmatprep.subr.mxu0 %v1033
  %v1035 = vand.u32 %v816, 4294901760
  %v1036 = vsub.f32 %v816, %v1035
  %v1037 = vand.u32 %v1036, 4294901760
  %v1038 = vsub.f32 %v1036, %v1037
  %v1039 = vand.u32 %v1038, 4294901760
  %1040 = vmatpush1.msra.mxu0 %v1039
  %1041 = vmatprep.subr.mxu0 0.0
  %1042 = vmatpush1.msra.mxu0 0.0
  %1043 = vmatprep.subr.mxu0 0.0
  %1044 = vmatpush1.msra.mxu0 0.0
  %1045 = vmatprep.subr.mxu0 0.0
  %1046 = vmatpush1.msra.mxu0 0.0
  %1047 = vmatprep.subr.mxu0 0.0
  %1048 = vmatpush1.msra.mxu0 0.0
  %1049 = vmatprep.subr.mxu0 0.0
  %1050 = vmatpush1.msra.mxu0 0.0
  %1051 = vmatprep.subr.mxu0 0.0
  %1052 = vmatpush1.msra.mxu0 0.0
  %1053 = vmatprep.subr.mxu0 0.0
  %1054 = vmatpush1.msra.mxu0 0.0
  %1055 = vmatprep.subr.mxu0 0.0
  %1056 = vmatpush1.msra.mxu0 0.0
  %1057 = vmatprep.subr.mxu0 0.0
  %1058 = vmatpush1.msra.mxu0 0.0
  %1059 = vmatprep.subr.mxu0 0.0
  %1060 = vmatpush1.msra.mxu0 0.0
  %1061 = vmatprep.subr.mxu0 0.0
  %1062 = vmatpush1.msra.mxu0 0.0
  %1063 = vmatprep.subr.mxu0 0.0
  %1064 = vmatpush1.msra.mxu0 0.0
  %1065 = vmatprep.subr.mxu0 0.0
  %1066 = vmatpush1.msra.mxu0 0.0
  %1067 = vmatprep.subr.mxu0 0.0
  %1068 = vmatpush1.msra.mxu0 0.0
  %1069 = vmatprep.subr.mxu0 0.0
  %1070 = vmatpush1.msra.mxu0 0.0
  %1071 = vmatprep.subr.mxu0 0.0
  %1072 = vmatpush1.msra.mxu0 0.0
  %1073 = vmatprep.subr.mxu0 0.0
  %1074 = vmatpush1.msra.mxu0 0.0
  %1075 = vmatprep.subr.mxu0 0.0
  %1076 = vmatpush1.msra.mxu0 0.0
  %1077 = vmatprep.subr.mxu0 0.0
  %1078 = vmatpush1.msra.mxu0 0.0
  %1079 = vmatprep.subr.mxu0 0.0
  %1080 = vmatpush1.msra.mxu0 0.0
  %1081 = vmatprep.subr.mxu0 0.0
  %1082 = vmatpush1.msra.mxu0 0.0
  %1083 = vmatprep.subr.mxu0 0.0
  %1084 = vmatpush1.msra.mxu0 0.0
  %1085 = vmatprep.subr.mxu0 0.0
  %1086 = vmatpush1.msra.mxu0 0.0
  %1087 = vmatprep.mubr.f32.mxu0 0.0
  %v1088 = vand.u32 %v837, 4294901760
  %1089 = vmatmul.mubr.f32.gmra.mrb[0].mxu0 %v1088
  %v1090 = vpop.f32.mrb[0].mxu0
  %v1091 = vadd.f32 %v929, %v1090
  %v1092 = vpop.f32.mrb[0].mxu0
  %v1093 = vadd.f32 %v931, %v1092
  %1094 = vdwg.mxu0
  %v1095 = vand.u32 %v801, 4294901760
  %v1096 = vsub.f32 %v801, %v1095
  %1097 = vmatprep.subr.mxu0 %v1096
  %v1098 = vand.u32 %v800, 4294901760
  %v1099 = vsub.f32 %v800, %v1098
  %1100 = vmatpush1.msra.mxu0 %v1099
  %v1101 = vand.u32 %v803, 4294901760
  %v1102 = vsub.f32 %v803, %v1101
  %1103 = vmatprep.subr.mxu0 %v1102
  %v1104 = vand.u32 %v802, 4294901760
  %v1105 = vsub.f32 %v802, %v1104
  %1106 = vmatpush1.msra.mxu0 %v1105
  %v1107 = vand.u32 %v805, 4294901760
  %v1108 = vsub.f32 %v805, %v1107
  %1109 = vmatprep.subr.mxu0 %v1108
  %v1110 = vand.u32 %v804, 4294901760
  %v1111 = vsub.f32 %v804, %v1110
  %1112 = vmatpush1.msra.mxu0 %v1111
  %v1113 = vand.u32 %v807, 4294901760
  %v1114 = vsub.f32 %v807, %v1113
  %1115 = vmatprep.subr.mxu0 %v1114
  %v1116 = vand.u32 %v806, 4294901760
  %v1117 = vsub.f32 %v806, %v1116
  %1118 = vmatpush1.msra.mxu0 %v1117
  %v1119 = vand.u32 %v809, 4294901760
  %v1120 = vsub.f32 %v809, %v1119
  %1121 = vmatprep.subr.mxu0 %v1120
  %v1122 = vand.u32 %v808, 4294901760
  %v1123 = vsub.f32 %v808, %v1122
  %1124 = vmatpush1.msra.mxu0 %v1123
  %v1125 = vand.u32 %v811, 4294901760
  %v1126 = vsub.f32 %v811, %v1125
  %1127 = vmatprep.subr.mxu0 %v1126
  %v1128 = vand.u32 %v810, 4294901760
  %v1129 = vsub.f32 %v810, %v1128
  %1130 = vmatpush1.msra.mxu0 %v1129
  %v1131 = vand.u32 %v813, 4294901760
  %v1132 = vsub.f32 %v813, %v1131
  %1133 = vmatprep.subr.mxu0 %v1132
  %v1134 = vand.u32 %v812, 4294901760
  %v1135 = vsub.f32 %v812, %v1134
  %1136 = vmatpush1.msra.mxu0 %v1135
  %v1137 = vand.u32 %v815, 4294901760
  %v1138 = vsub.f32 %v815, %v1137
  %1139 = vmatprep.subr.mxu0 %v1138
  %v1140 = vand.u32 %v814, 4294901760
  %v1141 = vsub.f32 %v814, %v1140
  %1142 = vmatpush1.msra.mxu0 %v1141
  %v1143 = vand.u32 %v817, 4294901760
  %v1144 = vsub.f32 %v817, %v1143
  %1145 = vmatprep.subr.mxu0 %v1144
  %v1146 = vand.u32 %v816, 4294901760
  %v1147 = vsub.f32 %v816, %v1146
  %1148 = vmatpush1.msra.mxu0 %v1147
  %1149 = vmatprep.subr.mxu0 0.0
  %1150 = vmatpush1.msra.mxu0 0.0
  %1151 = vmatprep.subr.mxu0 0.0
  %1152 = vmatpush1.msra.mxu0 0.0
  %1153 = vmatprep.subr.mxu0 0.0
  %1154 = vmatpush1.msra.mxu0 0.0
  %1155 = vmatprep.subr.mxu0 0.0
  %1156 = vmatpush1.msra.mxu0 0.0
  %1157 = vmatprep.subr.mxu0 0.0
  %1158 = vmatpush1.msra.mxu0 0.0
  %1159 = vmatprep.subr.mxu0 0.0
  %1160 = vmatpush1.msra.mxu0 0.0
  %1161 = vmatprep.subr.mxu0 0.0
  %1162 = vmatpush1.msra.mxu0 0.0
  %1163 = vmatprep.subr.mxu0 0.0
  %1164 = vmatpush1.msra.mxu0 0.0
  %1165 = vmatprep.subr.mxu0 0.0
  %1166 = vmatpush1.msra.mxu0 0.0
  %1167 = vmatprep.subr.mxu0 0.0
  %1168 = vmatpush1.msra.mxu0 0.0
  %1169 = vmatprep.subr.mxu0 0.0
  %1170 = vmatpush1.msra.mxu0 0.0
  %1171 = vmatprep.subr.mxu0 0.0
  %1172 = vmatpush1.msra.mxu0 0.0
  %1173 = vmatprep.subr.mxu0 0.0
  %1174 = vmatpush1.msra.mxu0 0.0
  %1175 = vmatprep.subr.mxu0 0.0
  %1176 = vmatpush1.msra.mxu0 0.0
  %1177 = vmatprep.subr.mxu0 0.0
  %1178 = vmatpush1.msra.mxu0 0.0
  %1179 = vmatprep.subr.mxu0 0.0
  %1180 = vmatpush1.msra.mxu0 0.0
  %1181 = vmatprep.subr.mxu0 0.0
  %1182 = vmatpush1.msra.mxu0 0.0
  %1183 = vmatprep.subr.mxu0 0.0
  %1184 = vmatpush1.msra.mxu0 0.0
  %1185 = vmatprep.subr.mxu0 0.0
  %1186 = vmatpush1.msra.mxu0 0.0
  %1187 = vmatprep.subr.mxu0 0.0
  %1188 = vmatpush1.msra.mxu0 0.0
  %1189 = vmatprep.subr.mxu0 0.0
  %1190 = vmatpush1.msra.mxu0 0.0
  %1191 = vmatprep.subr.mxu0 0.0
  %1192 = vmatpush1.msra.mxu0 0.0
  %1193 = vmatprep.subr.mxu0 0.0
  %1194 = vmatpush1.msra.mxu0 0.0
  %1195 = vmatprep.mubr.f32.mxu0 0.0
  %v1196 = vand.u32 %v837, 4294901760
  %v1197 = vsub.f32 %v837, %v1196
  %1198 = vmatmul.mubr.f32.gmra.mrb[0].mxu0 %v1197
  %v1199 = vpop.f32.mrb[0].mxu0
  %v1200 = vadd.f32 %v1091, %v1199
  %v1201 = vpop.f32.mrb[0].mxu0
  %v1202 = vadd.f32 %v1093, %v1201
  %1203 = vdwg.mxu0
  %v1204 = vand.u32 %v801, 4294901760
  %1205 = vmatprep.subr.mxu0 %v1204
  %v1206 = vand.u32 %v800, 4294901760
  %1207 = vmatpush1.msra.mxu0 %v1206
  %v1208 = vand.u32 %v803, 4294901760
  %1209 = vmatprep.subr.mxu0 %v1208
  %v1210 = vand.u32 %v802, 4294901760
  %1211 = vmatpush1.msra.mxu0 %v1210
  %v1212 = vand.u32 %v805, 4294901760
  %1213 = vmatprep.subr.mxu0 %v1212
  %v1214 = vand.u32 %v804, 4294901760
  %1215 = vmatpush1.msra.mxu0 %v1214
  %v1216 = vand.u32 %v807, 4294901760
  %1217 = vmatprep.subr.mxu0 %v1216
  %v1218 = vand.u32 %v806, 4294901760
  %1219 = vmatpush1.msra.mxu0 %v1218
  %v1220 = vand.u32 %v809, 4294901760
  %1221 = vmatprep.subr.mxu0 %v1220
  %v1222 = vand.u32 %v808, 4294901760
  %1223 = vmatpush1.msra.mxu0 %v1222
  %v1224 = vand.u32 %v811, 4294901760
  %1225 = vmatprep.subr.mxu0 %v1224
  %v1226 = vand.u32 %v810, 4294901760
  %1227 = vmatpush1.msra.mxu0 %v1226
  %v1228 = vand.u32 %v813, 4294901760
  %1229 = vmatprep.subr.mxu0 %v1228
  %v1230 = vand.u32 %v812, 4294901760
  %1231 = vmatpush1.msra.mxu0 %v1230
  %v1232 = vand.u32 %v815, 4294901760
  %1233 = vmatprep.subr.mxu0 %v1232
  %v1234 = vand.u32 %v814, 4294901760
  %1235 = vmatpush1.msra.mxu0 %v1234
  %v1236 = vand.u32 %v817, 4294901760
  %1237 = vmatprep.subr.mxu0 %v1236
  %v1238 = vand.u32 %v816, 4294901760
  %1239 = vmatpush1.msra.mxu0 %v1238
  %1240 = vmatprep.subr.mxu0 0.0
  %1241 = vmatpush1.msra.mxu0 0.0
  %1242 = vmatprep.subr.mxu0 0.0
  %1243 = vmatpush1.msra.mxu0 0.0
  %1244 = vmatprep.subr.mxu0 0.0
  %1245 = vmatpush1.msra.mxu0 0.0
  %1246 = vmatprep.subr.mxu0 0.0
  %1247 = vmatpush1.msra.mxu0 0.0
  %1248 = vmatprep.subr.mxu0 0.0
  %1249 = vmatpush1.msra.mxu0 0.0
  %1250 = vmatprep.subr.mxu0 0.0
  %1251 = vmatpush1.msra.mxu0 0.0
  %1252 = vmatprep.subr.mxu0 0.0
  %1253 = vmatpush1.msra.mxu0 0.0
  %1254 = vmatprep.subr.mxu0 0.0
  %1255 = vmatpush1.msra.mxu0 0.0
  %1256 = vmatprep.subr.mxu0 0.0
  %1257 = vmatpush1.msra.mxu0 0.0
  %1258 = vmatprep.subr.mxu0 0.0
  %1259 = vmatpush1.msra.mxu0 0.0
  %1260 = vmatprep.subr.mxu0 0.0
  %1261 = vmatpush1.msra.mxu0 0.0
  %1262 = vmatprep.subr.mxu0 0.0
  %1263 = vmatpush1.msra.mxu0 0.0
  %1264 = vmatprep.subr.mxu0 0.0
  %1265 = vmatpush1.msra.mxu0 0.0
  %1266 = vmatprep.subr.mxu0 0.0
  %1267 = vmatpush1.msra.mxu0 0.0
  %1268 = vmatprep.subr.mxu0 0.0
  %1269 = vmatpush1.msra.mxu0 0.0
  %1270 = vmatprep.subr.mxu0 0.0
  %1271 = vmatpush1.msra.mxu0 0.0
  %1272 = vmatprep.subr.mxu0 0.0
  %1273 = vmatpush1.msra.mxu0 0.0
  %1274 = vmatprep.subr.mxu0 0.0
  %1275 = vmatpush1.msra.mxu0 0.0
  %1276 = vmatprep.subr.mxu0 0.0
  %1277 = vmatpush1.msra.mxu0 0.0
  %1278 = vmatprep.subr.mxu0 0.0
  %1279 = vmatpush1.msra.mxu0 0.0
  %1280 = vmatprep.subr.mxu0 0.0
  %1281 = vmatpush1.msra.mxu0 0.0
  %1282 = vmatprep.subr.mxu0 0.0
  %1283 = vmatpush1.msra.mxu0 0.0
  %1284 = vmatprep.subr.mxu0 0.0
  %1285 = vmatpush1.msra.mxu0 0.0
  %1286 = vmatprep.mubr.f32.mxu0 0.0
  %v1287 = vand.u32 %v837, 4294901760
  %v1288 = vsub.f32 %v837, %v1287
  %v1289 = vand.u32 %v1288, 4294901760
  %1290 = vmatmul.mubr.f32.gmra.mrb[0].mxu0 %v1289
  %v1291 = vpop.f32.mrb[0].mxu0
  %v1292 = vadd.f32 %v1200, %v1291
  %v1293 = vpop.f32.mrb[0].mxu0
  %v1294 = vadd.f32 %v1202, %v1293
  %1295 = vdwg.mxu0
  %v1296 = vand.u32 %v801, 4294901760
  %v1297 = vsub.f32 %v801, %v1296
  %v1298 = vand.u32 %v1297, 4294901760
  %1299 = vmatprep.subr.mxu0 %v1298
  %v1300 = vand.u32 %v800, 4294901760
  %v1301 = vsub.f32 %v800, %v1300
  %v1302 = vand.u32 %v1301, 4294901760
  %1303 = vmatpush1.msra.mxu0 %v1302
  %v1304 = vand.u32 %v803, 4294901760
  %v1305 = vsub.f32 %v803, %v1304
  %v1306 = vand.u32 %v1305, 4294901760
  %1307 = vmatprep.subr.mxu0 %v1306
  %v1308 = vand.u32 %v802, 4294901760
  %v1309 = vsub.f32 %v802, %v1308
  %v1310 = vand.u32 %v1309, 4294901760
  %1311 = vmatpush1.msra.mxu0 %v1310
  %v1312 = vand.u32 %v805, 4294901760
  %v1313 = vsub.f32 %v805, %v1312
  %v1314 = vand.u32 %v1313, 4294901760
  %1315 = vmatprep.subr.mxu0 %v1314
  %v1316 = vand.u32 %v804, 4294901760
  %v1317 = vsub.f32 %v804, %v1316
  %v1318 = vand.u32 %v1317, 4294901760
  %1319 = vmatpush1.msra.mxu0 %v1318
  %v1320 = vand.u32 %v807, 4294901760
  %v1321 = vsub.f32 %v807, %v1320
  %v1322 = vand.u32 %v1321, 4294901760
  %1323 = vmatprep.subr.mxu0 %v1322
  %v1324 = vand.u32 %v806, 4294901760
  %v1325 = vsub.f32 %v806, %v1324
  %v1326 = vand.u32 %v1325, 4294901760
  %1327 = vmatpush1.msra.mxu0 %v1326
  %v1328 = vand.u32 %v809, 4294901760
  %v1329 = vsub.f32 %v809, %v1328
  %v1330 = vand.u32 %v1329, 4294901760
  %1331 = vmatprep.subr.mxu0 %v1330
  %v1332 = vand.u32 %v808, 4294901760
  %v1333 = vsub.f32 %v808, %v1332
  %v1334 = vand.u32 %v1333, 4294901760
  %1335 = vmatpush1.msra.mxu0 %v1334
  %v1336 = vand.u32 %v811, 4294901760
  %v1337 = vsub.f32 %v811, %v1336
  %v1338 = vand.u32 %v1337, 4294901760
  %1339 = vmatprep.subr.mxu0 %v1338
  %v1340 = vand.u32 %v810, 4294901760
  %v1341 = vsub.f32 %v810, %v1340
  %v1342 = vand.u32 %v1341, 4294901760
  %1343 = vmatpush1.msra.mxu0 %v1342
  %v1344 = vand.u32 %v813, 4294901760
  %v1345 = vsub.f32 %v813, %v1344
  %v1346 = vand.u32 %v1345, 4294901760
  %1347 = vmatprep.subr.mxu0 %v1346
  %v1348 = vand.u32 %v812, 4294901760
  %v1349 = vsub.f32 %v812, %v1348
  %v1350 = vand.u32 %v1349, 4294901760
  %1351 = vmatpush1.msra.mxu0 %v1350
  %v1352 = vand.u32 %v815, 4294901760
  %v1353 = vsub.f32 %v815, %v1352
  %v1354 = vand.u32 %v1353, 4294901760
  %1355 = vmatprep.subr.mxu0 %v1354
  %v1356 = vand.u32 %v814, 4294901760
  %v1357 = vsub.f32 %v814, %v1356
  %v1358 = vand.u32 %v1357, 4294901760
  %1359 = vmatpush1.msra.mxu0 %v1358
  %v1360 = vand.u32 %v817, 4294901760
  %v1361 = vsub.f32 %v817, %v1360
  %v1362 = vand.u32 %v1361, 4294901760
  %1363 = vmatprep.subr.mxu0 %v1362
  %v1364 = vand.u32 %v816, 4294901760
  %v1365 = vsub.f32 %v816, %v1364
  %v1366 = vand.u32 %v1365, 4294901760
  %1367 = vmatpush1.msra.mxu0 %v1366
  %1368 = vmatprep.subr.mxu0 0.0
  %1369 = vmatpush1.msra.mxu0 0.0
  %1370 = vmatprep.subr.mxu0 0.0
  %1371 = vmatpush1.msra.mxu0 0.0
  %1372 = vmatprep.subr.mxu0 0.0
  %1373 = vmatpush1.msra.mxu0 0.0
  %1374 = vmatprep.subr.mxu0 0.0
  %1375 = vmatpush1.msra.mxu0 0.0
  %1376 = vmatprep.subr.mxu0 0.0
  %1377 = vmatpush1.msra.mxu0 0.0
  %1378 = vmatprep.subr.mxu0 0.0
  %1379 = vmatpush1.msra.mxu0 0.0
  %1380 = vmatprep.subr.mxu0 0.0
  %1381 = vmatpush1.msra.mxu0 0.0
  %1382 = vmatprep.subr.mxu0 0.0
  %1383 = vmatpush1.msra.mxu0 0.0
  %1384 = vmatprep.subr.mxu0 0.0
  %1385 = vmatpush1.msra.mxu0 0.0
  %1386 = vmatprep.subr.mxu0 0.0
  %1387 = vmatpush1.msra.mxu0 0.0
  %1388 = vmatprep.subr.mxu0 0.0
  %1389 = vmatpush1.msra.mxu0 0.0
  %1390 = vmatprep.subr.mxu0 0.0
  %1391 = vmatpush1.msra.mxu0 0.0
  %1392 = vmatprep.subr.mxu0 0.0
  %1393 = vmatpush1.msra.mxu0 0.0
  %1394 = vmatprep.subr.mxu0 0.0
  %1395 = vmatpush1.msra.mxu0 0.0
  %1396 = vmatprep.subr.mxu0 0.0
  %1397 = vmatpush1.msra.mxu0 0.0
  %1398 = vmatprep.subr.mxu0 0.0
  %1399 = vmatpush1.msra.mxu0 0.0
  %1400 = vmatprep.subr.mxu0 0.0
  %1401 = vmatpush1.msra.mxu0 0.0
  %1402 = vmatprep.subr.mxu0 0.0
  %1403 = vmatpush1.msra.mxu0 0.0
  %1404 = vmatprep.subr.mxu0 0.0
  %1405 = vmatpush1.msra.mxu0 0.0
  %1406 = vmatprep.subr.mxu0 0.0
  %1407 = vmatpush1.msra.mxu0 0.0
  %1408 = vmatprep.subr.mxu0 0.0
  %1409 = vmatpush1.msra.mxu0 0.0
  %1410 = vmatprep.subr.mxu0 0.0
  %1411 = vmatpush1.msra.mxu0 0.0
  %1412 = vmatprep.subr.mxu0 0.0
  %1413 = vmatpush1.msra.mxu0 0.0
  %1414 = vmatprep.mubr.f32.mxu0 0.0
  %v1415 = vand.u32 %v837, 4294901760
  %1416 = vmatmul.mubr.f32.gmra.mrb[0].mxu0 %v1415
  %v1417 = vpop.f32.mrb[0].mxu0
  %v1418 = vadd.f32 %v1292, %v1417
  %v1419 = vpop.f32.mrb[0].mxu0
  %v1420 = vadd.f32 %v1294, %v1419
  %1421 = vdwg.mxu0
  %v1422 = vand.u32 %v801, 4294901760
  %1423 = vmatprep.subr.mxu0 %v1422
  %v1424 = vand.u32 %v800, 4294901760
  %1425 = vmatpush1.msra.mxu0 %v1424
  %v1426 = vand.u32 %v803, 4294901760
  %1427 = vmatprep.subr.mxu0 %v1426
  %v1428 = vand.u32 %v802, 4294901760
  %1429 = vmatpush1.msra.mxu0 %v1428
  %v1430 = vand.u32 %v805, 4294901760
  %1431 = vmatprep.subr.mxu0 %v1430
  %v1432 = vand.u32 %v804, 4294901760
  %1433 = vmatpush1.msra.mxu0 %v1432
  %v1434 = vand.u32 %v807, 4294901760
  %1435 = vmatprep.subr.mxu0 %v1434
  %v1436 = vand.u32 %v806, 4294901760
  %1437 = vmatpush1.msra.mxu0 %v1436
  %v1438 = vand.u32 %v809, 4294901760
  %1439 = vmatprep.subr.mxu0 %v1438
  %v1440 = vand.u32 %v808, 4294901760
  %1441 = vmatpush1.msra.mxu0 %v1440
  %v1442 = vand.u32 %v811, 4294901760
  %1443 = vmatprep.subr.mxu0 %v1442
  %v1444 = vand.u32 %v810, 4294901760
  %1445 = vmatpush1.msra.mxu0 %v1444
  %v1446 = vand.u32 %v813, 4294901760
  %1447 = vmatprep.subr.mxu0 %v1446
  %v1448 = vand.u32 %v812, 4294901760
  %1449 = vmatpush1.msra.mxu0 %v1448
  %v1450 = vand.u32 %v815, 4294901760
  %1451 = vmatprep.subr.mxu0 %v1450
  %v1452 = vand.u32 %v814, 4294901760
  %1453 = vmatpush1.msra.mxu0 %v1452
  %v1454 = vand.u32 %v817, 4294901760
  %1455 = vmatprep.subr.mxu0 %v1454
  %v1456 = vand.u32 %v816, 4294901760
  %1457 = vmatpush1.msra.mxu0 %v1456
  %1458 = vmatprep.subr.mxu0 0.0
  %1459 = vmatpush1.msra.mxu0 0.0
  %1460 = vmatprep.subr.mxu0 0.0
  %1461 = vmatpush1.msra.mxu0 0.0
  %1462 = vmatprep.subr.mxu0 0.0
  %1463 = vmatpush1.msra.mxu0 0.0
  %1464 = vmatprep.subr.mxu0 0.0
  %1465 = vmatpush1.msra.mxu0 0.0
  %1466 = vmatprep.subr.mxu0 0.0
  %1467 = vmatpush1.msra.mxu0 0.0
  %1468 = vmatprep.subr.mxu0 0.0
  %1469 = vmatpush1.msra.mxu0 0.0
  %1470 = vmatprep.subr.mxu0 0.0
  %1471 = vmatpush1.msra.mxu0 0.0
  %1472 = vmatprep.subr.mxu0 0.0
  %1473 = vmatpush1.msra.mxu0 0.0
  %1474 = vmatprep.subr.mxu0 0.0
  %1475 = vmatpush1.msra.mxu0 0.0
  %1476 = vmatprep.subr.mxu0 0.0
  %1477 = vmatpush1.msra.mxu0 0.0
  %1478 = vmatprep.subr.mxu0 0.0
  %1479 = vmatpush1.msra.mxu0 0.0
  %1480 = vmatprep.subr.mxu0 0.0
  %1481 = vmatpush1.msra.mxu0 0.0
  %1482 = vmatprep.subr.mxu0 0.0
  %1483 = vmatpush1.msra.mxu0 0.0
  %1484 = vmatprep.subr.mxu0 0.0
  %1485 = vmatpush1.msra.mxu0 0.0
  %1486 = vmatprep.subr.mxu0 0.0
  %1487 = vmatpush1.msra.mxu0 0.0
  %1488 = vmatprep.subr.mxu0 0.0
  %1489 = vmatpush1.msra.mxu0 0.0
  %1490 = vmatprep.subr.mxu0 0.0
  %1491 = vmatpush1.msra.mxu0 0.0
  %1492 = vmatprep.subr.mxu0 0.0
  %1493 = vmatpush1.msra.mxu0 0.0
  %1494 = vmatprep.subr.mxu0 0.0
  %1495 = vmatpush1.msra.mxu0 0.0
  %1496 = vmatprep.subr.mxu0 0.0
  %1497 = vmatpush1.msra.mxu0 0.0
  %1498 = vmatprep.subr.mxu0 0.0
  %1499 = vmatpush1.msra.mxu0 0.0
  %1500 = vmatprep.subr.mxu0 0.0
  %1501 = vmatpush1.msra.mxu0 0.0
  %1502 = vmatprep.subr.mxu0 0.0
  %1503 = vmatpush1.msra.mxu0 0.0
  %1504 = vmatprep.mubr.f32.mxu0 0.0
  %v1505 = vand.u32 %v837, 4294901760
  %1506 = vmatmul.mubr.f32.gmra.mrb[0].mxu0 %v1505
  %v1507 = vpop.f32.mrb[0].mxu0
  %v1508 = vadd.f32 %v1418, %v1507
  %v1509 = vpop.f32.mrb[0].mxu0
  %v1510 = vadd.f32 %v1420, %v1509
  %1511 = vdwg.mxu0
  %v1512 = vmul.f32 %v1508, 0.5
  %v1513 = vmul.f32 %v1510, 0.5
  %v1514 = vmul.f32 %v1508, 0.70710677
  %v1515 = vmul.f32 %v1510, 0.70710677
  %v1516 = vand.u32 2147483647, %v1514
  %v1517 = vand.u32 2147483647, %v1515
  %v1518 = vmul.f32 %v1516, 0.3275911
  %v1519 = vmul.f32 %v1517, 0.3275911
  %v1520 = vadd.f32 %v1518, 1.0
  %v1521 = vadd.f32 %v1519, 1.0
  %v1522 = vrcp.pop %v1520
  %v1523 = vmul.f32 1.0, %v1522
  %v1524 = vrcp.pop %v1521
  %v1525 = vmul.f32 1.0, %v1524
  %v1526 = vmul.f32 %v1523, 1.0614054
  %v1527 = vmul.f32 %v1525, 1.0614054
  %v1528 = vadd.f32 %v1526, -1.4531521
  %v1529 = vadd.f32 %v1527, -1.4531521
  %v1530 = vmul.f32 %v1523, %v1528
  %v1531 = vmul.f32 %v1525, %v1529
  %v1532 = vadd.f32 %v1530, 1.4214138
  %v1533 = vadd.f32 %v1531, 1.4214138
  %v1534 = vmul.f32 %v1523, %v1532
  %v1535 = vmul.f32 %v1525, %v1533
  %v1536 = vadd.f32 %v1534, -0.28449672
  %v1537 = vadd.f32 %v1535, -0.28449672
  %v1538 = vmul.f32 %v1523, %v1536
  %v1539 = vmul.f32 %v1525, %v1537
  %v1540 = vadd.f32 %v1538, 0.2548296
  %v1541 = vadd.f32 %v1539, 0.2548296
  %v1542 = vmul.f32 %v1523, %v1540
  %v1543 = vmul.f32 %v1525, %v1541
  %v1544 = vsub.f32 0.0, %v1516
  %v1545 = vsub.f32 0.0, %v1517
  %v1546 = vmul.f32 %v1544, %v1516
  %v1547 = vmul.f32 %v1545, %v1517
  %v1548 = vmul.f32 %v1546, 1.442695
  %v1549 = vpow.pop %v1548
  %v1550 = vmul.f32 %v1547, 1.442695
  %v1551 = vpow.pop %v1550
  %v1552 = vmul.f32 %v1542, %v1549
  %v1553 = vmul.f32 %v1543, %v1551
  %v1554 = vsub.f32 1.0, %v1552
  %v1555 = vsub.f32 1.0, %v1553
  %vm1556 = vcmp.lt.f32.partialorder %v1514, 0.0
  %vm1557 = vcmp.lt.f32.partialorder %v1515, 0.0
  %v1558 = vsub.f32 0.0, %v1554
  %v1559 = vsub.f32 0.0, %v1555
  %v1560 = vsel %vm1556, %v1558, %v1554
  %v1561 = vsel %vm1557, %v1559, %v1555
  %v1562 = vadd.f32 %v1560, 1.0
  %v1563 = vadd.f32 %v1561, 1.0
  %v1564 = vmul.f32 %v1512, %v1562
  %v1565 = vmul.f32 %v1513, %v1563
  %1567 = vset.pattern.permute.xlu0 8
  %1568 = vperm.xlu0 %1567, %v13
  %v1569 = vpop.permute.xlu0 %1568
  %vm1571 = vcmask 23552
  %v1572 = vsel %vm1571, %v13, 0
  %vm1574 = vcmask 1042432
  %v1576 = vsel %vm1574, %v1564, 0
  %v1579 = vsel %vm1574, %v1565, 0
  %v1581 = vand.u32 %v1579, 4294901760
  %1582 = vmatprep.subr.mxu0 %v1581
  %v1583 = vand.u32 %v1576, 4294901760
  %1584 = vmatpush1.msra.mxu0 %v1583
  %1585 = vmatprep.subr.mxu0 0.0
  %1586 = vmatpush1.msra.mxu0 0.0
  %1587 = vmatprep.subr.mxu0 0.0
  %1588 = vmatpush1.msra.mxu0 0.0
  %1589 = vmatprep.subr.mxu0 0.0
  %1590 = vmatpush1.msra.mxu0 0.0
  %1591 = vmatprep.subr.mxu0 0.0
  %1592 = vmatpush1.msra.mxu0 0.0
  %1593 = vmatprep.subr.mxu0 0.0
  %1594 = vmatpush1.msra.mxu0 0.0
  %1595 = vmatprep.subr.mxu0 0.0
  %1596 = vmatpush1.msra.mxu0 0.0
  %1597 = vmatprep.subr.mxu0 0.0
  %1598 = vmatpush1.msra.mxu0 0.0
  %1599 = vmatprep.subr.mxu0 0.0
  %1600 = vmatpush1.msra.mxu0 0.0
  %1601 = vmatprep.subr.mxu0 0.0
  %1602 = vmatpush1.msra.mxu0 0.0
  %1603 = vmatprep.subr.mxu0 0.0
  %1604 = vmatpush1.msra.mxu0 0.0
  %1605 = vmatprep.subr.mxu0 0.0
  %1606 = vmatpush1.msra.mxu0 0.0
  %1607 = vmatprep.subr.mxu0 0.0
  %1608 = vmatpush1.msra.mxu0 0.0
  %1609 = vmatprep.subr.mxu0 0.0
  %1610 = vmatpush1.msra.mxu0 0.0
  %1611 = vmatprep.subr.mxu0 0.0
  %1612 = vmatpush1.msra.mxu0 0.0
  %1613 = vmatprep.subr.mxu0 0.0
  %1614 = vmatpush1.msra.mxu0 0.0
  %1615 = vmatprep.subr.mxu0 0.0
  %1616 = vmatpush1.msra.mxu0 0.0
  %1617 = vmatprep.subr.mxu0 0.0
  %1618 = vmatpush1.msra.mxu0 0.0
  %1619 = vmatprep.subr.mxu0 0.0
  %1620 = vmatpush1.msra.mxu0 0.0
  %1621 = vmatprep.subr.mxu0 0.0
  %1622 = vmatpush1.msra.mxu0 0.0
  %1623 = vmatprep.subr.mxu0 0.0
  %1624 = vmatpush1.msra.mxu0 0.0
  %1625 = vmatprep.subr.mxu0 0.0
  %1626 = vmatpush1.msra.mxu0 0.0
  %1627 = vmatprep.subr.mxu0 0.0
  %1628 = vmatpush1.msra.mxu0 0.0
  %1629 = vmatprep.subr.mxu0 0.0
  %1630 = vmatpush1.msra.mxu0 0.0
  %1631 = vmatprep.subr.mxu0 0.0
  %1632 = vmatpush1.msra.mxu0 0.0
  %1633 = vmatprep.subr.mxu0 0.0
  %1634 = vmatpush1.msra.mxu0 0.0
  %1635 = vmatprep.subr.mxu0 0.0
  %1636 = vmatpush1.msra.mxu0 0.0
  %1637 = vmatprep.subr.mxu0 0.0
  %1638 = vmatpush1.msra.mxu0 0.0
  %1639 = vmatprep.subr.mxu0 0.0
  %1640 = vmatpush1.msra.mxu0 0.0
  %1641 = vmatprep.subr.mxu0 0.0
  %1642 = vmatpush1.msra.mxu0 0.0
  %1643 = vmatprep.subr.mxu0 0.0
  %1644 = vmatpush1.msra.mxu0 0.0
  %1645 = vmatprep.subr.mxu0 0.0
  %1646 = vmatpush1.msra.mxu0 0.0
  %1647 = vmatprep.mubr.f32.mxu0 0.0
  %v1648 = vand.u32 %v1572, 4294901760
  %v1649 = vsub.f32 %v1572, %v1648
  %v1650 = vand.u32 %v1649, 4294901760
  %v1651 = vsub.f32 %v1649, %v1650
  %v1652 = vand.u32 %v1651, 4294901760
  %1653 = vmatmul.mubr.f32.gmra.mrb[0].mxu0 %v1652
  %v1654 = vpop.f32.mrb[0].mxu0
  %v1655 = vadd.f32 %v1569, %v1654
  %v1656 = vpop.f32.mrb[0].mxu0
  %v1657 = vadd.f32 %v1569, %v1656
  %1658 = vdwg.mxu0
  %v1659 = vand.u32 %v1579, 4294901760
  %v1660 = vsub.f32 %v1579, %v1659
  %v1661 = vand.u32 %v1660, 4294901760
  %v1662 = vsub.f32 %v1660, %v1661
  %v1663 = vand.u32 %v1662, 4294901760
  %1664 = vmatprep.subr.mxu0 %v1663
  %v1665 = vand.u32 %v1576, 4294901760
  %v1666 = vsub.f32 %v1576, %v1665
  %v1667 = vand.u32 %v1666, 4294901760
  %v1668 = vsub.f32 %v1666, %v1667
  %v1669 = vand.u32 %v1668, 4294901760
  %1670 = vmatpush1.msra.mxu0 %v1669
  %1671 = vmatprep.subr.mxu0 0.0
  %1672 = vmatpush1.msra.mxu0 0.0
  %1673 = vmatprep.subr.mxu0 0.0
  %1674 = vmatpush1.msra.mxu0 0.0
  %1675 = vmatprep.subr.mxu0 0.0
  %1676 = vmatpush1.msra.mxu0 0.0
  %1677 = vmatprep.subr.mxu0 0.0
  %1678 = vmatpush1.msra.mxu0 0.0
  %1679 = vmatprep.subr.mxu0 0.0
  %1680 = vmatpush1.msra.mxu0 0.0
  %1681 = vmatprep.subr.mxu0 0.0
  %1682 = vmatpush1.msra.mxu0 0.0
  %1683 = vmatprep.subr.mxu0 0.0
  %1684 = vmatpush1.msra.mxu0 0.0
  %1685 = vmatprep.subr.mxu0 0.0
  %1686 = vmatpush1.msra.mxu0 0.0
  %1687 = vmatprep.subr.mxu0 0.0
  %1688 = vmatpush1.msra.mxu0 0.0
  %1689 = vmatprep.subr.mxu0 0.0
  %1690 = vmatpush1.msra.mxu0 0.0
  %1691 = vmatprep.subr.mxu0 0.0
  %1692 = vmatpush1.msra.mxu0 0.0
  %1693 = vmatprep.subr.mxu0 0.0
  %1694 = vmatpush1.msra.mxu0 0.0
  %1695 = vmatprep.subr.mxu0 0.0
  %1696 = vmatpush1.msra.mxu0 0.0
  %1697 = vmatprep.subr.mxu0 0.0
  %1698 = vmatpush1.msra.mxu0 0.0
  %1699 = vmatprep.subr.mxu0 0.0
  %1700 = vmatpush1.msra.mxu0 0.0
  %1701 = vmatprep.subr.mxu0 0.0
  %1702 = vmatpush1.msra.mxu0 0.0
  %1703 = vmatprep.subr.mxu0 0.0
  %1704 = vmatpush1.msra.mxu0 0.0
  %1705 = vmatprep.subr.mxu0 0.0
  %1706 = vmatpush1.msra.mxu0 0.0
  %1707 = vmatprep.subr.mxu0 0.0
  %1708 = vmatpush1.msra.mxu0 0.0
  %1709 = vmatprep.subr.mxu0 0.0
  %1710 = vmatpush1.msra.mxu0 0.0
  %1711 = vmatprep.subr.mxu0 0.0
  %1712 = vmatpush1.msra.mxu0 0.0
  %1713 = vmatprep.subr.mxu0 0.0
  %1714 = vmatpush1.msra.mxu0 0.0
  %1715 = vmatprep.subr.mxu0 0.0
  %1716 = vmatpush1.msra.mxu0 0.0
  %1717 = vmatprep.subr.mxu0 0.0
  %1718 = vmatpush1.msra.mxu0 0.0
  %1719 = vmatprep.subr.mxu0 0.0
  %1720 = vmatpush1.msra.mxu0 0.0
  %1721 = vmatprep.subr.mxu0 0.0
  %1722 = vmatpush1.msra.mxu0 0.0
  %1723 = vmatprep.subr.mxu0 0.0
  %1724 = vmatpush1.msra.mxu0 0.0
  %1725 = vmatprep.subr.mxu0 0.0
  %1726 = vmatpush1.msra.mxu0 0.0
  %1727 = vmatprep.subr.mxu0 0.0
  %1728 = vmatpush1.msra.mxu0 0.0
  %1729 = vmatprep.subr.mxu0 0.0
  %1730 = vmatpush1.msra.mxu0 0.0
  %1731 = vmatprep.subr.mxu0 0.0
  %1732 = vmatpush1.msra.mxu0 0.0
  %1733 = vmatprep.mubr.f32.mxu0 0.0
  %v1734 = vand.u32 %v1572, 4294901760
  %1735 = vmatmul.mubr.f32.gmra.mrb[0].mxu0 %v1734
  %v1736 = vpop.f32.mrb[0].mxu0
  %v1737 = vadd.f32 %v1655, %v1736
  %v1738 = vpop.f32.mrb[0].mxu0
  %v1739 = vadd.f32 %v1657, %v1738
  %1740 = vdwg.mxu0
  %v1741 = vand.u32 %v1579, 4294901760
  %v1742 = vsub.f32 %v1579, %v1741
  %1743 = vmatprep.subr.mxu0 %v1742
  %v1744 = vand.u32 %v1576, 4294901760
  %v1745 = vsub.f32 %v1576, %v1744
  %1746 = vmatpush1.msra.mxu0 %v1745
  %1747 = vmatprep.subr.mxu0 0.0
  %1748 = vmatpush1.msra.mxu0 0.0
  %1749 = vmatprep.subr.mxu0 0.0
  %1750 = vmatpush1.msra.mxu0 0.0
  %1751 = vmatprep.subr.mxu0 0.0
  %1752 = vmatpush1.msra.mxu0 0.0
  %1753 = vmatprep.subr.mxu0 0.0
  %1754 = vmatpush1.msra.mxu0 0.0
  %1755 = vmatprep.subr.mxu0 0.0
  %1756 = vmatpush1.msra.mxu0 0.0
  %1757 = vmatprep.subr.mxu0 0.0
  %1758 = vmatpush1.msra.mxu0 0.0
  %1759 = vmatprep.subr.mxu0 0.0
  %1760 = vmatpush1.msra.mxu0 0.0
  %1761 = vmatprep.subr.mxu0 0.0
  %1762 = vmatpush1.msra.mxu0 0.0
  %1763 = vmatprep.subr.mxu0 0.0
  %1764 = vmatpush1.msra.mxu0 0.0
  %1765 = vmatprep.subr.mxu0 0.0
  %1766 = vmatpush1.msra.mxu0 0.0
  %1767 = vmatprep.subr.mxu0 0.0
  %1768 = vmatpush1.msra.mxu0 0.0
  %1769 = vmatprep.subr.mxu0 0.0
  %1770 = vmatpush1.msra.mxu0 0.0
  %1771 = vmatprep.subr.mxu0 0.0
  %1772 = vmatpush1.msra.mxu0 0.0
  %1773 = vmatprep.subr.mxu0 0.0
  %1774 = vmatpush1.msra.mxu0 0.0
  %1775 = vmatprep.subr.mxu0 0.0
  %1776 = vmatpush1.msra.mxu0 0.0
  %1777 = vmatprep.subr.mxu0 0.0
  %1778 = vmatpush1.msra.mxu0 0.0
  %1779 = vmatprep.subr.mxu0 0.0
  %1780 = vmatpush1.msra.mxu0 0.0
  %1781 = vmatprep.subr.mxu0 0.0
  %1782 = vmatpush1.msra.mxu0 0.0
  %1783 = vmatprep.subr.mxu0 0.0
  %1784 = vmatpush1.msra.mxu0 0.0
  %1785 = vmatprep.subr.mxu0 0.0
  %1786 = vmatpush1.msra.mxu0 0.0
  %1787 = vmatprep.subr.mxu0 0.0
  %1788 = vmatpush1.msra.mxu0 0.0
  %1789 = vmatprep.subr.mxu0 0.0
  %1790 = vmatpush1.msra.mxu0 0.0
  %1791 = vmatprep.subr.mxu0 0.0
  %1792 = vmatpush1.msra.mxu0 0.0
  %1793 = vmatprep.subr.mxu0 0.0
  %1794 = vmatpush1.msra.mxu0 0.0
  %1795 = vmatprep.subr.mxu0 0.0
  %1796 = vmatpush1.msra.mxu0 0.0
  %1797 = vmatprep.subr.mxu0 0.0
  %1798 = vmatpush1.msra.mxu0 0.0
  %1799 = vmatprep.subr.mxu0 0.0
  %1800 = vmatpush1.msra.mxu0 0.0
  %1801 = vmatprep.subr.mxu0 0.0
  %1802 = vmatpush1.msra.mxu0 0.0
  %1803 = vmatprep.subr.mxu0 0.0
  %1804 = vmatpush1.msra.mxu0 0.0
  %1805 = vmatprep.subr.mxu0 0.0
  %1806 = vmatpush1.msra.mxu0 0.0
  %1807 = vmatprep.subr.mxu0 0.0
  %1808 = vmatpush1.msra.mxu0 0.0
  %1809 = vmatprep.mubr.f32.mxu0 0.0
  %v1810 = vand.u32 %v1572, 4294901760
  %v1811 = vsub.f32 %v1572, %v1810
  %1812 = vmatmul.mubr.f32.gmra.mrb[0].mxu0 %v1811
  %v1813 = vpop.f32.mrb[0].mxu0
  %v1814 = vadd.f32 %v1737, %v1813
  %v1815 = vpop.f32.mrb[0].mxu0
  %v1816 = vadd.f32 %v1739, %v1815
  %1817 = vdwg.mxu0
  %v1818 = vand.u32 %v1579, 4294901760
  %1819 = vmatprep.subr.mxu0 %v1818
  %v1820 = vand.u32 %v1576, 4294901760
  %1821 = vmatpush1.msra.mxu0 %v1820
  %1822 = vmatprep.subr.mxu0 0.0
  %1823 = vmatpush1.msra.mxu0 0.0
  %1824 = vmatprep.subr.mxu0 0.0
  %1825 = vmatpush1.msra.mxu0 0.0
  %1826 = vmatprep.subr.mxu0 0.0
  %1827 = vmatpush1.msra.mxu0 0.0
  %1828 = vmatprep.subr.mxu0 0.0
  %1829 = vmatpush1.msra.mxu0 0.0
  %1830 = vmatprep.subr.mxu0 0.0
  %1831 = vmatpush1.msra.mxu0 0.0
  %1832 = vmatprep.subr.mxu0 0.0
  %1833 = vmatpush1.msra.mxu0 0.0
  %1834 = vmatprep.subr.mxu0 0.0
  %1835 = vmatpush1.msra.mxu0 0.0
  %1836 = vmatprep.subr.mxu0 0.0
  %1837 = vmatpush1.msra.mxu0 0.0
  %1838 = vmatprep.subr.mxu0 0.0
  %1839 = vmatpush1.msra.mxu0 0.0
  %1840 = vmatprep.subr.mxu0 0.0
  %1841 = vmatpush1.msra.mxu0 0.0
  %1842 = vmatprep.subr.mxu0 0.0
  %1843 = vmatpush1.msra.mxu0 0.0
  %1844 = vmatprep.subr.mxu0 0.0
  %1845 = vmatpush1.msra.mxu0 0.0
  %1846 = vmatprep.subr.mxu0 0.0
  %1847 = vmatpush1.msra.mxu0 0.0
  %1848 = vmatprep.subr.mxu0 0.0
  %1849 = vmatpush1.msra.mxu0 0.0
  %1850 = vmatprep.subr.mxu0 0.0
  %1851 = vmatpush1.msra.mxu0 0.0
  %1852 = vmatprep.subr.mxu0 0.0
  %1853 = vmatpush1.msra.mxu0 0.0
  %1854 = vmatprep.subr.mxu0 0.0
  %1855 = vmatpush1.msra.mxu0 0.0
  %1856 = vmatprep.subr.mxu0 0.0
  %1857 = vmatpush1.msra.mxu0 0.0
  %1858 = vmatprep.subr.mxu0 0.0
  %1859 = vmatpush1.msra.mxu0 0.0
  %1860 = vmatprep.subr.mxu0 0.0
  %1861 = vmatpush1.msra.mxu0 0.0
  %1862 = vmatprep.subr.mxu0 0.0
  %1863 = vmatpush1.msra.mxu0 0.0
  %1864 = vmatprep.subr.mxu0 0.0
  %1865 = vmatpush1.msra.mxu0 0.0
  %1866 = vmatprep.subr.mxu0 0.0
  %1867 = vmatpush1.msra.mxu0 0.0
  %1868 = vmatprep.subr.mxu0 0.0
  %1869 = vmatpush1.msra.mxu0 0.0
  %1870 = vmatprep.subr.mxu0 0.0
  %1871 = vmatpush1.msra.mxu0 0.0
  %1872 = vmatprep.subr.mxu0 0.0
  %1873 = vmatpush1.msra.mxu0 0.0
  %1874 = vmatprep.subr.mxu0 0.0
  %1875 = vmatpush1.msra.mxu0 0.0
  %1876 = vmatprep.subr.mxu0 0.0
  %1877 = vmatpush1.msra.mxu0 0.0
  %1878 = vmatprep.subr.mxu0 0.0
  %1879 = vmatpush1.msra.mxu0 0.0
  %1880 = vmatprep.subr.mxu0 0.0
  %1881 = vmatpush1.msra.mxu0 0.0
  %1882 = vmatprep.subr.mxu0 0.0
  %1883 = vmatpush1.msra.mxu0 0.0
  %1884 = vmatprep.mubr.f32.mxu0 0.0
  %v1885 = vand.u32 %v1572, 4294901760
  %v1886 = vsub.f32 %v1572, %v1885
  %v1887 = vand.u32 %v1886, 4294901760
  %1888 = vmatmul.mubr.f32.gmra.mrb[0].mxu0 %v1887
  %v1889 = vpop.f32.mrb[0].mxu0
  %v1890 = vadd.f32 %v1814, %v1889
  %v1891 = vpop.f32.mrb[0].mxu0
  %v1892 = vadd.f32 %v1816, %v1891
  %1893 = vdwg.mxu0
  %v1894 = vand.u32 %v1579, 4294901760
  %v1895 = vsub.f32 %v1579, %v1894
  %v1896 = vand.u32 %v1895, 4294901760
  %1897 = vmatprep.subr.mxu0 %v1896
  %v1898 = vand.u32 %v1576, 4294901760
  %v1899 = vsub.f32 %v1576, %v1898
  %v1900 = vand.u32 %v1899, 4294901760
  %1901 = vmatpush1.msra.mxu0 %v1900
  %1902 = vmatprep.subr.mxu0 0.0
  %1903 = vmatpush1.msra.mxu0 0.0
  %1904 = vmatprep.subr.mxu0 0.0
  %1905 = vmatpush1.msra.mxu0 0.0
  %1906 = vmatprep.subr.mxu0 0.0
  %1907 = vmatpush1.msra.mxu0 0.0
  %1908 = vmatprep.subr.mxu0 0.0
  %1909 = vmatpush1.msra.mxu0 0.0
  %1910 = vmatprep.subr.mxu0 0.0
  %1911 = vmatpush1.msra.mxu0 0.0
  %1912 = vmatprep.subr.mxu0 0.0
  %1913 = vmatpush1.msra.mxu0 0.0
  %1914 = vmatprep.subr.mxu0 0.0
  %1915 = vmatpush1.msra.mxu0 0.0
  %1916 = vmatprep.subr.mxu0 0.0
  %1917 = vmatpush1.msra.mxu0 0.0
  %1918 = vmatprep.subr.mxu0 0.0
  %1919 = vmatpush1.msra.mxu0 0.0
  %1920 = vmatprep.subr.mxu0 0.0
  %1921 = vmatpush1.msra.mxu0 0.0
  %1922 = vmatprep.subr.mxu0 0.0
  %1923 = vmatpush1.msra.mxu0 0.0
  %1924 = vmatprep.subr.mxu0 0.0
  %1925 = vmatpush1.msra.mxu0 0.0
  %1926 = vmatprep.subr.mxu0 0.0
  %1927 = vmatpush1.msra.mxu0 0.0
  %1928 = vmatprep.subr.mxu0 0.0
  %1929 = vmatpush1.msra.mxu0 0.0
  %1930 = vmatprep.subr.mxu0 0.0
  %1931 = vmatpush1.msra.mxu0 0.0
  %1932 = vmatprep.subr.mxu0 0.0
  %1933 = vmatpush1.msra.mxu0 0.0
  %1934 = vmatprep.subr.mxu0 0.0
  %1935 = vmatpush1.msra.mxu0 0.0
  %1936 = vmatprep.subr.mxu0 0.0
  %1937 = vmatpush1.msra.mxu0 0.0
  %1938 = vmatprep.subr.mxu0 0.0
  %1939 = vmatpush1.msra.mxu0 0.0
  %1940 = vmatprep.subr.mxu0 0.0
  %1941 = vmatpush1.msra.mxu0 0.0
  %1942 = vmatprep.subr.mxu0 0.0
  %1943 = vmatpush1.msra.mxu0 0.0
  %1944 = vmatprep.subr.mxu0 0.0
  %1945 = vmatpush1.msra.mxu0 0.0
  %1946 = vmatprep.subr.mxu0 0.0
  %1947 = vmatpush1.msra.mxu0 0.0
  %1948 = vmatprep.subr.mxu0 0.0
  %1949 = vmatpush1.msra.mxu0 0.0
  %1950 = vmatprep.subr.mxu0 0.0
  %1951 = vmatpush1.msra.mxu0 0.0
  %1952 = vmatprep.subr.mxu0 0.0
  %1953 = vmatpush1.msra.mxu0 0.0
  %1954 = vmatprep.subr.mxu0 0.0
  %1955 = vmatpush1.msra.mxu0 0.0
  %1956 = vmatprep.subr.mxu0 0.0
  %1957 = vmatpush1.msra.mxu0 0.0
  %1958 = vmatprep.subr.mxu0 0.0
  %1959 = vmatpush1.msra.mxu0 0.0
  %1960 = vmatprep.subr.mxu0 0.0
  %1961 = vmatpush1.msra.mxu0 0.0
  %1962 = vmatprep.subr.mxu0 0.0
  %1963 = vmatpush1.msra.mxu0 0.0
  %1964 = vmatprep.mubr.f32.mxu0 0.0
  %v1965 = vand.u32 %v1572, 4294901760
  %1966 = vmatmul.mubr.f32.gmra.mrb[0].mxu0 %v1965
  %v1967 = vpop.f32.mrb[0].mxu0
  %v1968 = vadd.f32 %v1890, %v1967
  %v1969 = vpop.f32.mrb[0].mxu0
  %v1970 = vadd.f32 %v1892, %v1969
  %1971 = vdwg.mxu0
  %v1972 = vand.u32 %v1579, 4294901760
  %1973 = vmatprep.subr.mxu0 %v1972
  %v1974 = vand.u32 %v1576, 4294901760
  %1975 = vmatpush1.msra.mxu0 %v1974
  %1976 = vmatprep.subr.mxu0 0.0
  %1977 = vmatpush1.msra.mxu0 0.0
  %1978 = vmatprep.subr.mxu0 0.0
  %1979 = vmatpush1.msra.mxu0 0.0
  %1980 = vmatprep.subr.mxu0 0.0
  %1981 = vmatpush1.msra.mxu0 0.0
  %1982 = vmatprep.subr.mxu0 0.0
  %1983 = vmatpush1.msra.mxu0 0.0
  %1984 = vmatprep.subr.mxu0 0.0
  %1985 = vmatpush1.msra.mxu0 0.0
  %1986 = vmatprep.subr.mxu0 0.0
  %1987 = vmatpush1.msra.mxu0 0.0
  %1988 = vmatprep.subr.mxu0 0.0
  %1989 = vmatpush1.msra.mxu0 0.0
  %1990 = vmatprep.subr.mxu0 0.0
  %1991 = vmatpush1.msra.mxu0 0.0
  %1992 = vmatprep.subr.mxu0 0.0
  %1993 = vmatpush1.msra.mxu0 0.0
  %1994 = vmatprep.subr.mxu0 0.0
  %1995 = vmatpush1.msra.mxu0 0.0
  %1996 = vmatprep.subr.mxu0 0.0
  %1997 = vmatpush1.msra.mxu0 0.0
  %1998 = vmatprep.subr.mxu0 0.0
  %1999 = vmatpush1.msra.mxu0 0.0
  %2000 = vmatprep.subr.mxu0 0.0
  %2001 = vmatpush1.msra.mxu0 0.0
  %2002 = vmatprep.subr.mxu0 0.0
  %2003 = vmatpush1.msra.mxu0 0.0
  %2004 = vmatprep.subr.mxu0 0.0
  %2005 = vmatpush1.msra.mxu0 0.0
  %2006 = vmatprep.subr.mxu0 0.0
  %2007 = vmatpush1.msra.mxu0 0.0
  %2008 = vmatprep.subr.mxu0 0.0
  %2009 = vmatpush1.msra.mxu0 0.0
  %2010 = vmatprep.subr.mxu0 0.0
  %2011 = vmatpush1.msra.mxu0 0.0
  %2012 = vmatprep.subr.mxu0 0.0
  %2013 = vmatpush1.msra.mxu0 0.0
  %2014 = vmatprep.subr.mxu0 0.0
  %2015 = vmatpush1.msra.mxu0 0.0
  %2016 = vmatprep.subr.mxu0 0.0
  %2017 = vmatpush1.msra.mxu0 0.0
  %2018 = vmatprep.subr.mxu0 0.0
  %2019 = vmatpush1.msra.mxu0 0.0
  %2020 = vmatprep.subr.mxu0 0.0
  %2021 = vmatpush1.msra.mxu0 0.0
  %2022 = vmatprep.subr.mxu0 0.0
  %2023 = vmatpush1.msra.mxu0 0.0
  %2024 = vmatprep.subr.mxu0 0.0
  %2025 = vmatpush1.msra.mxu0 0.0
  %2026 = vmatprep.subr.mxu0 0.0
  %2027 = vmatpush1.msra.mxu0 0.0
  %2028 = vmatprep.subr.mxu0 0.0
  %2029 = vmatpush1.msra.mxu0 0.0
  %2030 = vmatprep.subr.mxu0 0.0
  %2031 = vmatpush1.msra.mxu0 0.0
  %2032 = vmatprep.subr.mxu0 0.0
  %2033 = vmatpush1.msra.mxu0 0.0
  %2034 = vmatprep.subr.mxu0 0.0
  %2035 = vmatpush1.msra.mxu0 0.0
  %2036 = vmatprep.subr.mxu0 0.0
  %2037 = vmatpush1.msra.mxu0 0.0
  %2038 = vmatprep.mubr.f32.mxu0 0.0
  %v2039 = vand.u32 %v1572, 4294901760
  %2040 = vmatmul.mubr.f32.gmra.mrb[0].mxu0 %v2039
  %v2041 = vpop.f32.mrb[0].mxu0
  %v2042 = vadd.f32 %v1968, %v2041
  %v2043 = vpop.f32.mrb[0].mxu0
  %v2044 = vadd.f32 %v1970, %v2043
  %2045 = vdwg.mxu0
  %v2046 = vmul.f32 %v2042, 0.5
  %v2047 = vmul.f32 %v2044, 0.5
  %v2048 = vmul.f32 %v2042, 0.70710677
  %v2049 = vmul.f32 %v2044, 0.70710677
  %v2050 = vand.u32 2147483647, %v2048
  %v2051 = vand.u32 2147483647, %v2049
  %v2052 = vmul.f32 %v2050, 0.3275911
  %v2053 = vmul.f32 %v2051, 0.3275911
  %v2054 = vadd.f32 %v2052, 1.0
  %v2055 = vadd.f32 %v2053, 1.0
  %v2056 = vrcp.pop %v2054
  %v2057 = vmul.f32 1.0, %v2056
  %v2058 = vrcp.pop %v2055
  %v2059 = vmul.f32 1.0, %v2058
  %v2060 = vmul.f32 %v2057, 1.0614054
  %v2061 = vmul.f32 %v2059, 1.0614054
  %v2062 = vadd.f32 %v2060, -1.4531521
  %v2063 = vadd.f32 %v2061, -1.4531521
  %v2064 = vmul.f32 %v2057, %v2062
  %v2065 = vmul.f32 %v2059, %v2063
  %v2066 = vadd.f32 %v2064, 1.4214138
  %v2067 = vadd.f32 %v2065, 1.4214138
  %v2068 = vmul.f32 %v2057, %v2066
  %v2069 = vmul.f32 %v2059, %v2067
  %v2070 = vadd.f32 %v2068, -0.28449672
  %v2071 = vadd.f32 %v2069, -0.28449672
  %v2072 = vmul.f32 %v2057, %v2070
  %v2073 = vmul.f32 %v2059, %v2071
  %v2074 = vadd.f32 %v2072, 0.2548296
  %v2075 = vadd.f32 %v2073, 0.2548296
  %v2076 = vmul.f32 %v2057, %v2074
  %v2077 = vmul.f32 %v2059, %v2075
  %v2078 = vsub.f32 0.0, %v2050
  %v2079 = vsub.f32 0.0, %v2051
  %v2080 = vmul.f32 %v2078, %v2050
  %v2081 = vmul.f32 %v2079, %v2051
  %v2082 = vmul.f32 %v2080, 1.442695
  %v2083 = vpow.pop %v2082
  %v2084 = vmul.f32 %v2081, 1.442695
  %v2085 = vpow.pop %v2084
  %v2086 = vmul.f32 %v2076, %v2083
  %v2087 = vmul.f32 %v2077, %v2085
  %v2088 = vsub.f32 1.0, %v2086
  %v2089 = vsub.f32 1.0, %v2087
  %vm2090 = vcmp.lt.f32.partialorder %v2048, 0.0
  %vm2091 = vcmp.lt.f32.partialorder %v2049, 0.0
  %v2092 = vsub.f32 0.0, %v2088
  %v2093 = vsub.f32 0.0, %v2089
  %v2094 = vsel %vm2090, %v2092, %v2088
  %v2095 = vsel %vm2091, %v2093, %v2089
  %v2096 = vadd.f32 %v2094, 1.0
  %v2097 = vadd.f32 %v2095, 1.0
  %v2098 = vmul.f32 %v2046, %v2096
  %v2099 = vmul.f32 %v2047, %v2097
  %2100 = vset.pattern.permute.xlu0 16
  %2101 = vperm.xlu0 %2100, %v13
  %v2102 = vpop.permute.xlu0 %2101
  %v2104 = vmul.f32 %v2102, %v2098
  %v2105 = vmul.f32 %v2102, %v2099
  %v2106 = vsel %vm25, %v2104, 0.0
  %v2107 = vrot.slane %v2106, 4
  %v2108 = vadd.f32 %v2106, %v2107
  %v2109 = vrot.slane %v2108, 2
  %v2110 = vadd.f32 %v2108, %v2109
  %v2111 = vrot.slane %v2110, 1
  %v2112 = vadd.f32 %v2110, %v2111
  %v2113 = vsel %vm25, %v2105, 0.0
  %v2114 = vrot.slane %v2113, 4
  %v2115 = vadd.f32 %v2113, %v2114
  %v2116 = vrot.slane %v2115, 2
  %v2117 = vadd.f32 %v2115, %v2116
  %v2118 = vrot.slane %v2117, 1
  %v2119 = vadd.f32 %v2117, %v2118
  %2121 = vset.pattern.permute.xlu0 24
  %2122 = vperm.xlu0 %2121, %v14
  %v2123 = vpop.permute.xlu0 %2122
  %v2125 = vadd.f32 %v2112, %v2123
  %v2126 = vadd.f32 %v2119, %v2123
  %v2127 = vmul.f32 %v13, 0.5
  %v2128 = vmul.f32 %v13, 0.70710677
  %v2129 = vand.u32 2147483647, %v2128
  %v2130 = vmul.f32 %v2129, 0.3275911
  %v2131 = vadd.f32 %v2130, 1.0
  %v2132 = vrcp.pop %v2131
  %v2133 = vmul.f32 1.0, %v2132
  %v2134 = vmul.f32 %v2133, 1.0614054
  %v2135 = vadd.f32 %v2134, -1.4531521
  %v2136 = vmul.f32 %v2133, %v2135
  %v2137 = vadd.f32 %v2136, 1.4214138
  %v2138 = vmul.f32 %v2133, %v2137
  %v2139 = vadd.f32 %v2138, -0.28449672
  %v2140 = vmul.f32 %v2133, %v2139
  %v2141 = vadd.f32 %v2140, 0.2548296
  %v2142 = vmul.f32 %v2133, %v2141
  %v2143 = vsub.f32 0.0, %v2129
  %v2144 = vmul.f32 %v2143, %v2129
  %v2145 = vmul.f32 %v2144, 1.442695
  %v2146 = vpow.pop %v2145
  %v2147 = vmul.f32 %v2142, %v2146
  %v2148 = vsub.f32 1.0, %v2147
  %vm2149 = vcmp.lt.f32.partialorder %v2128, 0.0
  %v2150 = vsub.f32 0.0, %v2148
  %v2151 = vsel %vm2149, %v2150, %v2148
  %v2152 = vadd.f32 %v2151, 1.0
  %v2153 = vmul.f32 %v2127, %v2152
  %2155 = vrot.lane.b32.xlu0 %v2153, 8
  %v2156 = vpop.permute.xlu0 %2155
  %v2158 = vmul.f32 %v13, %v2156
  %vm2159 = vcmask 135296
  %v2160 = vsel %vm2159, %v2158, 0.0
  %v2161 = vrot.slane %v2160, 4
  %v2162 = vadd.f32 %v2160, %v2161
  %v2163 = vrot.slane %v2162, 2
  %v2164 = vadd.f32 %v2162, %v2163
  %v2165 = vrot.slane %v2164, 1
  %v2166 = vadd.f32 %v2164, %v2165
  %2167 = vrot.lane.b32.xlu0 %v14, 120
  %v2168 = vpop.permute.xlu0 %2167
  %v2170 = vadd.f32 %v2166, %v2168
  %v2171 = vlaneseq
  %v2172 = vshrl.u32 %v2171, 7
  %v2173 = vadd.s32 %v2172, 8
  %v2174 = vadd.s32 %v2172, 16
  %v2175 = vadd.s32 %v2172, 24
  %v2176 = vshra.s32 %v556, 4
  %v2177 = vshra.s32 %v557, 4
  %v2178 = vmul.u32 %v2176, 2
  %v2179 = vmul.u32 %v2177, 2
  %vm2180 = vcmp.eq.s32.totalorder %v2172, %v2178
  %vm2181 = vcmp.eq.s32.totalorder %v2172, %v2179
  %vm2182 = vcmp.eq.s32.totalorder %v2173, %v2178
  %vm2183 = vcmp.eq.s32.totalorder %v2173, %v2179
  %vm2184 = vcmp.eq.s32.totalorder %v2174, %v2178
  %vm2185 = vcmp.eq.s32.totalorder %v2174, %v2179
  %vm2186 = vcmp.eq.s32.totalorder %v2175, %v2178
  %vm2187 = vcmp.eq.s32.totalorder %v2175, %v2179
  %v2188 = vsel %vm2180, 1.0, 0.0
  %v2189 = vsel %vm2181, 1.0, 0.0
  %v2190 = vsel %vm2182, 1.0, 0.0
  %v2191 = vsel %vm2183, 1.0, 0.0
  %v2192 = vsel %vm2184, 1.0, 0.0
  %v2193 = vsel %vm2185, 1.0, 0.0
  %v2194 = vsel %vm2186, 1.0, 0.0
  %v2195 = vsel %vm2187, 1.0, 0.0
  %v2196 = vadd.s32 %v2172, 32
  %v2197 = vadd.s32 %v2172, 40
  %v2198 = vadd.s32 %v2172, 48
  %v2199 = vadd.s32 %v2172, 56
  %v2200 = vadd.s32 %v2172, 64
  %v2201 = vadd.s32 %v2172, 72
  %v2202 = vadd.s32 %v2172, 80
  %v2203 = vadd.s32 %v2172, 88
  %v2204 = vadd.s32 %v2172, 96
  %v2205 = vadd.s32 %v2172, 104
  %v2206 = vadd.s32 %v2172, 112
  %v2207 = vadd.s32 %v2172, 120
  %v2208 = vadd.s32 %v2172, 128
  %v2209 = vadd.s32 %v2172, 136
  %v2210 = vadd.s32 %v2172, 144
  %v2211 = vadd.s32 %v2172, 152
  %v2212 = vadd.s32 %v2172, 160
  %v2213 = vadd.s32 %v2172, 168
  %v2214 = vadd.s32 %v2172, 176
  %v2215 = vadd.s32 %v2172, 184
  %v2216 = vadd.s32 %v2172, 192
  %v2217 = vadd.s32 %v2172, 200
  %v2218 = vadd.s32 %v2172, 208
  %v2219 = vadd.s32 %v2172, 216
  %v2220 = vadd.s32 %v2172, 224
  %v2221 = vadd.s32 %v2172, 232
  %v2222 = vadd.s32 %v2172, 240
  %v2223 = vadd.s32 %v2172, 248
  %v2224 = vand.u32 %v2172, 15
  %v2225 = vand.u32 %v2173, 15
  %v2226 = vand.u32 %v2174, 15
  %v2227 = vand.u32 %v2175, 15
  %v2228 = vand.u32 %v2196, 15
  %v2229 = vand.u32 %v2197, 15
  %v2230 = vand.u32 %v2198, 15
  %v2231 = vand.u32 %v2199, 15
  %v2232 = vand.u32 %v2200, 15
  %v2233 = vand.u32 %v2201, 15
  %v2234 = vand.u32 %v2202, 15
  %v2235 = vand.u32 %v2203, 15
  %v2236 = vand.u32 %v2204, 15
  %v2237 = vand.u32 %v2205, 15
  %v2238 = vand.u32 %v2206, 15
  %v2239 = vand.u32 %v2207, 15
  %v2240 = vand.u32 %v2208, 15
  %v2241 = vand.u32 %v2209, 15
  %v2242 = vand.u32 %v2210, 15
  %v2243 = vand.u32 %v2211, 15
  %v2244 = vand.u32 %v2212, 15
  %v2245 = vand.u32 %v2213, 15
  %v2246 = vand.u32 %v2214, 15
  %v2247 = vand.u32 %v2215, 15
  %v2248 = vand.u32 %v2216, 15
  %v2249 = vand.u32 %v2217, 15
  %v2250 = vand.u32 %v2218, 15
  %v2251 = vand.u32 %v2219, 15
  %v2252 = vand.u32 %v2220, 15
  %v2253 = vand.u32 %v2221, 15
  %v2254 = vand.u32 %v2222, 15
  %v2255 = vand.u32 %v2223, 15
  %v2256 = vmul.u32 %v2224, 2
  %v2257 = vmul.u32 %v2225, 2
  %v2258 = vmul.u32 %v2226, 2
  %v2259 = vmul.u32 %v2227, 2
  %v2260 = vmul.u32 %v2228, 2
  %v2261 = vmul.u32 %v2229, 2
  %v2262 = vmul.u32 %v2230, 2
  %v2263 = vmul.u32 %v2231, 2
  %v2264 = vmul.u32 %v2232, 2
  %v2265 = vmul.u32 %v2233, 2
  %v2266 = vmul.u32 %v2234, 2
  %v2267 = vmul.u32 %v2235, 2
  %v2268 = vmul.u32 %v2236, 2
  %v2269 = vmul.u32 %v2237, 2
  %v2270 = vmul.u32 %v2238, 2
  %v2271 = vmul.u32 %v2239, 2
  %v2272 = vmul.u32 %v2240, 2
  %v2273 = vmul.u32 %v2241, 2
  %v2274 = vmul.u32 %v2242, 2
  %v2275 = vmul.u32 %v2243, 2
  %v2276 = vmul.u32 %v2244, 2
  %v2277 = vmul.u32 %v2245, 2
  %v2278 = vmul.u32 %v2246, 2
  %v2279 = vmul.u32 %v2247, 2
  %v2280 = vmul.u32 %v2248, 2
  %v2281 = vmul.u32 %v2249, 2
  %v2282 = vmul.u32 %v2250, 2
  %v2283 = vmul.u32 %v2251, 2
  %v2284 = vmul.u32 %v2252, 2
  %v2285 = vmul.u32 %v2253, 2
  %v2286 = vmul.u32 %v2254, 2
  %v2287 = vmul.u32 %v2255, 2
  %vm2288 = vcmp.eq.s32.totalorder %v556, %v2256
  %vm2289 = vcmp.eq.s32.totalorder %v556, %v2257
  %vm2290 = vcmp.eq.s32.totalorder %v556, %v2258
  %vm2291 = vcmp.eq.s32.totalorder %v556, %v2259
  %vm2292 = vcmp.eq.s32.totalorder %v556, %v2260
  %vm2293 = vcmp.eq.s32.totalorder %v556, %v2261
  %vm2294 = vcmp.eq.s32.totalorder %v556, %v2262
  %vm2295 = vcmp.eq.s32.totalorder %v556, %v2263
  %vm2296 = vcmp.eq.s32.totalorder %v556, %v2264
  %vm2297 = vcmp.eq.s32.totalorder %v556, %v2265
  %vm2298 = vcmp.eq.s32.totalorder %v556, %v2266
  %vm2299 = vcmp.eq.s32.totalorder %v556, %v2267
  %vm2300 = vcmp.eq.s32.totalorder %v556, %v2268
  %vm2301 = vcmp.eq.s32.totalorder %v556, %v2269
  %vm2302 = vcmp.eq.s32.totalorder %v556, %v2270
  %vm2303 = vcmp.eq.s32.totalorder %v556, %v2271
  %vm2304 = vcmp.eq.s32.totalorder %v556, %v2272
  %vm2305 = vcmp.eq.s32.totalorder %v556, %v2273
  %vm2306 = vcmp.eq.s32.totalorder %v556, %v2274
  %vm2307 = vcmp.eq.s32.totalorder %v556, %v2275
  %vm2308 = vcmp.eq.s32.totalorder %v556, %v2276
  %vm2309 = vcmp.eq.s32.totalorder %v556, %v2277
  %vm2310 = vcmp.eq.s32.totalorder %v556, %v2278
  %vm2311 = vcmp.eq.s32.totalorder %v556, %v2279
  %vm2312 = vcmp.eq.s32.totalorder %v556, %v2280
  %vm2313 = vcmp.eq.s32.totalorder %v556, %v2281
  %vm2314 = vcmp.eq.s32.totalorder %v556, %v2282
  %vm2315 = vcmp.eq.s32.totalorder %v556, %v2283
  %vm2316 = vcmp.eq.s32.totalorder %v556, %v2284
  %vm2317 = vcmp.eq.s32.totalorder %v556, %v2285
  %vm2318 = vcmp.eq.s32.totalorder %v556, %v2286
  %vm2319 = vcmp.eq.s32.totalorder %v556, %v2287
  %v2320 = vsel %vm2288, 1.0, 0.0
  %v2321 = vsel %vm2289, 1.0, 0.0
  %v2322 = vsel %vm2290, 1.0, 0.0
  %v2323 = vsel %vm2291, 1.0, 0.0
  %v2324 = vsel %vm2292, 1.0, 0.0
  %v2325 = vsel %vm2293, 1.0, 0.0
  %v2326 = vsel %vm2294, 1.0, 0.0
  %v2327 = vsel %vm2295, 1.0, 0.0
  %v2328 = vsel %vm2296, 1.0, 0.0
  %v2329 = vsel %vm2297, 1.0, 0.0
  %v2330 = vsel %vm2298, 1.0, 0.0
  %v2331 = vsel %vm2299, 1.0, 0.0
  %v2332 = vsel %vm2300, 1.0, 0.0
  %v2333 = vsel %vm2301, 1.0, 0.0
  %v2334 = vsel %vm2302, 1.0, 0.0
  %v2335 = vsel %vm2303, 1.0, 0.0
  %v2336 = vsel %vm2304, 1.0, 0.0
  %v2337 = vsel %vm2305, 1.0, 0.0
  %v2338 = vsel %vm2306, 1.0, 0.0
  %v2339 = vsel %vm2307, 1.0, 0.0
  %v2340 = vsel %vm2308, 1.0, 0.0
  %v2341 = vsel %vm2309, 1.0, 0.0
  %v2342 = vsel %vm2310, 1.0, 0.0
  %v2343 = vsel %vm2311, 1.0, 0.0
  %v2344 = vsel %vm2312, 1.0, 0.0
  %v2345 = vsel %vm2313, 1.0, 0.0
  %v2346 = vsel %vm2314, 1.0, 0.0
  %v2347 = vsel %vm2315, 1.0, 0.0
  %v2348 = vsel %vm2316, 1.0, 0.0
  %v2349 = vsel %vm2317, 1.0, 0.0
  %v2350 = vsel %vm2318, 1.0, 0.0
  %v2351 = vsel %vm2319, 1.0, 0.0
  %v2352 = vlaneseq
  %v2353 = vshrl.u32 %v2352, 7
  %v2354 = vsub.s32 0, %v2353
  %v2355 = vrot.slane %v2125, %v2354
  %v2356 = vlaneseq
  %v2357 = vshrl.u32 %v2356, 7
  %v2358 = vsub.s32 0, %v2357
  %v2359 = vrot.slane %v2126, %v2358
  %v2360 = vmul.f32 %v2188, %v2355
  %v2361 = vmul.f32 %v2189, %v2359
  %v2362 = vmul.f32 %v2190, %v2355
  %v2363 = vmul.f32 %v2191, %v2359
  %v2364 = vmul.f32 %v2192, %v2355
  %v2365 = vmul.f32 %v2193, %v2359
  %v2366 = vmul.f32 %v2194, %v2355
  %v2367 = vmul.f32 %v2195, %v2359
  %2368 = vmatprep.subr.mxu0 0.0
  %2369 = vmatpush1.msra.mxu0 %v2320
  %2370 = vmatprep.subr.mxu0 0.0
  %2371 = vmatpush1.msra.mxu0 %v2321
  %2372 = vmatprep.subr.mxu0 0.0
  %2373 = vmatpush1.msra.mxu0 %v2322
  %2374 = vmatprep.subr.mxu0 0.0
  %2375 = vmatpush1.msra.mxu0 %v2323
  %2376 = vmatprep.subr.mxu0 0.0
  %2377 = vmatpush1.msra.mxu0 %v2324
  %2378 = vmatprep.subr.mxu0 0.0
  %2379 = vmatpush1.msra.mxu0 %v2325
  %2380 = vmatprep.subr.mxu0 0.0
  %2381 = vmatpush1.msra.mxu0 %v2326
  %2382 = vmatprep.subr.mxu0 0.0
  %2383 = vmatpush1.msra.mxu0 %v2327
  %2384 = vmatprep.subr.mxu0 0.0
  %2385 = vmatpush1.msra.mxu0 %v2328
  %2386 = vmatprep.subr.mxu0 0.0
  %2387 = vmatpush1.msra.mxu0 %v2329
  %2388 = vmatprep.subr.mxu0 0.0
  %2389 = vmatpush1.msra.mxu0 %v2330
  %2390 = vmatprep.subr.mxu0 0.0
  %2391 = vmatpush1.msra.mxu0 %v2331
  %2392 = vmatprep.subr.mxu0 0.0
  %2393 = vmatpush1.msra.mxu0 %v2332
  %2394 = vmatprep.subr.mxu0 0.0
  %2395 = vmatpush1.msra.mxu0 %v2333
  %2396 = vmatprep.subr.mxu0 0.0
  %2397 = vmatpush1.msra.mxu0 %v2334
  %2398 = vmatprep.subr.mxu0 0.0
  %2399 = vmatpush1.msra.mxu0 %v2335
  %2400 = vmatprep.subr.mxu0 0.0
  %2401 = vmatpush1.msra.mxu0 %v2336
  %2402 = vmatprep.subr.mxu0 0.0
  %2403 = vmatpush1.msra.mxu0 %v2337
  %2404 = vmatprep.subr.mxu0 0.0
  %2405 = vmatpush1.msra.mxu0 %v2338
  %2406 = vmatprep.subr.mxu0 0.0
  %2407 = vmatpush1.msra.mxu0 %v2339
  %2408 = vmatprep.subr.mxu0 0.0
  %2409 = vmatpush1.msra.mxu0 %v2340
  %2410 = vmatprep.subr.mxu0 0.0
  %2411 = vmatpush1.msra.mxu0 %v2341
  %2412 = vmatprep.subr.mxu0 0.0
  %2413 = vmatpush1.msra.mxu0 %v2342
  %2414 = vmatprep.subr.mxu0 0.0
  %2415 = vmatpush1.msra.mxu0 %v2343
  %2416 = vmatprep.subr.mxu0 0.0
  %2417 = vmatpush1.msra.mxu0 %v2344
  %2418 = vmatprep.subr.mxu0 0.0
  %2419 = vmatpush1.msra.mxu0 %v2345
  %2420 = vmatprep.subr.mxu0 0.0
  %2421 = vmatpush1.msra.mxu0 %v2346
  %2422 = vmatprep.subr.mxu0 0.0
  %2423 = vmatpush1.msra.mxu0 %v2347
  %2424 = vmatprep.subr.mxu0 0.0
  %2425 = vmatpush1.msra.mxu0 %v2348
  %2426 = vmatprep.subr.mxu0 0.0
  %2427 = vmatpush1.msra.mxu0 %v2349
  %2428 = vmatprep.subr.mxu0 0.0
  %2429 = vmatpush1.msra.mxu0 %v2350
  %2430 = vmatprep.subr.mxu0 0.0
  %2431 = vmatpush1.msra.mxu0 %v2351
  %v2432 = vand.u32 %v2361, 4294901760
  %v2433 = vsub.f32 %v2361, %v2432
  %v2434 = vand.u32 %v2433, 4294901760
  %v2435 = vsub.f32 %v2433, %v2434
  %v2436 = vand.u32 %v2435, 4294901760
  %2437 = vmatprep.mubr.f32.mxu0 %v2436
  %v2438 = vand.u32 %v2360, 4294901760
  %v2439 = vsub.f32 %v2360, %v2438
  %v2440 = vand.u32 %v2439, 4294901760
  %v2441 = vsub.f32 %v2439, %v2440
  %v2442 = vand.u32 %v2441, 4294901760
  %2443 = vmatmul.mubr.f32.gmra.mrb[0].mxu0 %v2442
  %v2444 = vpop.f32.mrb[0].mxu0
  %v2445 = vadd.f32 0.0, %v2444
  %v2446 = vpop.f32.mrb[0].mxu0
  %v2447 = vand.u32 %v2363, 4294901760
  %v2448 = vsub.f32 %v2363, %v2447
  %v2449 = vand.u32 %v2448, 4294901760
  %v2450 = vsub.f32 %v2448, %v2449
  %v2451 = vand.u32 %v2450, 4294901760
  %2452 = vmatprep.mubr.f32.mxu0 %v2451
  %v2453 = vand.u32 %v2362, 4294901760
  %v2454 = vsub.f32 %v2362, %v2453
  %v2455 = vand.u32 %v2454, 4294901760
  %v2456 = vsub.f32 %v2454, %v2455
  %v2457 = vand.u32 %v2456, 4294901760
  %2458 = vmatmul.mubr.f32.gmra.mrb[0].mxu0 %v2457
  %v2459 = vpop.f32.mrb[0].mxu0
  %v2460 = vadd.f32 0.0, %v2459
  %v2461 = vpop.f32.mrb[0].mxu0
  %v2462 = vand.u32 %v2365, 4294901760
  %v2463 = vsub.f32 %v2365, %v2462
  %v2464 = vand.u32 %v2463, 4294901760
  %v2465 = vsub.f32 %v2463, %v2464
  %v2466 = vand.u32 %v2465, 4294901760
  %2467 = vmatprep.mubr.f32.mxu0 %v2466
  %v2468 = vand.u32 %v2364, 4294901760
  %v2469 = vsub.f32 %v2364, %v2468
  %v2470 = vand.u32 %v2469, 4294901760
  %v2471 = vsub.f32 %v2469, %v2470
  %v2472 = vand.u32 %v2471, 4294901760
  %2473 = vmatmul.mubr.f32.gmra.mrb[0].mxu0 %v2472
  %v2474 = vpop.f32.mrb[0].mxu0
  %v2475 = vadd.f32 0.0, %v2474
  %v2476 = vpop.f32.mrb[0].mxu0
  %v2477 = vand.u32 %v2367, 4294901760
  %v2478 = vsub.f32 %v2367, %v2477
  %v2479 = vand.u32 %v2478, 4294901760
  %v2480 = vsub.f32 %v2478, %v2479
  %v2481 = vand.u32 %v2480, 4294901760
  %2482 = vmatprep.mubr.f32.mxu0 %v2481
  %v2483 = vand.u32 %v2366, 4294901760
  %v2484 = vsub.f32 %v2366, %v2483
  %v2485 = vand.u32 %v2484, 4294901760
  %v2486 = vsub.f32 %v2484, %v2485
  %v2487 = vand.u32 %v2486, 4294901760
  %2488 = vmatmul.mubr.f32.gmra.mrb[0].mxu0 %v2487
  %v2489 = vpop.f32.mrb[0].mxu0
  %v2490 = vadd.f32 0.0, %v2489
  %v2491 = vpop.f32.mrb[0].mxu0
  %2492 = vdwg.mxu0
  %2493 = vmatprep.subr.mxu0 0.0
  %v2494 = vsub.f32 %v2320, %v2320
  %v2495 = vand.u32 %v2494, 4294901760
  %v2496 = vsub.f32 %v2494, %v2495
  %v2497 = vand.u32 %v2496, 4294901760
  %2498 = vmatpush1.msra.mxu0 %v2497
  %2499 = vmatprep.subr.mxu0 0.0
  %v2500 = vsub.f32 %v2321, %v2321
  %v2501 = vand.u32 %v2500, 4294901760
  %v2502 = vsub.f32 %v2500, %v2501
  %v2503 = vand.u32 %v2502, 4294901760
  %2504 = vmatpush1.msra.mxu0 %v2503
  %2505 = vmatprep.subr.mxu0 0.0
  %v2506 = vsub.f32 %v2322, %v2322
  %v2507 = vand.u32 %v2506, 4294901760
  %v2508 = vsub.f32 %v2506, %v2507
  %v2509 = vand.u32 %v2508, 4294901760
  %2510 = vmatpush1.msra.mxu0 %v2509
  %2511 = vmatprep.subr.mxu0 0.0
  %v2512 = vsub.f32 %v2323, %v2323
  %v2513 = vand.u32 %v2512, 4294901760
  %v2514 = vsub.f32 %v2512, %v2513
  %v2515 = vand.u32 %v2514, 4294901760
  %2516 = vmatpush1.msra.mxu0 %v2515
  %2517 = vmatprep.subr.mxu0 0.0
  %v2518 = vsub.f32 %v2324, %v2324
  %v2519 = vand.u32 %v2518, 4294901760
  %v2520 = vsub.f32 %v2518, %v2519
  %v2521 = vand.u32 %v2520, 4294901760
  %2522 = vmatpush1.msra.mxu0 %v2521
  %2523 = vmatprep.subr.mxu0 0.0
  %v2524 = vsub.f32 %v2325, %v2325
  %v2525 = vand.u32 %v2524, 4294901760
  %v2526 = vsub.f32 %v2524, %v2525
  %v2527 = vand.u32 %v2526, 4294901760
  %2528 = vmatpush1.msra.mxu0 %v2527
  %2529 = vmatprep.subr.mxu0 0.0
  %v2530 = vsub.f32 %v2326, %v2326
  %v2531 = vand.u32 %v2530, 4294901760
  %v2532 = vsub.f32 %v2530, %v2531
  %v2533 = vand.u32 %v2532, 4294901760
  %2534 = vmatpush1.msra.mxu0 %v2533
  %2535 = vmatprep.subr.mxu0 0.0
  %v2536 = vsub.f32 %v2327, %v2327
  %v2537 = vand.u32 %v2536, 4294901760
  %v2538 = vsub.f32 %v2536, %v2537
  %v2539 = vand.u32 %v2538, 4294901760
  %2540 = vmatpush1.msra.mxu0 %v2539
  %2541 = vmatprep.subr.mxu0 0.0
  %v2542 = vsub.f32 %v2328, %v2328
  %v2543 = vand.u32 %v2542, 4294901760
  %v2544 = vsub.f32 %v2542, %v2543
  %v2545 = vand.u32 %v2544, 4294901760
  %2546 = vmatpush1.msra.mxu0 %v2545
  %2547 = vmatprep.subr.mxu0 0.0
  %v2548 = vsub.f32 %v2329, %v2329
  %v2549 = vand.u32 %v2548, 4294901760
  %v2550 = vsub.f32 %v2548, %v2549
  %v2551 = vand.u32 %v2550, 4294901760
  %2552 = vmatpush1.msra.mxu0 %v2551
  %2553 = vmatprep.subr.mxu0 0.0
  %v2554 = vsub.f32 %v2330, %v2330
  %v2555 = vand.u32 %v2554, 4294901760
  %v2556 = vsub.f32 %v2554, %v2555
  %v2557 = vand.u32 %v2556, 4294901760
  %2558 = vmatpush1.msra.mxu0 %v2557
  %2559 = vmatprep.subr.mxu0 0.0
  %v2560 = vsub.f32 %v2331, %v2331
  %v2561 = vand.u32 %v2560, 4294901760
  %v2562 = vsub.f32 %v2560, %v2561
  %v2563 = vand.u32 %v2562, 4294901760
  %2564 = vmatpush1.msra.mxu0 %v2563
  %2565 = vmatprep.subr.mxu0 0.0
  %v2566 = vsub.f32 %v2332, %v2332
  %v2567 = vand.u32 %v2566, 4294901760
  %v2568 = vsub.f32 %v2566, %v2567
  %v2569 = vand.u32 %v2568, 4294901760
  %2570 = vmatpush1.msra.mxu0 %v2569
  %2571 = vmatprep.subr.mxu0 0.0
  %v2572 = vsub.f32 %v2333, %v2333
  %v2573 = vand.u32 %v2572, 4294901760
  %v2574 = vsub.f32 %v2572, %v2573
  %v2575 = vand.u32 %v2574, 4294901760
  %2576 = vmatpush1.msra.mxu0 %v2575
  %2577 = vmatprep.subr.mxu0 0.0
  %v2578 = vsub.f32 %v2334, %v2334
  %v2579 = vand.u32 %v2578, 4294901760
  %v2580 = vsub.f32 %v2578, %v2579
  %v2581 = vand.u32 %v2580, 4294901760
  %2582 = vmatpush1.msra.mxu0 %v2581
  %2583 = vmatprep.subr.mxu0 0.0
  %v2584 = vsub.f32 %v2335, %v2335
  %v2585 = vand.u32 %v2584, 4294901760
  %v2586 = vsub.f32 %v2584, %v2585
  %v2587 = vand.u32 %v2586, 4294901760
  %2588 = vmatpush1.msra.mxu0 %v2587
  %2589 = vmatprep.subr.mxu0 0.0
  %v2590 = vsub.f32 %v2336, %v2336
  %v2591 = vand.u32 %v2590, 4294901760
  %v2592 = vsub.f32 %v2590, %v2591
  %v2593 = vand.u32 %v2592, 4294901760
  %2594 = vmatpush1.msra.mxu0 %v2593
  %2595 = vmatprep.subr.mxu0 0.0
  %v2596 = vsub.f32 %v2337, %v2337
  %v2597 = vand.u32 %v2596, 4294901760
  %v2598 = vsub.f32 %v2596, %v2597
  %v2599 = vand.u32 %v2598, 4294901760
  %2600 = vmatpush1.msra.mxu0 %v2599
  %2601 = vmatprep.subr.mxu0 0.0
  %v2602 = vsub.f32 %v2338, %v2338
  %v2603 = vand.u32 %v2602, 4294901760
  %v2604 = vsub.f32 %v2602, %v2603
  %v2605 = vand.u32 %v2604, 4294901760
  %2606 = vmatpush1.msra.mxu0 %v2605
  %2607 = vmatprep.subr.mxu0 0.0
  %v2608 = vsub.f32 %v2339, %v2339
  %v2609 = vand.u32 %v2608, 4294901760
  %v2610 = vsub.f32 %v2608, %v2609
  %v2611 = vand.u32 %v2610, 4294901760
  %2612 = vmatpush1.msra.mxu0 %v2611
  %2613 = vmatprep.subr.mxu0 0.0
  %v2614 = vsub.f32 %v2340, %v2340
  %v2615 = vand.u32 %v2614, 4294901760
  %v2616 = vsub.f32 %v2614, %v2615
  %v2617 = vand.u32 %v2616, 4294901760
  %2618 = vmatpush1.msra.mxu0 %v2617
  %2619 = vmatprep.subr.mxu0 0.0
  %v2620 = vsub.f32 %v2341, %v2341
  %v2621 = vand.u32 %v2620, 4294901760
  %v2622 = vsub.f32 %v2620, %v2621
  %v2623 = vand.u32 %v2622, 4294901760
  %2624 = vmatpush1.msra.mxu0 %v2623
  %2625 = vmatprep.subr.mxu0 0.0
  %v2626 = vsub.f32 %v2342, %v2342
  %v2627 = vand.u32 %v2626, 4294901760
  %v2628 = vsub.f32 %v2626, %v2627
  %v2629 = vand.u32 %v2628, 4294901760
  %2630 = vmatpush1.msra.mxu0 %v2629
  %2631 = vmatprep.subr.mxu0 0.0
  %v2632 = vsub.f32 %v2343, %v2343
  %v2633 = vand.u32 %v2632, 4294901760
  %v2634 = vsub.f32 %v2632, %v2633
  %v2635 = vand.u32 %v2634, 4294901760
  %2636 = vmatpush1.msra.mxu0 %v2635
  %2637 = vmatprep.subr.mxu0 0.0
  %v2638 = vsub.f32 %v2344, %v2344
  %v2639 = vand.u32 %v2638, 4294901760
  %v2640 = vsub.f32 %v2638, %v2639
  %v2641 = vand.u32 %v2640, 4294901760
  %2642 = vmatpush1.msra.mxu0 %v2641
  %2643 = vmatprep.subr.mxu0 0.0
  %v2644 = vsub.f32 %v2345, %v2345
  %v2645 = vand.u32 %v2644, 4294901760
  %v2646 = vsub.f32 %v2644, %v2645
  %v2647 = vand.u32 %v2646, 4294901760
  %2648 = vmatpush1.msra.mxu0 %v2647
  %2649 = vmatprep.subr.mxu0 0.0
  %v2650 = vsub.f32 %v2346, %v2346
  %v2651 = vand.u32 %v2650, 4294901760
  %v2652 = vsub.f32 %v2650, %v2651
  %v2653 = vand.u32 %v2652, 4294901760
  %2654 = vmatpush1.msra.mxu0 %v2653
  %2655 = vmatprep.subr.mxu0 0.0
  %v2656 = vsub.f32 %v2347, %v2347
  %v2657 = vand.u32 %v2656, 4294901760
  %v2658 = vsub.f32 %v2656, %v2657
  %v2659 = vand.u32 %v2658, 4294901760
  %2660 = vmatpush1.msra.mxu0 %v2659
  %2661 = vmatprep.subr.mxu0 0.0
  %v2662 = vsub.f32 %v2348, %v2348
  %v2663 = vand.u32 %v2662, 4294901760
  %v2664 = vsub.f32 %v2662, %v2663
  %v2665 = vand.u32 %v2664, 4294901760
  %2666 = vmatpush1.msra.mxu0 %v2665
  %2667 = vmatprep.subr.mxu0 0.0
  %v2668 = vsub.f32 %v2349, %v2349
  %v2669 = vand.u32 %v2668, 4294901760
  %v2670 = vsub.f32 %v2668, %v2669
  %v2671 = vand.u32 %v2670, 4294901760
  %2672 = vmatpush1.msra.mxu0 %v2671
  %2673 = vmatprep.subr.mxu0 0.0
  %v2674 = vsub.f32 %v2350, %v2350
  %v2675 = vand.u32 %v2674, 4294901760
  %v2676 = vsub.f32 %v2674, %v2675
  %v2677 = vand.u32 %v2676, 4294901760
  %2678 = vmatpush1.msra.mxu0 %v2677
  %2679 = vmatprep.subr.mxu0 0.0
  %v2680 = vsub.f32 %v2351, %v2351
  %v2681 = vand.u32 %v2680, 4294901760
  %v2682 = vsub.f32 %v2680, %v2681
  %v2683 = vand.u32 %v2682, 4294901760
  %2684 = vmatpush1.msra.mxu0 %v2683
  %v2685 = vand.u32 %v2361, 4294901760
  %2686 = vmatprep.mubr.f32.mxu0 %v2685
  %v2687 = vand.u32 %v2360, 4294901760
  %2688 = vmatmul.mubr.f32.gmra.mrb[0].mxu0 %v2687
  %v2689 = vpop.f32.mrb[0].mxu0
  %v2690 = vadd.f32 %v2445, %v2689
  %v2691 = vpop.f32.mrb[0].mxu0
  %v2692 = vand.u32 %v2363, 4294901760
  %2693 = vmatprep.mubr.f32.mxu0 %v2692
  %v2694 = vand.u32 %v2362, 4294901760
  %2695 = vmatmul.mubr.f32.gmra.mrb[0].mxu0 %v2694
  %v2696 = vpop.f32.mrb[0].mxu0
  %v2697 = vadd.f32 %v2460, %v2696
  %v2698 = vpop.f32.mrb[0].mxu0
  %v2699 = vand.u32 %v2365, 4294901760
  %2700 = vmatprep.mubr.f32.mxu0 %v2699
  %v2701 = vand.u32 %v2364, 4294901760
  %2702 = vmatmul.mubr.f32.gmra.mrb[0].mxu0 %v2701
  %v2703 = vpop.f32.mrb[0].mxu0
  %v2704 = vadd.f32 %v2475, %v2703
  %v2705 = vpop.f32.mrb[0].mxu0
  %v2706 = vand.u32 %v2367, 4294901760
  %2707 = vmatprep.mubr.f32.mxu0 %v2706
  %v2708 = vand.u32 %v2366, 4294901760
  %2709 = vmatmul.mubr.f32.gmra.mrb[0].mxu0 %v2708
  %v2710 = vpop.f32.mrb[0].mxu0
  %v2711 = vadd.f32 %v2490, %v2710
  %v2712 = vpop.f32.mrb[0].mxu0
  %2713 = vdwg.mxu0
  %2714 = vmatprep.subr.mxu0 0.0
  %v2715 = vsub.f32 %v2320, %v2320
  %2716 = vmatpush1.msra.mxu0 %v2715
  %2717 = vmatprep.subr.mxu0 0.0
  %v2718 = vsub.f32 %v2321, %v2321
  %2719 = vmatpush1.msra.mxu0 %v2718
  %2720 = vmatprep.subr.mxu0 0.0
  %v2721 = vsub.f32 %v2322, %v2322
  %2722 = vmatpush1.msra.mxu0 %v2721
  %2723 = vmatprep.subr.mxu0 0.0
  %v2724 = vsub.f32 %v2323, %v2323
  %2725 = vmatpush1.msra.mxu0 %v2724
  %2726 = vmatprep.subr.mxu0 0.0
  %v2727 = vsub.f32 %v2324, %v2324
  %2728 = vmatpush1.msra.mxu0 %v2727
  %2729 = vmatprep.subr.mxu0 0.0
  %v2730 = vsub.f32 %v2325, %v2325
  %2731 = vmatpush1.msra.mxu0 %v2730
  %2732 = vmatprep.subr.mxu0 0.0
  %v2733 = vsub.f32 %v2326, %v2326
  %2734 = vmatpush1.msra.mxu0 %v2733
  %2735 = vmatprep.subr.mxu0 0.0
  %v2736 = vsub.f32 %v2327, %v2327
  %2737 = vmatpush1.msra.mxu0 %v2736
  %2738 = vmatprep.subr.mxu0 0.0
  %v2739 = vsub.f32 %v2328, %v2328
  %2740 = vmatpush1.msra.mxu0 %v2739
  %2741 = vmatprep.subr.mxu0 0.0
  %v2742 = vsub.f32 %v2329, %v2329
  %2743 = vmatpush1.msra.mxu0 %v2742
  %2744 = vmatprep.subr.mxu0 0.0
  %v2745 = vsub.f32 %v2330, %v2330
  %2746 = vmatpush1.msra.mxu0 %v2745
  %2747 = vmatprep.subr.mxu0 0.0
  %v2748 = vsub.f32 %v2331, %v2331
  %2749 = vmatpush1.msra.mxu0 %v2748
  %2750 = vmatprep.subr.mxu0 0.0
  %v2751 = vsub.f32 %v2332, %v2332
  %2752 = vmatpush1.msra.mxu0 %v2751
  %2753 = vmatprep.subr.mxu0 0.0
  %v2754 = vsub.f32 %v2333, %v2333
  %2755 = vmatpush1.msra.mxu0 %v2754
  %2756 = vmatprep.subr.mxu0 0.0
  %v2757 = vsub.f32 %v2334, %v2334
  %2758 = vmatpush1.msra.mxu0 %v2757
  %2759 = vmatprep.subr.mxu0 0.0
  %v2760 = vsub.f32 %v2335, %v2335
  %2761 = vmatpush1.msra.mxu0 %v2760
  %2762 = vmatprep.subr.mxu0 0.0
  %v2763 = vsub.f32 %v2336, %v2336
  %2764 = vmatpush1.msra.mxu0 %v2763
  %2765 = vmatprep.subr.mxu0 0.0
  %v2766 = vsub.f32 %v2337, %v2337
  %2767 = vmatpush1.msra.mxu0 %v2766
  %2768 = vmatprep.subr.mxu0 0.0
  %v2769 = vsub.f32 %v2338, %v2338
  %2770 = vmatpush1.msra.mxu0 %v2769
  %2771 = vmatprep.subr.mxu0 0.0
  %v2772 = vsub.f32 %v2339, %v2339
  %2773 = vmatpush1.msra.mxu0 %v2772
  %2774 = vmatprep.subr.mxu0 0.0
  %v2775 = vsub.f32 %v2340, %v2340
  %2776 = vmatpush1.msra.mxu0 %v2775
  %2777 = vmatprep.subr.mxu0 0.0
  %v2778 = vsub.f32 %v2341, %v2341
  %2779 = vmatpush1.msra.mxu0 %v2778
  %2780 = vmatprep.subr.mxu0 0.0
  %v2781 = vsub.f32 %v2342, %v2342
  %2782 = vmatpush1.msra.mxu0 %v2781
  %2783 = vmatprep.subr.mxu0 0.0
  %v2784 = vsub.f32 %v2343, %v2343
  %2785 = vmatpush1.msra.mxu0 %v2784
  %2786 = vmatprep.subr.mxu0 0.0
  %v2787 = vsub.f32 %v2344, %v2344
  %2788 = vmatpush1.msra.mxu0 %v2787
  %2789 = vmatprep.subr.mxu0 0.0
  %v2790 = vsub.f32 %v2345, %v2345
  %2791 = vmatpush1.msra.mxu0 %v2790
  %2792 = vmatprep.subr.mxu0 0.0
  %v2793 = vsub.f32 %v2346, %v2346
  %2794 = vmatpush1.msra.mxu0 %v2793
  %2795 = vmatprep.subr.mxu0 0.0
  %v2796 = vsub.f32 %v2347, %v2347
  %2797 = vmatpush1.msra.mxu0 %v2796
  %2798 = vmatprep.subr.mxu0 0.0
  %v2799 = vsub.f32 %v2348, %v2348
  %2800 = vmatpush1.msra.mxu0 %v2799
  %2801 = vmatprep.subr.mxu0 0.0
  %v2802 = vsub.f32 %v2349, %v2349
  %2803 = vmatpush1.msra.mxu0 %v2802
  %2804 = vmatprep.subr.mxu0 0.0
  %v2805 = vsub.f32 %v2350, %v2350
  %2806 = vmatpush1.msra.mxu0 %v2805
  %2807 = vmatprep.subr.mxu0 0.0
  %v2808 = vsub.f32 %v2351, %v2351
  %2809 = vmatpush1.msra.mxu0 %v2808
  %v2810 = vand.u32 %v2361, 4294901760
  %v2811 = vsub.f32 %v2361, %v2810
  %2812 = vmatprep.mubr.f32.mxu0 %v2811
  %v2813 = vand.u32 %v2360, 4294901760
  %v2814 = vsub.f32 %v2360, %v2813
  %2815 = vmatmul.mubr.f32.gmra.mrb[0].mxu0 %v2814
  %v2816 = vpop.f32.mrb[0].mxu0
  %v2817 = vadd.f32 %v2690, %v2816
  %v2818 = vpop.f32.mrb[0].mxu0
  %v2819 = vand.u32 %v2363, 4294901760
  %v2820 = vsub.f32 %v2363, %v2819
  %2821 = vmatprep.mubr.f32.mxu0 %v2820
  %v2822 = vand.u32 %v2362, 4294901760
  %v2823 = vsub.f32 %v2362, %v2822
  %2824 = vmatmul.mubr.f32.gmra.mrb[0].mxu0 %v2823
  %v2825 = vpop.f32.mrb[0].mxu0
  %v2826 = vadd.f32 %v2697, %v2825
  %v2827 = vpop.f32.mrb[0].mxu0
  %v2828 = vand.u32 %v2365, 4294901760
  %v2829 = vsub.f32 %v2365, %v2828
  %2830 = vmatprep.mubr.f32.mxu0 %v2829
  %v2831 = vand.u32 %v2364, 4294901760
  %v2832 = vsub.f32 %v2364, %v2831
  %2833 = vmatmul.mubr.f32.gmra.mrb[0].mxu0 %v2832
  %v2834 = vpop.f32.mrb[0].mxu0
  %v2835 = vadd.f32 %v2704, %v2834
  %v2836 = vpop.f32.mrb[0].mxu0
  %v2837 = vand.u32 %v2367, 4294901760
  %v2838 = vsub.f32 %v2367, %v2837
  %2839 = vmatprep.mubr.f32.mxu0 %v2838
  %v2840 = vand.u32 %v2366, 4294901760
  %v2841 = vsub.f32 %v2366, %v2840
  %2842 = vmatmul.mubr.f32.gmra.mrb[0].mxu0 %v2841
  %v2843 = vpop.f32.mrb[0].mxu0
  %v2844 = vadd.f32 %v2711, %v2843
  %v2845 = vpop.f32.mrb[0].mxu0
  %2846 = vdwg.mxu0
  %2847 = vmatprep.subr.mxu0 0.0
  %2848 = vmatpush1.msra.mxu0 %v2320
  %2849 = vmatprep.subr.mxu0 0.0
  %2850 = vmatpush1.msra.mxu0 %v2321
  %2851 = vmatprep.subr.mxu0 0.0
  %2852 = vmatpush1.msra.mxu0 %v2322
  %2853 = vmatprep.subr.mxu0 0.0
  %2854 = vmatpush1.msra.mxu0 %v2323
  %2855 = vmatprep.subr.mxu0 0.0
  %2856 = vmatpush1.msra.mxu0 %v2324
  %2857 = vmatprep.subr.mxu0 0.0
  %2858 = vmatpush1.msra.mxu0 %v2325
  %2859 = vmatprep.subr.mxu0 0.0
  %2860 = vmatpush1.msra.mxu0 %v2326
  %2861 = vmatprep.subr.mxu0 0.0
  %2862 = vmatpush1.msra.mxu0 %v2327
  %2863 = vmatprep.subr.mxu0 0.0
  %2864 = vmatpush1.msra.mxu0 %v2328
  %2865 = vmatprep.subr.mxu0 0.0
  %2866 = vmatpush1.msra.mxu0 %v2329
  %2867 = vmatprep.subr.mxu0 0.0
  %2868 = vmatpush1.msra.mxu0 %v2330
  %2869 = vmatprep.subr.mxu0 0.0
  %2870 = vmatpush1.msra.mxu0 %v2331
  %2871 = vmatprep.subr.mxu0 0.0
  %2872 = vmatpush1.msra.mxu0 %v2332
  %2873 = vmatprep.subr.mxu0 0.0
  %2874 = vmatpush1.msra.mxu0 %v2333
  %2875 = vmatprep.subr.mxu0 0.0
  %2876 = vmatpush1.msra.mxu0 %v2334
  %2877 = vmatprep.subr.mxu0 0.0
  %2878 = vmatpush1.msra.mxu0 %v2335
  %2879 = vmatprep.subr.mxu0 0.0
  %2880 = vmatpush1.msra.mxu0 %v2336
  %2881 = vmatprep.subr.mxu0 0.0
  %2882 = vmatpush1.msra.mxu0 %v2337
  %2883 = vmatprep.subr.mxu0 0.0
  %2884 = vmatpush1.msra.mxu0 %v2338
  %2885 = vmatprep.subr.mxu0 0.0
  %2886 = vmatpush1.msra.mxu0 %v2339
  %2887 = vmatprep.subr.mxu0 0.0
  %2888 = vmatpush1.msra.mxu0 %v2340
  %2889 = vmatprep.subr.mxu0 0.0
  %2890 = vmatpush1.msra.mxu0 %v2341
  %2891 = vmatprep.subr.mxu0 0.0
  %2892 = vmatpush1.msra.mxu0 %v2342
  %2893 = vmatprep.subr.mxu0 0.0
  %2894 = vmatpush1.msra.mxu0 %v2343
  %2895 = vmatprep.subr.mxu0 0.0
  %2896 = vmatpush1.msra.mxu0 %v2344
  %2897 = vmatprep.subr.mxu0 0.0
  %2898 = vmatpush1.msra.mxu0 %v2345
  %2899 = vmatprep.subr.mxu0 0.0
  %2900 = vmatpush1.msra.mxu0 %v2346
  %2901 = vmatprep.subr.mxu0 0.0
  %2902 = vmatpush1.msra.mxu0 %v2347
  %2903 = vmatprep.subr.mxu0 0.0
  %2904 = vmatpush1.msra.mxu0 %v2348
  %2905 = vmatprep.subr.mxu0 0.0
  %2906 = vmatpush1.msra.mxu0 %v2349
  %2907 = vmatprep.subr.mxu0 0.0
  %2908 = vmatpush1.msra.mxu0 %v2350
  %2909 = vmatprep.subr.mxu0 0.0
  %2910 = vmatpush1.msra.mxu0 %v2351
  %v2911 = vand.u32 %v2361, 4294901760
  %v2912 = vsub.f32 %v2361, %v2911
  %v2913 = vand.u32 %v2912, 4294901760
  %2914 = vmatprep.mubr.f32.mxu0 %v2913
  %v2915 = vand.u32 %v2360, 4294901760
  %v2916 = vsub.f32 %v2360, %v2915
  %v2917 = vand.u32 %v2916, 4294901760
  %2918 = vmatmul.mubr.f32.gmra.mrb[0].mxu0 %v2917
  %v2919 = vpop.f32.mrb[0].mxu0
  %v2920 = vadd.f32 %v2817, %v2919
  %v2921 = vpop.f32.mrb[0].mxu0
  %v2922 = vand.u32 %v2363, 4294901760
  %v2923 = vsub.f32 %v2363, %v2922
  %v2924 = vand.u32 %v2923, 4294901760
  %2925 = vmatprep.mubr.f32.mxu0 %v2924
  %v2926 = vand.u32 %v2362, 4294901760
  %v2927 = vsub.f32 %v2362, %v2926
  %v2928 = vand.u32 %v2927, 4294901760
  %2929 = vmatmul.mubr.f32.gmra.mrb[0].mxu0 %v2928
  %v2930 = vpop.f32.mrb[0].mxu0
  %v2931 = vadd.f32 %v2826, %v2930
  %v2932 = vpop.f32.mrb[0].mxu0
  %v2933 = vand.u32 %v2365, 4294901760
  %v2934 = vsub.f32 %v2365, %v2933
  %v2935 = vand.u32 %v2934, 4294901760
  %2936 = vmatprep.mubr.f32.mxu0 %v2935
  %v2937 = vand.u32 %v2364, 4294901760
  %v2938 = vsub.f32 %v2364, %v2937
  %v2939 = vand.u32 %v2938, 4294901760
  %2940 = vmatmul.mubr.f32.gmra.mrb[0].mxu0 %v2939
  %v2941 = vpop.f32.mrb[0].mxu0
  %v2942 = vadd.f32 %v2835, %v2941
  %v2943 = vpop.f32.mrb[0].mxu0
  %v2944 = vand.u32 %v2367, 4294901760
  %v2945 = vsub.f32 %v2367, %v2944
  %v2946 = vand.u32 %v2945, 4294901760
  %2947 = vmatprep.mubr.f32.mxu0 %v2946
  %v2948 = vand.u32 %v2366, 4294901760
  %v2949 = vsub.f32 %v2366, %v2948
  %v2950 = vand.u32 %v2949, 4294901760
  %2951 = vmatmul.mubr.f32.gmra.mrb[0].mxu0 %v2950
  %v2952 = vpop.f32.mrb[0].mxu0
  %v2953 = vadd.f32 %v2844, %v2952
  %v2954 = vpop.f32.mrb[0].mxu0
  %2955 = vdwg.mxu0
  %2956 = vmatprep.subr.mxu0 0.0
  %v2957 = vsub.f32 %v2320, %v2320
  %v2958 = vand.u32 %v2957, 4294901760
  %2959 = vmatpush1.msra.mxu0 %v2958
  %2960 = vmatprep.subr.mxu0 0.0
  %v2961 = vsub.f32 %v2321, %v2321
  %v2962 = vand.u32 %v2961, 4294901760
  %2963 = vmatpush1.msra.mxu0 %v2962
  %2964 = vmatprep.subr.mxu0 0.0
  %v2965 = vsub.f32 %v2322, %v2322
  %v2966 = vand.u32 %v2965, 4294901760
  %2967 = vmatpush1.msra.mxu0 %v2966
  %2968 = vmatprep.subr.mxu0 0.0
  %v2969 = vsub.f32 %v2323, %v2323
  %v2970 = vand.u32 %v2969, 4294901760
  %2971 = vmatpush1.msra.mxu0 %v2970
  %2972 = vmatprep.subr.mxu0 0.0
  %v2973 = vsub.f32 %v2324, %v2324
  %v2974 = vand.u32 %v2973, 4294901760
  %2975 = vmatpush1.msra.mxu0 %v2974
  %2976 = vmatprep.subr.mxu0 0.0
  %v2977 = vsub.f32 %v2325, %v2325
  %v2978 = vand.u32 %v2977, 4294901760
  %2979 = vmatpush1.msra.mxu0 %v2978
  %2980 = vmatprep.subr.mxu0 0.0
  %v2981 = vsub.f32 %v2326, %v2326
  %v2982 = vand.u32 %v2981, 4294901760
  %2983 = vmatpush1.msra.mxu0 %v2982
  %2984 = vmatprep.subr.mxu0 0.0
  %v2985 = vsub.f32 %v2327, %v2327
  %v2986 = vand.u32 %v2985, 4294901760
  %2987 = vmatpush1.msra.mxu0 %v2986
  %2988 = vmatprep.subr.mxu0 0.0
  %v2989 = vsub.f32 %v2328, %v2328
  %v2990 = vand.u32 %v2989, 4294901760
  %2991 = vmatpush1.msra.mxu0 %v2990
  %2992 = vmatprep.subr.mxu0 0.0
  %v2993 = vsub.f32 %v2329, %v2329
  %v2994 = vand.u32 %v2993, 4294901760
  %2995 = vmatpush1.msra.mxu0 %v2994
  %2996 = vmatprep.subr.mxu0 0.0
  %v2997 = vsub.f32 %v2330, %v2330
  %v2998 = vand.u32 %v2997, 4294901760
  %2999 = vmatpush1.msra.mxu0 %v2998
  %3000 = vmatprep.subr.mxu0 0.0
  %v3001 = vsub.f32 %v2331, %v2331
  %v3002 = vand.u32 %v3001, 4294901760
  %3003 = vmatpush1.msra.mxu0 %v3002
  %3004 = vmatprep.subr.mxu0 0.0
  %v3005 = vsub.f32 %v2332, %v2332
  %v3006 = vand.u32 %v3005, 4294901760
  %3007 = vmatpush1.msra.mxu0 %v3006
  %3008 = vmatprep.subr.mxu0 0.0
  %v3009 = vsub.f32 %v2333, %v2333
  %v3010 = vand.u32 %v3009, 4294901760
  %3011 = vmatpush1.msra.mxu0 %v3010
  %3012 = vmatprep.subr.mxu0 0.0
  %v3013 = vsub.f32 %v2334, %v2334
  %v3014 = vand.u32 %v3013, 4294901760
  %3015 = vmatpush1.msra.mxu0 %v3014
  %3016 = vmatprep.subr.mxu0 0.0
  %v3017 = vsub.f32 %v2335, %v2335
  %v3018 = vand.u32 %v3017, 4294901760
  %3019 = vmatpush1.msra.mxu0 %v3018
  %3020 = vmatprep.subr.mxu0 0.0
  %v3021 = vsub.f32 %v2336, %v2336
  %v3022 = vand.u32 %v3021, 4294901760
  %3023 = vmatpush1.msra.mxu0 %v3022
  %3024 = vmatprep.subr.mxu0 0.0
  %v3025 = vsub.f32 %v2337, %v2337
  %v3026 = vand.u32 %v3025, 4294901760
  %3027 = vmatpush1.msra.mxu0 %v3026
  %3028 = vmatprep.subr.mxu0 0.0
  %v3029 = vsub.f32 %v2338, %v2338
  %v3030 = vand.u32 %v3029, 4294901760
  %3031 = vmatpush1.msra.mxu0 %v3030
  %3032 = vmatprep.subr.mxu0 0.0
  %v3033 = vsub.f32 %v2339, %v2339
  %v3034 = vand.u32 %v3033, 4294901760
  %3035 = vmatpush1.msra.mxu0 %v3034
  %3036 = vmatprep.subr.mxu0 0.0
  %v3037 = vsub.f32 %v2340, %v2340
  %v3038 = vand.u32 %v3037, 4294901760
  %3039 = vmatpush1.msra.mxu0 %v3038
  %3040 = vmatprep.subr.mxu0 0.0
  %v3041 = vsub.f32 %v2341, %v2341
  %v3042 = vand.u32 %v3041, 4294901760
  %3043 = vmatpush1.msra.mxu0 %v3042
  %3044 = vmatprep.subr.mxu0 0.0
  %v3045 = vsub.f32 %v2342, %v2342
  %v3046 = vand.u32 %v3045, 4294901760
  %3047 = vmatpush1.msra.mxu0 %v3046
  %3048 = vmatprep.subr.mxu0 0.0
  %v3049 = vsub.f32 %v2343, %v2343
  %v3050 = vand.u32 %v3049, 4294901760
  %3051 = vmatpush1.msra.mxu0 %v3050
  %3052 = vmatprep.subr.mxu0 0.0
  %v3053 = vsub.f32 %v2344, %v2344
  %v3054 = vand.u32 %v3053, 4294901760
  %3055 = vmatpush1.msra.mxu0 %v3054
  %3056 = vmatprep.subr.mxu0 0.0
  %v3057 = vsub.f32 %v2345, %v2345
  %v3058 = vand.u32 %v3057, 4294901760
  %3059 = vmatpush1.msra.mxu0 %v3058
  %3060 = vmatprep.subr.mxu0 0.0
  %v3061 = vsub.f32 %v2346, %v2346
  %v3062 = vand.u32 %v3061, 4294901760
  %3063 = vmatpush1.msra.mxu0 %v3062
  %3064 = vmatprep.subr.mxu0 0.0
  %v3065 = vsub.f32 %v2347, %v2347
  %v3066 = vand.u32 %v3065, 4294901760
  %3067 = vmatpush1.msra.mxu0 %v3066
  %3068 = vmatprep.subr.mxu0 0.0
  %v3069 = vsub.f32 %v2348, %v2348
  %v3070 = vand.u32 %v3069, 4294901760
  %3071 = vmatpush1.msra.mxu0 %v3070
  %3072 = vmatprep.subr.mxu0 0.0
  %v3073 = vsub.f32 %v2349, %v2349
  %v3074 = vand.u32 %v3073, 4294901760
  %3075 = vmatpush1.msra.mxu0 %v3074
  %3076 = vmatprep.subr.mxu0 0.0
  %v3077 = vsub.f32 %v2350, %v2350
  %v3078 = vand.u32 %v3077, 4294901760
  %3079 = vmatpush1.msra.mxu0 %v3078
  %3080 = vmatprep.subr.mxu0 0.0
  %v3081 = vsub.f32 %v2351, %v2351
  %v3082 = vand.u32 %v3081, 4294901760
  %3083 = vmatpush1.msra.mxu0 %v3082
  %v3084 = vand.u32 %v2361, 4294901760
  %3085 = vmatprep.mubr.f32.mxu0 %v3084
  %v3086 = vand.u32 %v2360, 4294901760
  %3087 = vmatmul.mubr.f32.gmra.mrb[0].mxu0 %v3086
  %v3088 = vpop.f32.mrb[0].mxu0
  %v3089 = vadd.f32 %v2920, %v3088
  %v3090 = vpop.f32.mrb[0].mxu0
  %v3091 = vand.u32 %v2363, 4294901760
  %3092 = vmatprep.mubr.f32.mxu0 %v3091
  %v3093 = vand.u32 %v2362, 4294901760
  %3094 = vmatmul.mubr.f32.gmra.mrb[0].mxu0 %v3093
  %v3095 = vpop.f32.mrb[0].mxu0
  %v3096 = vadd.f32 %v2931, %v3095
  %v3097 = vpop.f32.mrb[0].mxu0
  %v3098 = vand.u32 %v2365, 4294901760
  %3099 = vmatprep.mubr.f32.mxu0 %v3098
  %v3100 = vand.u32 %v2364, 4294901760
  %3101 = vmatmul.mubr.f32.gmra.mrb[0].mxu0 %v3100
  %v3102 = vpop.f32.mrb[0].mxu0
  %v3103 = vadd.f32 %v2942, %v3102
  %v3104 = vpop.f32.mrb[0].mxu0
  %v3105 = vand.u32 %v2367, 4294901760
  %3106 = vmatprep.mubr.f32.mxu0 %v3105
  %v3107 = vand.u32 %v2366, 4294901760
  %3108 = vmatmul.mubr.f32.gmra.mrb[0].mxu0 %v3107
  %v3109 = vpop.f32.mrb[0].mxu0
  %v3110 = vadd.f32 %v2953, %v3109
  %v3111 = vpop.f32.mrb[0].mxu0
  %3112 = vdwg.mxu0
  %3113 = vmatprep.subr.mxu0 0.0
  %3114 = vmatpush1.msra.mxu0 %v2320
  %3115 = vmatprep.subr.mxu0 0.0
  %3116 = vmatpush1.msra.mxu0 %v2321
  %3117 = vmatprep.subr.mxu0 0.0
  %3118 = vmatpush1.msra.mxu0 %v2322
  %3119 = vmatprep.subr.mxu0 0.0
  %3120 = vmatpush1.msra.mxu0 %v2323
  %3121 = vmatprep.subr.mxu0 0.0
  %3122 = vmatpush1.msra.mxu0 %v2324
  %3123 = vmatprep.subr.mxu0 0.0
  %3124 = vmatpush1.msra.mxu0 %v2325
  %3125 = vmatprep.subr.mxu0 0.0
  %3126 = vmatpush1.msra.mxu0 %v2326
  %3127 = vmatprep.subr.mxu0 0.0
  %3128 = vmatpush1.msra.mxu0 %v2327
  %3129 = vmatprep.subr.mxu0 0.0
  %3130 = vmatpush1.msra.mxu0 %v2328
  %3131 = vmatprep.subr.mxu0 0.0
  %3132 = vmatpush1.msra.mxu0 %v2329
  %3133 = vmatprep.subr.mxu0 0.0
  %3134 = vmatpush1.msra.mxu0 %v2330
  %3135 = vmatprep.subr.mxu0 0.0
  %3136 = vmatpush1.msra.mxu0 %v2331
  %3137 = vmatprep.subr.mxu0 0.0
  %3138 = vmatpush1.msra.mxu0 %v2332
  %3139 = vmatprep.subr.mxu0 0.0
  %3140 = vmatpush1.msra.mxu0 %v2333
  %3141 = vmatprep.subr.mxu0 0.0
  %3142 = vmatpush1.msra.mxu0 %v2334
  %3143 = vmatprep.subr.mxu0 0.0
  %3144 = vmatpush1.msra.mxu0 %v2335
  %3145 = vmatprep.subr.mxu0 0.0
  %3146 = vmatpush1.msra.mxu0 %v2336
  %3147 = vmatprep.subr.mxu0 0.0
  %3148 = vmatpush1.msra.mxu0 %v2337
  %3149 = vmatprep.subr.mxu0 0.0
  %3150 = vmatpush1.msra.mxu0 %v2338
  %3151 = vmatprep.subr.mxu0 0.0
  %3152 = vmatpush1.msra.mxu0 %v2339
  %3153 = vmatprep.subr.mxu0 0.0
  %3154 = vmatpush1.msra.mxu0 %v2340
  %3155 = vmatprep.subr.mxu0 0.0
  %3156 = vmatpush1.msra.mxu0 %v2341
  %3157 = vmatprep.subr.mxu0 0.0
  %3158 = vmatpush1.msra.mxu0 %v2342
  %3159 = vmatprep.subr.mxu0 0.0
  %3160 = vmatpush1.msra.mxu0 %v2343
  %3161 = vmatprep.subr.mxu0 0.0
  %3162 = vmatpush1.msra.mxu0 %v2344
  %3163 = vmatprep.subr.mxu0 0.0
  %3164 = vmatpush1.msra.mxu0 %v2345
  %3165 = vmatprep.subr.mxu0 0.0
  %3166 = vmatpush1.msra.mxu0 %v2346
  %3167 = vmatprep.subr.mxu0 0.0
  %3168 = vmatpush1.msra.mxu0 %v2347
  %3169 = vmatprep.subr.mxu0 0.0
  %3170 = vmatpush1.msra.mxu0 %v2348
  %3171 = vmatprep.subr.mxu0 0.0
  %3172 = vmatpush1.msra.mxu0 %v2349
  %3173 = vmatprep.subr.mxu0 0.0
  %3174 = vmatpush1.msra.mxu0 %v2350
  %3175 = vmatprep.subr.mxu0 0.0
  %3176 = vmatpush1.msra.mxu0 %v2351
  %v3177 = vand.u32 %v2361, 4294901760
  %3178 = vmatprep.mubr.f32.mxu0 %v3177
  %v3179 = vand.u32 %v2360, 4294901760
  %3180 = vmatmul.mubr.f32.gmra.mrb[0].mxu0 %v3179
  %v3181 = vpop.f32.mrb[0].mxu0
  %v3182 = vadd.f32 %v3089, %v3181
  %v3183 = vpop.f32.mrb[0].mxu0
  %v3184 = vand.u32 %v2363, 4294901760
  %3185 = vmatprep.mubr.f32.mxu0 %v3184
  %v3186 = vand.u32 %v2362, 4294901760
  %3187 = vmatmul.mubr.f32.gmra.mrb[0].mxu0 %v3186
  %v3188 = vpop.f32.mrb[0].mxu0
  %v3189 = vadd.f32 %v3096, %v3188
  %v3190 = vpop.f32.mrb[0].mxu0
  %v3191 = vand.u32 %v2365, 4294901760
  %3192 = vmatprep.mubr.f32.mxu0 %v3191
  %v3193 = vand.u32 %v2364, 4294901760
  %3194 = vmatmul.mubr.f32.gmra.mrb[0].mxu0 %v3193
  %v3195 = vpop.f32.mrb[0].mxu0
  %v3196 = vadd.f32 %v3103, %v3195
  %v3197 = vpop.f32.mrb[0].mxu0
  %v3198 = vand.u32 %v2367, 4294901760
  %3199 = vmatprep.mubr.f32.mxu0 %v3198
  %v3200 = vand.u32 %v2366, 4294901760
  %3201 = vmatmul.mubr.f32.gmra.mrb[0].mxu0 %v3200
  %v3202 = vpop.f32.mrb[0].mxu0
  %v3203 = vadd.f32 %v3110, %v3202
  %v3204 = vpop.f32.mrb[0].mxu0
  %3205 = vdwg.mxu0
  %v3206 = vand.u32 %v2172, 1
  %v3207 = vand.u32 %v2173, 1
  %v3208 = vand.u32 %v2174, 1
  %v3209 = vand.u32 %v2175, 1
  %vm3210 = vcmp.eq.s32.totalorder %v3206, 0
  %vm3211 = vcmp.eq.s32.totalorder %v3207, 0
  %vm3212 = vcmp.eq.s32.totalorder %v3208, 0
  %vm3213 = vcmp.eq.s32.totalorder %v3209, 0
  %v3214 = vand.u32 %v556, 1
  %vm3215 = vcmp.eq.s32.totalorder %v3214, 0
  %vm3216 = vmand %vm3210, %vm3215
  %vm3217 = vmand %vm3211, %vm3215
  %vm3218 = vmand %vm3212, %vm3215
  %vm3219 = vmand %vm3213, %vm3215
  %3221 = vrot.lane.b32.xlu0 %v2170, 112
  %v3222 = vpop.permute.xlu0 %3221
  %s3223 = vtos %v3222
  %v3224 = vstv %s3223
  %v3226 = vsel %vm3216, %v3182, %v3224
  %v3227 = vsel %vm3217, %v3189, %v3224
  %v3228 = vsel %vm3218, %v3196, %v3224
  %v3229 = vsel %vm3219, %v3203, %v3224
  %vm3230 = vcmask 252928
  %3231 = vst.msk [vmem:[%s2] sm:$0xff] %vm3230, %v3226
  %3232 = vst.msk [vmem:[%s2 + $0x8] sm:$0xff] %vm3230, %v3227
  %3233 = vst.msk [vmem:[%s2 + $0x10] sm:$0xff] %vm3230, %v3228
  %vm3234 = vcmask 251904
  %3235 = vst.msk [vmem:[%s2 + $0x18] sm:$0x7f] %vm3234, %v3229
  // Predicated region
  $region10: #{model_forward.1} parent=0 // pred_check
    _
  $region11: #{model_forward.1} parent=0 // pred_check_branch
    %3237 = sbr.rel (0) target = $region13
  $region12: #{model_forward.1} parent=0 // pred_region
    _
  $region13: #{model_forward.1} parent=0 // pred_fallthru
    _
  // Predicated region
  $region14: #{model_forward.1} parent=0 // pred_check
    _
  $region15: #{model_forward.1} parent=0 // pred_check_branch
    %3239 = sbr.rel (0) target = $region17
  $region16: #{model_forward.1} parent=0 // pred_region
    _
  $region17: #{model_forward.1} parent=0 // pred_fallthru
    _

</llo_original>
